<compile_context>
chip_gen: v7x
topology: tpu7x:2x2x1
jax: 0.10.0
libtpu: 0.0.40
codegen_flags: <defaults>
</compile_context>

<pallas_src>
import functools
import math

import jax
import jax.numpy as jnp
import numpy as np
from jax.experimental import pallas as pl
from jax.experimental.pallas import tpu as pltpu


# ----------------------------- math helpers --------------------------------
def _gelu(x):
    # bert_pytorch GELU (tanh approximation), kept in f32.
    return 0.5 * x * (1.0 + jnp.tanh(
        math.sqrt(2.0 / math.pi) * (x + 0.044715 * x * x * x)))


def _layer_norm(x, a, b, eps=1e-6):
    # Matches bert_pytorch LayerNorm: unbiased std (ddof=1), eps added to std.
    h = x.shape[-1]
    mean = jnp.mean(x, axis=-1, keepdims=True)
    var = jnp.sum((x - mean) ** 2, axis=-1, keepdims=True) / (h - 1)
    std = jnp.sqrt(var)
    return a * (x - mean) / (std + eps) + b


# ------------------------------- kernel -------------------------------------
def transformer_block_kernel(x_ref, bias_ref,
                             wqkv_ref, bqkv_ref, wo_ref, bo_ref,
                             ln1a_ref, ln1b_ref, ln2a_ref, ln2b_ref,
                             w1_ref, b1_ref, w2_ref, b2_ref,
                             o_ref, qkv_ref, *, n_heads, tq):
    """One pre-LN transformer block; grid = (batch, query_tile)."""
    qi = pl.program_id(1)
    S, H = x_ref.shape[1], x_ref.shape[2]
    dk = H // n_heads

    # ---- phase 0 (once per batch row): fused QKV projection, full sequence --
    @pl.when(qi == 0)
    def _():
        x_full = x_ref[0]                                        # (S, H) f32
        ln1 = _layer_norm(x_full, ln1a_ref[...], ln1b_ref[...])
        # One (S,H)x(H,3H) bf16 MXU matmul; 1/sqrt(dk) is already folded into
        # the Q third of wqkv / bqkv at parameter-prep time.
        qkv = jnp.dot(ln1.astype(jnp.bfloat16), wqkv_ref[...],
                      preferred_element_type=jnp.float32) + bqkv_ref[...]
        qkv = qkv.astype(jnp.bfloat16)                           # (S, 3H)
        for t in range(3):                                       # q, k, v
            part = qkv[:, t * H:(t + 1) * H].reshape(S, n_heads, dk)
            qkv_ref[t] = jnp.transpose(part, (1, 0, 2))          # (nh, S, dk)

    # ---- sublayer 1: head-batched attention on this query tile ----
    row0 = pl.multiple_of(qi * tq, tq)
    x_tile = x_ref[0, pl.ds(row0, tq), :]                        # (tq, H) f32

    qh = qkv_ref[0, :, pl.ds(row0, tq), :]                       # (nh, tq, dk) bf16 (pre-scaled)
    kh = qkv_ref[1]                                              # (nh, S,  dk) bf16
    vh = qkv_ref[2]                                              # (nh, S,  dk) bf16

    scores = jnp.einsum("hqd,hkd->hqk", qh, kh,
                        preferred_element_type=jnp.float32)      # (nh, tq, S)
    scores = scores + bias_ref[0][None, :, :]                    # additive mask bias

    scores = scores - jnp.max(scores, axis=-1, keepdims=True)    # f32 softmax
    p = jnp.exp(scores)
    p = p * pl.reciprocal(jnp.sum(p, axis=-1, keepdims=True), approx=True)

    ctx = jnp.einsum("hqk,hkd->hqd", p.astype(jnp.bfloat16), vh,
                     preferred_element_type=jnp.float32)         # (nh, tq, dk)
    ctx = jnp.transpose(ctx, (1, 0, 2)).reshape(tq, H)           # concat heads

    attn = jnp.dot(ctx.astype(jnp.bfloat16), wo_ref[...],
                   preferred_element_type=jnp.float32) + bo_ref[...]
    # TODO(synk): dropout layers are identity here (eval mode).
    x1 = x_tile + attn

    # ---- sublayer 2: position-wise feed-forward with pre-LN residual ----
    ln2 = _layer_norm(x1, ln2a_ref[...], ln2b_ref[...])
    h1 = _gelu(jnp.dot(ln2.astype(jnp.bfloat16), w1_ref[...],
                       preferred_element_type=jnp.float32) + b1_ref[...])
    h2 = jnp.dot(h1.astype(jnp.bfloat16), w2_ref[...],
                 preferred_element_type=jnp.float32) + b2_ref[...]

    o_ref[0] = x1 + h2


# ------------------------------ wrappers -------------------------------------
def transformer_block(x, bias, p, n_heads, tq):
    B, S, H = x.shape
    assert H % n_heads == 0 and S % tq == 0
    dk = H // n_heads

    weight_args = [p["wqkv"], p["bqkv"], p["wo"], p["bo"],
                   p["ln1a"], p["ln1b"], p["ln2a"], p["ln2b"],
                   p["w1"], p["b1"], p["w2"], p["b2"]]

    in_specs = [
        pl.BlockSpec((1, S, H), lambda b, q: (b, 0, 0)),     # x, resident per batch row
        pl.BlockSpec((1, tq, S), lambda b, q: (b, q, 0)),    # additive mask bias tile
    ] + [pl.BlockSpec(a.shape, lambda b, q: (0, 0)) for a in weight_args]

    return pl.pallas_call(
        functools.partial(transformer_block_kernel, n_heads=n_heads, tq=tq),
        out_shape=jax.ShapeDtypeStruct((B, S, H), jnp.float32),
        grid=(B, S // tq),
        in_specs=in_specs,
        out_specs=pl.BlockSpec((1, tq, H), lambda b, q: (b, q, 0)),
        scratch_shapes=[pltpu.VMEM((3, n_heads, S, dk), jnp.bfloat16)],
        compiler_params=pltpu.CompilerParams(
            dimension_semantics=("parallel", "arbitrary"),
            vmem_limit_bytes=48 * 1024 * 1024),
    )(x, bias, *weight_args)


def bert_forward(x, bias, layer_params, n_heads, tq):
    for p in layer_params:
        x = transformer_block(x, bias, p, n_heads, tq)
    return x


def prepare_params(layer_params, n_heads):
    """One-time weight prep: transpose to (in,out), fuse QKV, fold 1/sqrt(dk)
    into the Q columns, cast matmul weights to bf16.  Biases/LN stay f32."""
    prepped = []
    for p in layer_params:
        H = p["wq"].shape[0]
        scale = 1.0 / math.sqrt(H // n_heads)
        wqkv = jnp.concatenate([p["wq"].T * scale, p["wk"].T, p["wv"].T], axis=1)
        bqkv = jnp.concatenate([p["bq"] * scale, p["bk"], p["bv"]])[None, :]
        prepped.append({
            "wqkv": wqkv.astype(jnp.bfloat16),
            "bqkv": bqkv.astype(jnp.float32),
            "wo": p["wo"].T.astype(jnp.bfloat16),
            "bo": p["bo"][None, :].astype(jnp.float32),
            "ln1a": p["ln1a"][None, :], "ln1b": p["ln1b"][None, :],
            "ln2a": p["ln2a"][None, :], "ln2b": p["ln2b"][None, :],
            "w1": p["w1"].T.astype(jnp.bfloat16),
            "b1": p["b1"][None, :].astype(jnp.float32),
            "w2": p["w2"].T.astype(jnp.bfloat16),
            "b2": p["b2"][None, :].astype(jnp.float32),
        })
    return prepped


# --------------------------- pure-JAX reference ------------------------------
def _ref_block(x, mask, p, n_heads):
    B, S, H = x.shape
    dk = H // n_heads
    ln1 = _layer_norm(x, p["ln1a"], p["ln1b"])
    q = ln1 @ p["wq"].T + p["bq"]
    k = ln1 @ p["wk"].T + p["bk"]
    v = ln1 @ p["wv"].T + p["bv"]
    qh = q.reshape(B, S, n_heads, dk).transpose(0, 2, 1, 3)
    kh = k.reshape(B, S, n_heads, dk).transpose(0, 2, 1, 3)
    vh = v.reshape(B, S, n_heads, dk).transpose(0, 2, 1, 3)
    scores = jnp.einsum("bhqd,bhkd->bhqk", qh, kh) / math.sqrt(dk)
    scores = jnp.where(mask == 0.0, -1e9, scores)   # mask (B,1,S,S) broadcasts over heads
    scores = scores - jnp.max(scores, axis=-1, keepdims=True)
    pattn = jnp.exp(scores)
    pattn = pattn / jnp.sum(pattn, axis=-1, keepdims=True)
    ctx = jnp.einsum("bhqk,bhkd->bhqd", pattn, vh)
    ctx = ctx.transpose(0, 2, 1, 3).reshape(B, S, H)
    x = x + (ctx @ p["wo"].T + p["bo"])
    ln2 = _layer_norm(x, p["ln2a"], p["ln2b"])
    h1 = _gelu(ln2 @ p["w1"].T + p["b1"])
    x = x + (h1 @ p["w2"].T + p["b2"])
    return x


def ref_forward(x, mask, layer_params, n_heads):
    for p in layer_params:
        x = _ref_block(x, mask, p, n_heads)
    return x


# --------------------------- parameter init ----------------------------------
def init_params(key, n_layers, hidden, d_ff):
    layers = []
    for _ in range(n_layers):
        keys = jax.random.split(key, 13)
        key = keys[0]
        n = lambda k, shape: (0.05 * jax.random.normal(k, shape, jnp.float32))
        p = {
            "wq": n(keys[1], (hidden, hidden)), "bq": n(keys[2], (hidden,)),
            "wk": n(keys[3], (hidden, hidden)), "bk": n(keys[4], (hidden,)),
            "wv": n(keys[5], (hidden, hidden)), "bv": n(keys[6], (hidden,)),
            "wo": n(keys[7], (hidden, hidden)), "bo": n(keys[8], (hidden,)),
            "w1": n(keys[9], (d_ff, hidden)),   "b1": n(keys[10], (d_ff,)),
            "w2": n(keys[11], (hidden, d_ff)),  "b2": n(keys[12], (hidden,)),
            "ln1a": jnp.ones((hidden,), jnp.float32),
            "ln1b": jnp.zeros((hidden,), jnp.float32),
            "ln2a": jnp.ones((hidden,), jnp.float32),
            "ln2b": jnp.zeros((hidden,), jnp.float32),
        }
        layers.append(p)
    return layers


# --------------------------------- main ---------------------------------------
if __name__ == "__main__":
    # Small BERT(hidden=32, n_layers=2, attn_heads=4).  Note: real configs
    # (H>=768, S=512) are lane-dense; H=32 is only for the correctness check.
    B, S, HIDDEN, HEADS, LAYERS = 2, 8, 32, 4, 2
    D_FF = HIDDEN * 4
    TQ = min(128, S)                       # query-tile size (sequence tiling)

    key = jax.random.PRNGKey(0)
    kx, kt, kp = jax.random.split(key, 3)

    x = jax.random.normal(kx, (B, S, HIDDEN), jnp.float32)
    tokens = jax.random.randint(kt, (B, S), 0, 5)
    tokens = tokens.at[:, 0].set(1)                          # ensure >=1 valid token
    keep = (tokens > 0).astype(jnp.float32)                  # (B, S)
    mask = jnp.broadcast_to(keep[:, None, None, :], (B, 1, S, S)).astype(jnp.float32)

    params = init_params(kp, LAYERS, HIDDEN, D_FF)
    prepped = prepare_params(params, HEADS)                  # one-time weight prep
    bias = (mask[:, 0] - 1.0) * 1e9                          # (B,S,S): 0 keep / -1e9 mask

    fwd = jax.jit(functools.partial(bert_forward, n_heads=HEADS, tq=TQ))
    out = jax.block_until_ready(fwd(x, bias, prepped))

    ref = ref_forward(x, mask, params, HEADS)
    assert out.shape == (B, S, HIDDEN)
    diff = float(np.max(np.abs(np.asarray(out) - np.asarray(ref))))
    # bf16 MXU inputs + approx-reciprocal softmax => relaxed tolerance vs f32 ref.
    assert np.allclose(np.asarray(out), np.asarray(ref), rtol=3e-2, atol=3e-2), \
        f"Pallas kernel does not match pure-JAX reference (max abs diff {diff})"

    print("KERNEL_OK")
</pallas_src>

<mosaic_0001>
module attributes {stable_mosaic.version = 11 : i64} {
  func.func @transformer_block_kernel(%arg0: i32, %arg1: i32, %arg2: memref<1x8x32xf32, #tpu.memory_space<vmem>>, %arg3: memref<1x8x8xf32, #tpu.memory_space<vmem>>, %arg4: memref<32x96xbf16, #tpu.memory_space<vmem>>, %arg5: memref<1x96xf32, #tpu.memory_space<vmem>>, %arg6: memref<32x32xbf16, #tpu.memory_space<vmem>>, %arg7: memref<1x32xf32, #tpu.memory_space<vmem>>, %arg8: memref<1x32xf32, #tpu.memory_space<vmem>>, %arg9: memref<1x32xf32, #tpu.memory_space<vmem>>, %arg10: memref<1x32xf32, #tpu.memory_space<vmem>>, %arg11: memref<1x32xf32, #tpu.memory_space<vmem>>, %arg12: memref<32x128xbf16, #tpu.memory_space<vmem>>, %arg13: memref<1x128xf32, #tpu.memory_space<vmem>>, %arg14: memref<128x32xbf16, #tpu.memory_space<vmem>>, %arg15: memref<1x32xf32, #tpu.memory_space<vmem>>, %arg16: memref<1x8x32xf32, #tpu.memory_space<vmem>>, %arg17: memref<3x4x8x8xbf16, #tpu.memory_space<vmem>>) attributes {dimension_semantics = [#tpu.dimension_semantics<parallel>, #tpu.dimension_semantics<arbitrary>], iteration_bounds = array<i64: 2, 1>, scalar_prefetch = 0 : i64, scratch_operands = 1 : i64, tpu.core_type = #tpu.core_type<tc>, window_params = [{transform_indices = @transform_0, window_bounds = array<i64: 1, 8, 32>}, {transform_indices = @transform_1, window_bounds = array<i64: 1, 8, 8>}, {pipeline_mode = #tpu.pipeline_mode<synchronous>, transform_indices = @transform_2, window_bounds = array<i64: 32, 96>}, {pipeline_mode = #tpu.pipeline_mode<synchronous>, transform_indices = @transform_3, window_bounds = array<i64: 1, 96>}, {pipeline_mode = #tpu.pipeline_mode<synchronous>, transform_indices = @transform_4, window_bounds = array<i64: 32, 32>}, {pipeline_mode = #tpu.pipeline_mode<synchronous>, transform_indices = @transform_5, window_bounds = array<i64: 1, 32>}, {pipeline_mode = #tpu.pipeline_mode<synchronous>, transform_indices = @transform_6, window_bounds = array<i64: 1, 32>}, {pipeline_mode = #tpu.pipeline_mode<synchronous>, transform_indices = @transform_7, window_bounds = array<i64: 1, 32>}, {pipeline_mode = #tpu.pipeline_mode<synchronous>, transform_indices = @transform_8, window_bounds = array<i64: 1, 32>}, {pipeline_mode = #tpu.pipeline_mode<synchronous>, transform_indices = @transform_9, window_bounds = array<i64: 1, 32>}, {pipeline_mode = #tpu.pipeline_mode<synchronous>, transform_indices = @transform_10, window_bounds = array<i64: 32, 128>}, {pipeline_mode = #tpu.pipeline_mode<synchronous>, transform_indices = @transform_11, window_bounds = array<i64: 1, 128>}, {pipeline_mode = #tpu.pipeline_mode<synchronous>, transform_indices = @transform_12, window_bounds = array<i64: 128, 32>}, {pipeline_mode = #tpu.pipeline_mode<synchronous>, transform_indices = @transform_13, window_bounds = array<i64: 1, 32>}, {transform_indices = @transform_14, window_bounds = array<i64: 1, 8, 32>}]} {
    %c0_i32 = arith.constant 0 : i32
    %0 = arith.cmpi eq, %arg1, %c0_i32 : i32
    %1 = arith.extui %0 : i1 to i32
    %c0_i32_0 = arith.constant 0 : i32
    %2 = arith.cmpi ne, %1, %c0_i32_0 : i32
    scf.if %2 {
      %c0_48 = arith.constant 0 : index
      %c0_49 = arith.constant 0 : index
      %c0_50 = arith.constant 0 : index
      %95 = vector.load %arg2[%c0_48, %c0_49, %c0_50] : memref<1x8x32xf32, #tpu.memory_space<vmem>>, vector<1x8x32xf32>
      %96 = vector.shape_cast %95 : vector<1x8x32xf32> to vector<8x32xf32>
      %c0_51 = arith.constant 0 : index
      %c0_52 = arith.constant 0 : index
      %97 = vector.load %arg8[%c0_51, %c0_52] : memref<1x32xf32, #tpu.memory_space<vmem>>, vector<1x32xf32>
      %c0_53 = arith.constant 0 : index
      %c0_54 = arith.constant 0 : index
      %98 = vector.load %arg9[%c0_53, %c0_54] : memref<1x32xf32, #tpu.memory_space<vmem>>, vector<1x32xf32>
      %cst_55 = arith.constant dense<0.000000e+00> : vector<8xf32>
      %99 = vector.multi_reduction <add>, %96, %cst_55 [1] : vector<8x32xf32> to vector<8xf32>
      %100 = vector.shape_cast %99 : vector<8xf32> to vector<8x1xf32>
      %cst_56 = arith.constant 3.200000e+01 : f32
      %101 = vector.broadcast %cst_56 : f32 to vector<8x1xf32>
      %102 = arith.divf %100, %101 : vector<8x1xf32>
      %103 = vector.broadcast %102 : vector<8x1xf32> to vector<8x32xf32>
      %104 = arith.subf %96, %103 : vector<8x32xf32>
      %105 = arith.mulf %104, %104 : vector<8x32xf32>
      %cst_57 = arith.constant dense<0.000000e+00> : vector<8xf32>
      %106 = vector.multi_reduction <add>, %105, %cst_57 [1] : vector<8x32xf32> to vector<8xf32>
      %107 = vector.shape_cast %106 : vector<8xf32> to vector<8x1xf32>
      %cst_58 = arith.constant 3.100000e+01 : f32
      %108 = vector.broadcast %cst_58 : f32 to vector<8x1xf32>
      %109 = arith.divf %107, %108 : vector<8x1xf32>
      %110 = math.sqrt %109 : vector<8x1xf32>
      %111 = vector.broadcast %102 : vector<8x1xf32> to vector<8x32xf32>
      %112 = arith.subf %96, %111 : vector<8x32xf32>
      %113 = vector.broadcast %97 : vector<1x32xf32> to vector<8x32xf32>
      %114 = arith.mulf %113, %112 : vector<8x32xf32>
      %cst_59 = arith.constant 9.99999997E-7 : f32
      %115 = vector.broadcast %cst_59 : f32 to vector<8x1xf32>
      %116 = arith.addf %110, %115 : vector<8x1xf32>
      %117 = vector.broadcast %116 : vector<8x1xf32> to vector<8x32xf32>
      %118 = arith.divf %114, %117 : vector<8x32xf32>
      %119 = vector.broadcast %98 : vector<1x32xf32> to vector<8x32xf32>
      %120 = arith.addf %118, %119 : vector<8x32xf32>
      %121 = arith.truncf %120 : vector<8x32xf32> to vector<8x32xbf16>
      %c0_60 = arith.constant 0 : index
      %c0_61 = arith.constant 0 : index
      %122 = vector.load %arg4[%c0_60, %c0_61] : memref<32x96xbf16, #tpu.memory_space<vmem>>, vector<32x96xbf16>
      %cst_62 = arith.constant dense<0.000000e+00> : vector<8x96xf32>
      %123 = tpu.matmul %121, %122, %cst_62 {dimension_numbers = #tpu.dot_dimension_numbers<[1], [0], [0], [1], [0, 0, 1, 1], [], []>} : vector<8x32xbf16>, vector<32x96xbf16>, vector<8x96xf32> -> vector<8x96xf32>
      %c0_63 = arith.constant 0 : index
      %c0_64 = arith.constant 0 : index
      %124 = vector.load %arg5[%c0_63, %c0_64] : memref<1x96xf32, #tpu.memory_space<vmem>>, vector<1x96xf32>
      %125 = vector.broadcast %124 : vector<1x96xf32> to vector<8x96xf32>
      %126 = arith.addf %123, %125 : vector<8x96xf32>
      %127 = arith.truncf %126 : vector<8x96xf32> to vector<8x96xbf16>
      %128 = vector.extract_strided_slice %127 {offsets = [0, 0], sizes = [8, 32], strides = [1, 1]} : vector<8x96xbf16> to vector<8x32xbf16>
      %129 = vector.shape_cast %128 : vector<8x32xbf16> to vector<8x4x8xbf16>
      %130 = tpu.transpose %129, [1, 0, 2] : vector<8x4x8xbf16> -> vector<4x8x8xbf16>
      %c0_65 = arith.constant 0 : index
      %c0_66 = arith.constant 0 : index
      %c0_67 = arith.constant 0 : index
      %c0_68 = arith.constant 0 : index
      %131 = vector.load %arg17[%c0_65, %c0_66, %c0_67, %c0_68] : memref<3x4x8x8xbf16, #tpu.memory_space<vmem>>, vector<1x4x8x8xbf16>
      %132 = vector.shape_cast %131 : vector<1x4x8x8xbf16> to vector<4x8x8xbf16>
      %133 = vector.shape_cast %130 : vector<4x8x8xbf16> to vector<1x4x8x8xbf16>
      tpu.vector_store %arg17[%c0_65, %c0_66, %c0_67, %c0_68], %133 {strides = array<i32>} : memref<3x4x8x8xbf16, #tpu.memory_space<vmem>>, vector<1x4x8x8xbf16>,
      %134 = vector.extract_strided_slice %127 {offsets = [0, 32], sizes = [8, 32], strides = [1, 1]} : vector<8x96xbf16> to vector<8x32xbf16>
      %135 = vector.shape_cast %134 : vector<8x32xbf16> to vector<8x4x8xbf16>
      %136 = tpu.transpose %135, [1, 0, 2] : vector<8x4x8xbf16> -> vector<4x8x8xbf16>
      %c1_69 = arith.constant 1 : index
      %c0_70 = arith.constant 0 : index
      %c0_71 = arith.constant 0 : index
      %c0_72 = arith.constant 0 : index
      %137 = vector.load %arg17[%c1_69, %c0_70, %c0_71, %c0_72] : memref<3x4x8x8xbf16, #tpu.memory_space<vmem>>, vector<1x4x8x8xbf16>
      %138 = vector.shape_cast %137 : vector<1x4x8x8xbf16> to vector<4x8x8xbf16>
      %139 = vector.shape_cast %136 : vector<4x8x8xbf16> to vector<1x4x8x8xbf16>
      tpu.vector_store %arg17[%c1_69, %c0_70, %c0_71, %c0_72], %139 {strides = array<i32>} : memref<3x4x8x8xbf16, #tpu.memory_space<vmem>>, vector<1x4x8x8xbf16>,
      %140 = vector.extract_strided_slice %127 {offsets = [0, 64], sizes = [8, 32], strides = [1, 1]} : vector<8x96xbf16> to vector<8x32xbf16>
      %141 = vector.shape_cast %140 : vector<8x32xbf16> to vector<8x4x8xbf16>
      %142 = tpu.transpose %141, [1, 0, 2] : vector<8x4x8xbf16> -> vector<4x8x8xbf16>
      %c2_73 = arith.constant 2 : index
      %c0_74 = arith.constant 0 : index
      %c0_75 = arith.constant 0 : index
      %c0_76 = arith.constant 0 : index
      %143 = vector.load %arg17[%c2_73, %c0_74, %c0_75, %c0_76] : memref<3x4x8x8xbf16, #tpu.memory_space<vmem>>, vector<1x4x8x8xbf16>
      %144 = vector.shape_cast %143 : vector<1x4x8x8xbf16> to vector<4x8x8xbf16>
      %145 = vector.shape_cast %142 : vector<4x8x8xbf16> to vector<1x4x8x8xbf16>
      tpu.vector_store %arg17[%c2_73, %c0_74, %c0_75, %c0_76], %145 {strides = array<i32>} : memref<3x4x8x8xbf16, #tpu.memory_space<vmem>>, vector<1x4x8x8xbf16>,
    } else {
    }
    %c8_i32 = arith.constant 8 : i32
    %3 = arith.muli %arg1, %c8_i32 : i32
    %4 = tpu.assume_multiple %3, 8 : i32
    %c0 = arith.constant 0 : index
    %5 = arith.index_cast %4 : i32 to index
    %c0_1 = arith.constant 0 : index
    %6 = vector.load %arg2[%c0, %5, %c0_1] : memref<1x8x32xf32, #tpu.memory_space<vmem>>, vector<1x8x32xf32>
    %7 = vector.shape_cast %6 : vector<1x8x32xf32> to vector<8x32xf32>
    %c0_2 = arith.constant 0 : index
    %c0_3 = arith.constant 0 : index
    %8 = arith.index_cast %4 : i32 to index
    %c0_4 = arith.constant 0 : index
    %9 = vector.load %arg17[%c0_2, %c0_3, %8, %c0_4] : memref<3x4x8x8xbf16, #tpu.memory_space<vmem>>, vector<1x4x8x8xbf16>
    %10 = vector.shape_cast %9 : vector<1x4x8x8xbf16> to vector<4x8x8xbf16>
    %c1 = arith.constant 1 : index
    %c0_5 = arith.constant 0 : index
    %c0_6 = arith.constant 0 : index
    %c0_7 = arith.constant 0 : index
    %11 = vector.load %arg17[%c1, %c0_5, %c0_6, %c0_7] : memref<3x4x8x8xbf16, #tpu.memory_space<vmem>>, vector<1x4x8x8xbf16>
    %12 = vector.shape_cast %11 : vector<1x4x8x8xbf16> to vector<4x8x8xbf16>
    %c2 = arith.constant 2 : index
    %c0_8 = arith.constant 0 : index
    %c0_9 = arith.constant 0 : index
    %c0_10 = arith.constant 0 : index
    %13 = vector.load %arg17[%c2, %c0_8, %c0_9, %c0_10] : memref<3x4x8x8xbf16, #tpu.memory_space<vmem>>, vector<1x4x8x8xbf16>
    %14 = vector.shape_cast %13 : vector<1x4x8x8xbf16> to vector<4x8x8xbf16>
    "tpu.trace_start"() <{level = 10 : i32, message = "hqd,hkd->hqk"}> : () -> ()
    %cst = arith.constant dense<0.000000e+00> : vector<4x8x8xf32>
    %15 = tpu.matmul %10, %12, %cst {dimension_numbers = #tpu.dot_dimension_numbers<[2], [2], [1], [1], [0, 0, 0, 1, 1, 1], [0], [0]>} : vector<4x8x8xbf16>, vector<4x8x8xbf16>, vector<4x8x8xf32> -> vector<4x8x8xf32>
    "tpu.trace_stop"() : () -> ()
    %c0_11 = arith.constant 0 : index
    %c0_12 = arith.constant 0 : index
    %c0_13 = arith.constant 0 : index
    %16 = vector.load %arg3[%c0_11, %c0_12, %c0_13] : memref<1x8x8xf32, #tpu.memory_space<vmem>>, vector<1x8x8xf32>
    %17 = vector.shape_cast %16 : vector<1x8x8xf32> to vector<8x8xf32>
    %18 = vector.shape_cast %17 : vector<8x8xf32> to vector<1x8x8xf32>
    %19 = vector.broadcast %18 : vector<1x8x8xf32> to vector<4x8x8xf32>
    %20 = arith.addf %15, %19 : vector<4x8x8xf32>
    %cst_14 = arith.constant dense<0xFF800000> : vector<4x8xf32>
    %21 = vector.multi_reduction <maximumf>, %20, %cst_14 [2] : vector<4x8x8xf32> to vector<4x8xf32>
    %22 = vector.shape_cast %21 : vector<4x8xf32> to vector<4x8x1xf32>
    %23 = vector.broadcast %22 : vector<4x8x1xf32> to vector<4x8x8xf32>
    %24 = arith.subf %20, %23 : vector<4x8x8xf32>
    %25 = math.exp %24 : vector<4x8x8xf32>
    %cst_15 = arith.constant dense<0.000000e+00> : vector<4x8xf32>
    %26 = vector.multi_reduction <add>, %25, %cst_15 [2] : vector<4x8x8xf32> to vector<4x8xf32>
    %27 = vector.shape_cast %26 : vector<4x8xf32> to vector<4x8x1xf32>
    %28 = tpu.reciprocal %27 {approx = true} : vector<4x8x1xf32> -> vector<4x8x1xf32>
    %29 = vector.broadcast %28 : vector<4x8x1xf32> to vector<4x8x8xf32>
    %30 = arith.mulf %25, %29 : vector<4x8x8xf32>
    %31 = arith.truncf %30 : vector<4x8x8xf32> to vector<4x8x8xbf16>
    "tpu.trace_start"() <{level = 10 : i32, message = "hqk,hkd->hqd"}> : () -> ()
    %cst_16 = arith.constant dense<0.000000e+00> : vector<4x8x8xf32>
    %32 = tpu.matmul %31, %14, %cst_16 {dimension_numbers = #tpu.dot_dimension_numbers<[2], [1], [1], [2], [0, 0, 0, 1, 1, 2], [0], [0]>} : vector<4x8x8xbf16>, vector<4x8x8xbf16>, vector<4x8x8xf32> -> vector<4x8x8xf32>
    "tpu.trace_stop"() : () -> ()
    %33 = tpu.transpose %32, [1, 0, 2] : vector<4x8x8xf32> -> vector<8x4x8xf32>
    %34 = vector.shape_cast %33 : vector<8x4x8xf32> to vector<8x32xf32>
    %35 = arith.truncf %34 : vector<8x32xf32> to vector<8x32xbf16>
    %c0_17 = arith.constant 0 : index
    %c0_18 = arith.constant 0 : index
    %36 = vector.load %arg6[%c0_17, %c0_18] : memref<32x32xbf16, #tpu.memory_space<vmem>>, vector<32x32xbf16>
    %cst_19 = arith.constant dense<0.000000e+00> : vector<8x32xf32>
    %37 = tpu.matmul %35, %36, %cst_19 {dimension_numbers = #tpu.dot_dimension_numbers<[1], [0], [0], [1], [0, 0, 1, 1], [], []>} : vector<8x32xbf16>, vector<32x32xbf16>, vector<8x32xf32> -> vector<8x32xf32>
    %c0_20 = arith.constant 0 : index
    %c0_21 = arith.constant 0 : index
    %38 = vector.load %arg7[%c0_20, %c0_21] : memref<1x32xf32, #tpu.memory_space<vmem>>, vector<1x32xf32>
    %39 = vector.broadcast %38 : vector<1x32xf32> to vector<8x32xf32>
    %40 = arith.addf %37, %39 : vector<8x32xf32>
    %41 = arith.addf %7, %40 : vector<8x32xf32>
    %c0_22 = arith.constant 0 : index
    %c0_23 = arith.constant 0 : index
    %42 = vector.load %arg10[%c0_22, %c0_23] : memref<1x32xf32, #tpu.memory_space<vmem>>, vector<1x32xf32>
    %c0_24 = arith.constant 0 : index
    %c0_25 = arith.constant 0 : index
    %43 = vector.load %arg11[%c0_24, %c0_25] : memref<1x32xf32, #tpu.memory_space<vmem>>, vector<1x32xf32>
    %cst_26 = arith.constant dense<0.000000e+00> : vector<8xf32>
    %44 = vector.multi_reduction <add>, %41, %cst_26 [1] : vector<8x32xf32> to vector<8xf32>
    %45 = vector.shape_cast %44 : vector<8xf32> to vector<8x1xf32>
    %cst_27 = arith.constant 3.200000e+01 : f32
    %46 = vector.broadcast %cst_27 : f32 to vector<8x1xf32>
    %47 = arith.divf %45, %46 : vector<8x1xf32>
    %48 = vector.broadcast %47 : vector<8x1xf32> to vector<8x32xf32>
    %49 = arith.subf %41, %48 : vector<8x32xf32>
    %50 = arith.mulf %49, %49 : vector<8x32xf32>
    %cst_28 = arith.constant dense<0.000000e+00> : vector<8xf32>
    %51 = vector.multi_reduction <add>, %50, %cst_28 [1] : vector<8x32xf32> to vector<8xf32>
    %52 = vector.shape_cast %51 : vector<8xf32> to vector<8x1xf32>
    %cst_29 = arith.constant 3.100000e+01 : f32
    %53 = vector.broadcast %cst_29 : f32 to vector<8x1xf32>
    %54 = arith.divf %52, %53 : vector<8x1xf32>
    %55 = math.sqrt %54 : vector<8x1xf32>
    %56 = vector.broadcast %47 : vector<8x1xf32> to vector<8x32xf32>
    %57 = arith.subf %41, %56 : vector<8x32xf32>
    %58 = vector.broadcast %42 : vector<1x32xf32> to vector<8x32xf32>
    %59 = arith.mulf %58, %57 : vector<8x32xf32>
    %cst_30 = arith.constant 9.99999997E-7 : f32
    %60 = vector.broadcast %cst_30 : f32 to vector<8x1xf32>
    %61 = arith.addf %55, %60 : vector<8x1xf32>
    %62 = vector.broadcast %61 : vector<8x1xf32> to vector<8x32xf32>
    %63 = arith.divf %59, %62 : vector<8x32xf32>
    %64 = vector.broadcast %43 : vector<1x32xf32> to vector<8x32xf32>
    %65 = arith.addf %63, %64 : vector<8x32xf32>
    %66 = arith.truncf %65 : vector<8x32xf32> to vector<8x32xbf16>
    %c0_31 = arith.constant 0 : index
    %c0_32 = arith.constant 0 : index
    %67 = vector.load %arg12[%c0_31, %c0_32] : memref<32x128xbf16, #tpu.memory_space<vmem>>, vector<32x128xbf16>
    %cst_33 = arith.constant dense<0.000000e+00> : vector<8x128xf32>
    %68 = tpu.matmul %66, %67, %cst_33 {dimension_numbers = #tpu.dot_dimension_numbers<[1], [0], [0], [1], [0, 0, 1, 1], [], []>} : vector<8x32xbf16>, vector<32x128xbf16>, vector<8x128xf32> -> vector<8x128xf32>
    %c0_34 = arith.constant 0 : index
    %c0_35 = arith.constant 0 : index
    %69 = vector.load %arg13[%c0_34, %c0_35] : memref<1x128xf32, #tpu.memory_space<vmem>>, vector<1x128xf32>
    %70 = vector.broadcast %69 : vector<1x128xf32> to vector<8x128xf32>
    %71 = arith.addf %68, %70 : vector<8x128xf32>
    %cst_36 = arith.constant 5.000000e-01 : f32
    %72 = vector.broadcast %cst_36 : f32 to vector<8x128xf32>
    %73 = arith.mulf %72, %71 : vector<8x128xf32>
    %cst_37 = arith.constant 4.471500e-02 : f32
    %74 = vector.broadcast %cst_37 : f32 to vector<8x128xf32>
    %75 = arith.mulf %74, %71 : vector<8x128xf32>
    %76 = arith.mulf %75, %71 : vector<8x128xf32>
    %77 = arith.mulf %76, %71 : vector<8x128xf32>
    %78 = arith.addf %71, %77 : vector<8x128xf32>
    %cst_38 = arith.constant 0.797884583 : f32
    %79 = vector.broadcast %cst_38 : f32 to vector<8x128xf32>
    %80 = arith.mulf %79, %78 : vector<8x128xf32>
    %81 = math.tanh %80 : vector<8x128xf32>
    %cst_39 = arith.constant 1.000000e+00 : f32
    %82 = vector.broadcast %cst_39 : f32 to vector<8x128xf32>
    %83 = arith.addf %82, %81 : vector<8x128xf32>
    %84 = arith.mulf %73, %83 : vector<8x128xf32>
    %85 = arith.truncf %84 : vector<8x128xf32> to vector<8x128xbf16>
    %c0_40 = arith.constant 0 : index
    %c0_41 = arith.constant 0 : index
    %86 = vector.load %arg14[%c0_40, %c0_41] : memref<128x32xbf16, #tpu.memory_space<vmem>>, vector<128x32xbf16>
    %cst_42 = arith.constant dense<0.000000e+00> : vector<8x32xf32>
    %87 = tpu.matmul %85, %86, %cst_42 {dimension_numbers = #tpu.dot_dimension_numbers<[1], [0], [0], [1], [0, 0, 1, 1], [], []>} : vector<8x128xbf16>, vector<128x32xbf16>, vector<8x32xf32> -> vector<8x32xf32>
    %c0_43 = arith.constant 0 : index
    %c0_44 = arith.constant 0 : index
    %88 = vector.load %arg15[%c0_43, %c0_44] : memref<1x32xf32, #tpu.memory_space<vmem>>, vector<1x32xf32>
    %89 = vector.broadcast %88 : vector<1x32xf32> to vector<8x32xf32>
    %90 = arith.addf %87, %89 : vector<8x32xf32>
    %91 = arith.addf %41, %90 : vector<8x32xf32>
    %c0_45 = arith.constant 0 : index
    %c0_46 = arith.constant 0 : index
    %c0_47 = arith.constant 0 : index
    %92 = vector.load %arg16[%c0_45, %c0_46, %c0_47] : memref<1x8x32xf32, #tpu.memory_space<vmem>>, vector<1x8x32xf32>
    %93 = vector.shape_cast %92 : vector<1x8x32xf32> to vector<8x32xf32>
    %94 = vector.shape_cast %91 : vector<8x32xf32> to vector<1x8x32xf32>
    tpu.vector_store %arg16[%c0_45, %c0_46, %c0_47], %94 {strides = array<i32>} : memref<1x8x32xf32, #tpu.memory_space<vmem>>, vector<1x8x32xf32>,
    return
  }
  func.func @transform_0(%arg0: i32, %arg1: i32) -> (i32, i32, i32) {
    %c0_i32 = arith.constant 0 : i32
    %c0_i32_0 = arith.constant 0 : i32
    %c0_i32_1 = arith.constant 0 : i32
    return %arg0, %c0_i32, %c0_i32_0 : i32, i32, i32
  }
  func.func @transform_1(%arg0: i32, %arg1: i32) -> (i32, i32, i32) {
    %c0_i32 = arith.constant 0 : i32
    %c0_i32_0 = arith.constant 0 : i32
    return %arg0, %arg1, %c0_i32 : i32, i32, i32
  }
  func.func @transform_2(%arg0: i32, %arg1: i32) -> (i32, i32) {
    %c0_i32 = arith.constant 0 : i32
    %c0_i32_0 = arith.constant 0 : i32
    %c0_i32_1 = arith.constant 0 : i32
    return %c0_i32, %c0_i32_0 : i32, i32
  }
  func.func @transform_3(%arg0: i32, %arg1: i32) -> (i32, i32) {
    %c0_i32 = arith.constant 0 : i32
    %c0_i32_0 = arith.constant 0 : i32
    %c0_i32_1 = arith.constant 0 : i32
    return %c0_i32, %c0_i32_0 : i32, i32
  }
  func.func @transform_4(%arg0: i32, %arg1: i32) -> (i32, i32) {
    %c0_i32 = arith.constant 0 : i32
    %c0_i32_0 = arith.constant 0 : i32
    %c0_i32_1 = arith.constant 0 : i32
    return %c0_i32, %c0_i32_0 : i32, i32
  }
  func.func @transform_5(%arg0: i32, %arg1: i32) -> (i32, i32) {
    %c0_i32 = arith.constant 0 : i32
    %c0_i32_0 = arith.constant 0 : i32
    %c0_i32_1 = arith.constant 0 : i32
    return %c0_i32, %c0_i32_0 : i32, i32
  }
  func.func @transform_6(%arg0: i32, %arg1: i32) -> (i32, i32) {
    %c0_i32 = arith.constant 0 : i32
    %c0_i32_0 = arith.constant 0 : i32
    %c0_i32_1 = arith.constant 0 : i32
    return %c0_i32, %c0_i32_0 : i32, i32
  }
  func.func @transform_7(%arg0: i32, %arg1: i32) -> (i32, i32) {
    %c0_i32 = arith.constant 0 : i32
    %c0_i32_0 = arith.constant 0 : i32
    %c0_i32_1 = arith.constant 0 : i32
    return %c0_i32, %c0_i32_0 : i32, i32
  }
  func.func @transform_8(%arg0: i32, %arg1: i32) -> (i32, i32) {
    %c0_i32 = arith.constant 0 : i32
    %c0_i32_0 = arith.constant 0 : i32
    %c0_i32_1 = arith.constant 0 : i32
    return %c0_i32, %c0_i32_0 : i32, i32
  }
  func.func @transform_9(%arg0: i32, %arg1: i32) -> (i32, i32) {
    %c0_i32 = arith.constant 0 : i32
    %c0_i32_0 = arith.constant 0 : i32
    %c0_i32_1 = arith.constant 0 : i32
    return %c0_i32, %c0_i32_0 : i32, i32
  }
  func.func @transform_10(%arg0: i32, %arg1: i32) -> (i32, i32) {
    %c0_i32 = arith.constant 0 : i32
    %c0_i32_0 = arith.constant 0 : i32
    %c0_i32_1 = arith.constant 0 : i32
    return %c0_i32, %c0_i32_0 : i32, i32
  }
  func.func @transform_11(%arg0: i32, %arg1: i32) -> (i32, i32) {
    %c0_i32 = arith.constant 0 : i32
    %c0_i32_0 = arith.constant 0 : i32
    %c0_i32_1 = arith.constant 0 : i32
    return %c0_i32, %c0_i32_0 : i32, i32
  }
  func.func @transform_12(%arg0: i32, %arg1: i32) -> (i32, i32) {
    %c0_i32 = arith.constant 0 : i32
    %c0_i32_0 = arith.constant 0 : i32
    %c0_i32_1 = arith.constant 0 : i32
    return %c0_i32, %c0_i32_0 : i32, i32
  }
  func.func @transform_13(%arg0: i32, %arg1: i32) -> (i32, i32) {
    %c0_i32 = arith.constant 0 : i32
    %c0_i32_0 = arith.constant 0 : i32
    %c0_i32_1 = arith.constant 0 : i32
    return %c0_i32, %c0_i32_0 : i32, i32
  }
  func.func @transform_14(%arg0: i32, %arg1: i32) -> (i32, i32, i32) {
    %c0_i32 = arith.constant 0 : i32
    %c0_i32_0 = arith.constant 0 : i32
    return %arg0, %arg1, %c0_i32 : i32, i32, i32
  }
}

module attributes {stable_mosaic.version = 11 : i64} {
  func.func @transformer_block_kernel(%arg0: i32, %arg1: i32, %arg2: memref<1x8x32xf32, #tpu.memory_space<vmem>>, %arg3: memref<1x8x8xf32, #tpu.memory_space<vmem>>, %arg4: memref<32x96xbf16, #tpu.memory_space<vmem>>, %arg5: memref<1x96xf32, #tpu.memory_space<vmem>>, %arg6: memref<32x32xbf16, #tpu.memory_space<vmem>>, %arg7: memref<1x32xf32, #tpu.memory_space<vmem>>, %arg8: memref<1x32xf32, #tpu.memory_space<vmem>>, %arg9: memref<1x32xf32, #tpu.memory_space<vmem>>, %arg10: memref<1x32xf32, #tpu.memory_space<vmem>>, %arg11: memref<1x32xf32, #tpu.memory_space<vmem>>, %arg12: memref<32x128xbf16, #tpu.memory_space<vmem>>, %arg13: memref<1x128xf32, #tpu.memory_space<vmem>>, %arg14: memref<128x32xbf16, #tpu.memory_space<vmem>>, %arg15: memref<1x32xf32, #tpu.memory_space<vmem>>, %arg16: memref<1x8x32xf32, #tpu.memory_space<vmem>>, %arg17: memref<3x4x8x8xbf16, #tpu.memory_space<vmem>>) attributes {dimension_semantics = [#tpu.dimension_semantics<parallel>, #tpu.dimension_semantics<arbitrary>], iteration_bounds = array<i64: 2, 1>, scalar_prefetch = 0 : i64, scratch_operands = 1 : i64, tpu.core_type = #tpu.core_type<tc>, window_params = [{transform_indices = @transform_0, window_bounds = array<i64: 1, 8, 32>}, {transform_indices = @transform_1, window_bounds = array<i64: 1, 8, 8>}, {pipeline_mode = #tpu.pipeline_mode<synchronous>, transform_indices = @transform_2, window_bounds = array<i64: 32, 96>}, {pipeline_mode = #tpu.pipeline_mode<synchronous>, transform_indices = @transform_3, window_bounds = array<i64: 1, 96>}, {pipeline_mode = #tpu.pipeline_mode<synchronous>, transform_indices = @transform_4, window_bounds = array<i64: 32, 32>}, {pipeline_mode = #tpu.pipeline_mode<synchronous>, transform_indices = @transform_5, window_bounds = array<i64: 1, 32>}, {pipeline_mode = #tpu.pipeline_mode<synchronous>, transform_indices = @transform_6, window_bounds = array<i64: 1, 32>}, {pipeline_mode = #tpu.pipeline_mode<synchronous>, transform_indices = @transform_7, window_bounds = array<i64: 1, 32>}, {pipeline_mode = #tpu.pipeline_mode<synchronous>, transform_indices = @transform_8, window_bounds = array<i64: 1, 32>}, {pipeline_mode = #tpu.pipeline_mode<synchronous>, transform_indices = @transform_9, window_bounds = array<i64: 1, 32>}, {pipeline_mode = #tpu.pipeline_mode<synchronous>, transform_indices = @transform_10, window_bounds = array<i64: 32, 128>}, {pipeline_mode = #tpu.pipeline_mode<synchronous>, transform_indices = @transform_11, window_bounds = array<i64: 1, 128>}, {pipeline_mode = #tpu.pipeline_mode<synchronous>, transform_indices = @transform_12, window_bounds = array<i64: 128, 32>}, {pipeline_mode = #tpu.pipeline_mode<synchronous>, transform_indices = @transform_13, window_bounds = array<i64: 1, 32>}, {transform_indices = @transform_14, window_bounds = array<i64: 1, 8, 32>}]} {
    %c0_i32 = arith.constant 0 : i32
    %0 = arith.cmpi eq, %arg1, %c0_i32 : i32
    %1 = arith.extui %0 : i1 to i32
    %c0_i32_0 = arith.constant 0 : i32
    %2 = arith.cmpi ne, %1, %c0_i32_0 : i32
    scf.if %2 {
      %c0_48 = arith.constant 0 : index
      %c0_49 = arith.constant 0 : index
      %c0_50 = arith.constant 0 : index
      %95 = vector.load %arg2[%c0_48, %c0_49, %c0_50] : memref<1x8x32xf32, #tpu.memory_space<vmem>>, vector<1x8x32xf32>
      %96 = vector.shape_cast %95 : vector<1x8x32xf32> to vector<8x32xf32>
      %c0_51 = arith.constant 0 : index
      %c0_52 = arith.constant 0 : index
      %97 = vector.load %arg8[%c0_51, %c0_52] : memref<1x32xf32, #tpu.memory_space<vmem>>, vector<1x32xf32>
      %c0_53 = arith.constant 0 : index
      %c0_54 = arith.constant 0 : index
      %98 = vector.load %arg9[%c0_53, %c0_54] : memref<1x32xf32, #tpu.memory_space<vmem>>, vector<1x32xf32>
      %cst_55 = arith.constant dense<0.000000e+00> : vector<8xf32>
      %99 = vector.multi_reduction <add>, %96, %cst_55 [1] : vector<8x32xf32> to vector<8xf32>
      %100 = vector.shape_cast %99 : vector<8xf32> to vector<8x1xf32>
      %cst_56 = arith.constant 3.200000e+01 : f32
      %101 = vector.broadcast %cst_56 : f32 to vector<8x1xf32>
      %102 = arith.divf %100, %101 : vector<8x1xf32>
      %103 = vector.broadcast %102 : vector<8x1xf32> to vector<8x32xf32>
      %104 = arith.subf %96, %103 : vector<8x32xf32>
      %105 = arith.mulf %104, %104 : vector<8x32xf32>
      %cst_57 = arith.constant dense<0.000000e+00> : vector<8xf32>
      %106 = vector.multi_reduction <add>, %105, %cst_57 [1] : vector<8x32xf32> to vector<8xf32>
      %107 = vector.shape_cast %106 : vector<8xf32> to vector<8x1xf32>
      %cst_58 = arith.constant 3.100000e+01 : f32
      %108 = vector.broadcast %cst_58 : f32 to vector<8x1xf32>
      %109 = arith.divf %107, %108 : vector<8x1xf32>
      %110 = math.sqrt %109 : vector<8x1xf32>
      %111 = vector.broadcast %102 : vector<8x1xf32> to vector<8x32xf32>
      %112 = arith.subf %96, %111 : vector<8x32xf32>
      %113 = vector.broadcast %97 : vector<1x32xf32> to vector<8x32xf32>
      %114 = arith.mulf %113, %112 : vector<8x32xf32>
      %cst_59 = arith.constant 9.99999997E-7 : f32
      %115 = vector.broadcast %cst_59 : f32 to vector<8x1xf32>
      %116 = arith.addf %110, %115 : vector<8x1xf32>
      %117 = vector.broadcast %116 : vector<8x1xf32> to vector<8x32xf32>
      %118 = arith.divf %114, %117 : vector<8x32xf32>
      %119 = vector.broadcast %98 : vector<1x32xf32> to vector<8x32xf32>
      %120 = arith.addf %118, %119 : vector<8x32xf32>
      %121 = arith.truncf %120 : vector<8x32xf32> to vector<8x32xbf16>
      %c0_60 = arith.constant 0 : index
      %c0_61 = arith.constant 0 : index
      %122 = vector.load %arg4[%c0_60, %c0_61] : memref<32x96xbf16, #tpu.memory_space<vmem>>, vector<32x96xbf16>
      %cst_62 = arith.constant dense<0.000000e+00> : vector<8x96xf32>
      %123 = tpu.matmul %121, %122, %cst_62 {dimension_numbers = #tpu.dot_dimension_numbers<[1], [0], [0], [1], [0, 0, 1, 1], [], []>} : vector<8x32xbf16>, vector<32x96xbf16>, vector<8x96xf32> -> vector<8x96xf32>
      %c0_63 = arith.constant 0 : index
      %c0_64 = arith.constant 0 : index
      %124 = vector.load %arg5[%c0_63, %c0_64] : memref<1x96xf32, #tpu.memory_space<vmem>>, vector<1x96xf32>
      %125 = vector.broadcast %124 : vector<1x96xf32> to vector<8x96xf32>
      %126 = arith.addf %123, %125 : vector<8x96xf32>
      %127 = arith.truncf %126 : vector<8x96xf32> to vector<8x96xbf16>
      %128 = vector.extract_strided_slice %127 {offsets = [0, 0], sizes = [8, 32], strides = [1, 1]} : vector<8x96xbf16> to vector<8x32xbf16>
      %129 = vector.shape_cast %128 : vector<8x32xbf16> to vector<8x4x8xbf16>
      %130 = tpu.transpose %129, [1, 0, 2] : vector<8x4x8xbf16> -> vector<4x8x8xbf16>
      %c0_65 = arith.constant 0 : index
      %c0_66 = arith.constant 0 : index
      %c0_67 = arith.constant 0 : index
      %c0_68 = arith.constant 0 : index
      %131 = vector.load %arg17[%c0_65, %c0_66, %c0_67, %c0_68] : memref<3x4x8x8xbf16, #tpu.memory_space<vmem>>, vector<1x4x8x8xbf16>
      %132 = vector.shape_cast %131 : vector<1x4x8x8xbf16> to vector<4x8x8xbf16>
      %133 = vector.shape_cast %130 : vector<4x8x8xbf16> to vector<1x4x8x8xbf16>
      tpu.vector_store %arg17[%c0_65, %c0_66, %c0_67, %c0_68], %133 {strides = array<i32>} : memref<3x4x8x8xbf16, #tpu.memory_space<vmem>>, vector<1x4x8x8xbf16>,
      %134 = vector.extract_strided_slice %127 {offsets = [0, 32], sizes = [8, 32], strides = [1, 1]} : vector<8x96xbf16> to vector<8x32xbf16>
      %135 = vector.shape_cast %134 : vector<8x32xbf16> to vector<8x4x8xbf16>
      %136 = tpu.transpose %135, [1, 0, 2] : vector<8x4x8xbf16> -> vector<4x8x8xbf16>
      %c1_69 = arith.constant 1 : index
      %c0_70 = arith.constant 0 : index
      %c0_71 = arith.constant 0 : index
      %c0_72 = arith.constant 0 : index
      %137 = vector.load %arg17[%c1_69, %c0_70, %c0_71, %c0_72] : memref<3x4x8x8xbf16, #tpu.memory_space<vmem>>, vector<1x4x8x8xbf16>
      %138 = vector.shape_cast %137 : vector<1x4x8x8xbf16> to vector<4x8x8xbf16>
      %139 = vector.shape_cast %136 : vector<4x8x8xbf16> to vector<1x4x8x8xbf16>
      tpu.vector_store %arg17[%c1_69, %c0_70, %c0_71, %c0_72], %139 {strides = array<i32>} : memref<3x4x8x8xbf16, #tpu.memory_space<vmem>>, vector<1x4x8x8xbf16>,
      %140 = vector.extract_strided_slice %127 {offsets = [0, 64], sizes = [8, 32], strides = [1, 1]} : vector<8x96xbf16> to vector<8x32xbf16>
      %141 = vector.shape_cast %140 : vector<8x32xbf16> to vector<8x4x8xbf16>
      %142 = tpu.transpose %141, [1, 0, 2] : vector<8x4x8xbf16> -> vector<4x8x8xbf16>
      %c2_73 = arith.constant 2 : index
      %c0_74 = arith.constant 0 : index
      %c0_75 = arith.constant 0 : index
      %c0_76 = arith.constant 0 : index
      %143 = vector.load %arg17[%c2_73, %c0_74, %c0_75, %c0_76] : memref<3x4x8x8xbf16, #tpu.memory_space<vmem>>, vector<1x4x8x8xbf16>
      %144 = vector.shape_cast %143 : vector<1x4x8x8xbf16> to vector<4x8x8xbf16>
      %145 = vector.shape_cast %142 : vector<4x8x8xbf16> to vector<1x4x8x8xbf16>
      tpu.vector_store %arg17[%c2_73, %c0_74, %c0_75, %c0_76], %145 {strides = array<i32>} : memref<3x4x8x8xbf16, #tpu.memory_space<vmem>>, vector<1x4x8x8xbf16>,
    } else {
    }
    %c8_i32 = arith.constant 8 : i32
    %3 = arith.muli %arg1, %c8_i32 : i32
    %4 = tpu.assume_multiple %3, 8 : i32
    %c0 = arith.constant 0 : index
    %5 = arith.index_cast %4 : i32 to index
    %c0_1 = arith.constant 0 : index
    %6 = vector.load %arg2[%c0, %5, %c0_1] : memref<1x8x32xf32, #tpu.memory_space<vmem>>, vector<1x8x32xf32>
    %7 = vector.shape_cast %6 : vector<1x8x32xf32> to vector<8x32xf32>
    %c0_2 = arith.constant 0 : index
    %c0_3 = arith.constant 0 : index
    %8 = arith.index_cast %4 : i32 to index
    %c0_4 = arith.constant 0 : index
    %9 = vector.load %arg17[%c0_2, %c0_3, %8, %c0_4] : memref<3x4x8x8xbf16, #tpu.memory_space<vmem>>, vector<1x4x8x8xbf16>
    %10 = vector.shape_cast %9 : vector<1x4x8x8xbf16> to vector<4x8x8xbf16>
    %c1 = arith.constant 1 : index
    %c0_5 = arith.constant 0 : index
    %c0_6 = arith.constant 0 : index
    %c0_7 = arith.constant 0 : index
    %11 = vector.load %arg17[%c1, %c0_5, %c0_6, %c0_7] : memref<3x4x8x8xbf16, #tpu.memory_space<vmem>>, vector<1x4x8x8xbf16>
    %12 = vector.shape_cast %11 : vector<1x4x8x8xbf16> to vector<4x8x8xbf16>
    %c2 = arith.constant 2 : index
    %c0_8 = arith.constant 0 : index
    %c0_9 = arith.constant 0 : index
    %c0_10 = arith.constant 0 : index
    %13 = vector.load %arg17[%c2, %c0_8, %c0_9, %c0_10] : memref<3x4x8x8xbf16, #tpu.memory_space<vmem>>, vector<1x4x8x8xbf16>
    %14 = vector.shape_cast %13 : vector<1x4x8x8xbf16> to vector<4x8x8xbf16>
    "tpu.trace_start"() <{level = 10 : i32, message = "hqd,hkd->hqk"}> : () -> ()
    %cst = arith.constant dense<0.000000e+00> : vector<4x8x8xf32>
    %15 = tpu.matmul %10, %12, %cst {dimension_numbers = #tpu.dot_dimension_numbers<[2], [2], [1], [1], [0, 0, 0, 1, 1, 1], [0], [0]>} : vector<4x8x8xbf16>, vector<4x8x8xbf16>, vector<4x8x8xf32> -> vector<4x8x8xf32>
    "tpu.trace_stop"() : () -> ()
    %c0_11 = arith.constant 0 : index
    %c0_12 = arith.constant 0 : index
    %c0_13 = arith.constant 0 : index
    %16 = vector.load %arg3[%c0_11, %c0_12, %c0_13] : memref<1x8x8xf32, #tpu.memory_space<vmem>>, vector<1x8x8xf32>
    %17 = vector.shape_cast %16 : vector<1x8x8xf32> to vector<8x8xf32>
    %18 = vector.shape_cast %17 : vector<8x8xf32> to vector<1x8x8xf32>
    %19 = vector.broadcast %18 : vector<1x8x8xf32> to vector<4x8x8xf32>
    %20 = arith.addf %15, %19 : vector<4x8x8xf32>
    %cst_14 = arith.constant dense<0xFF800000> : vector<4x8xf32>
    %21 = vector.multi_reduction <maximumf>, %20, %cst_14 [2] : vector<4x8x8xf32> to vector<4x8xf32>
    %22 = vector.shape_cast %21 : vector<4x8xf32> to vector<4x8x1xf32>
    %23 = vector.broadcast %22 : vector<4x8x1xf32> to vector<4x8x8xf32>
    %24 = arith.subf %20, %23 : vector<4x8x8xf32>
    %25 = math.exp %24 : vector<4x8x8xf32>
    %cst_15 = arith.constant dense<0.000000e+00> : vector<4x8xf32>
    %26 = vector.multi_reduction <add>, %25, %cst_15 [2] : vector<4x8x8xf32> to vector<4x8xf32>
    %27 = vector.shape_cast %26 : vector<4x8xf32> to vector<4x8x1xf32>
    %28 = tpu.reciprocal %27 {approx = true} : vector<4x8x1xf32> -> vector<4x8x1xf32>
    %29 = vector.broadcast %28 : vector<4x8x1xf32> to vector<4x8x8xf32>
    %30 = arith.mulf %25, %29 : vector<4x8x8xf32>
    %31 = arith.truncf %30 : vector<4x8x8xf32> to vector<4x8x8xbf16>
    "tpu.trace_start"() <{level = 10 : i32, message = "hqk,hkd->hqd"}> : () -> ()
    %cst_16 = arith.constant dense<0.000000e+00> : vector<4x8x8xf32>
    %32 = tpu.matmul %31, %14, %cst_16 {dimension_numbers = #tpu.dot_dimension_numbers<[2], [1], [1], [2], [0, 0, 0, 1, 1, 2], [0], [0]>} : vector<4x8x8xbf16>, vector<4x8x8xbf16>, vector<4x8x8xf32> -> vector<4x8x8xf32>
    "tpu.trace_stop"() : () -> ()
    %33 = tpu.transpose %32, [1, 0, 2] : vector<4x8x8xf32> -> vector<8x4x8xf32>
    %34 = vector.shape_cast %33 : vector<8x4x8xf32> to vector<8x32xf32>
    %35 = arith.truncf %34 : vector<8x32xf32> to vector<8x32xbf16>
    %c0_17 = arith.constant 0 : index
    %c0_18 = arith.constant 0 : index
    %36 = vector.load %arg6[%c0_17, %c0_18] : memref<32x32xbf16, #tpu.memory_space<vmem>>, vector<32x32xbf16>
    %cst_19 = arith.constant dense<0.000000e+00> : vector<8x32xf32>
    %37 = tpu.matmul %35, %36, %cst_19 {dimension_numbers = #tpu.dot_dimension_numbers<[1], [0], [0], [1], [0, 0, 1, 1], [], []>} : vector<8x32xbf16>, vector<32x32xbf16>, vector<8x32xf32> -> vector<8x32xf32>
    %c0_20 = arith.constant 0 : index
    %c0_21 = arith.constant 0 : index
    %38 = vector.load %arg7[%c0_20, %c0_21] : memref<1x32xf32, #tpu.memory_space<vmem>>, vector<1x32xf32>
    %39 = vector.broadcast %38 : vector<1x32xf32> to vector<8x32xf32>
    %40 = arith.addf %37, %39 : vector<8x32xf32>
    %41 = arith.addf %7, %40 : vector<8x32xf32>
    %c0_22 = arith.constant 0 : index
    %c0_23 = arith.constant 0 : index
    %42 = vector.load %arg10[%c0_22, %c0_23] : memref<1x32xf32, #tpu.memory_space<vmem>>, vector<1x32xf32>
    %c0_24 = arith.constant 0 : index
    %c0_25 = arith.constant 0 : index
    %43 = vector.load %arg11[%c0_24, %c0_25] : memref<1x32xf32, #tpu.memory_space<vmem>>, vector<1x32xf32>
    %cst_26 = arith.constant dense<0.000000e+00> : vector<8xf32>
    %44 = vector.multi_reduction <add>, %41, %cst_26 [1] : vector<8x32xf32> to vector<8xf32>
    %45 = vector.shape_cast %44 : vector<8xf32> to vector<8x1xf32>
    %cst_27 = arith.constant 3.200000e+01 : f32
    %46 = vector.broadcast %cst_27 : f32 to vector<8x1xf32>
    %47 = arith.divf %45, %46 : vector<8x1xf32>
    %48 = vector.broadcast %47 : vector<8x1xf32> to vector<8x32xf32>
    %49 = arith.subf %41, %48 : vector<8x32xf32>
    %50 = arith.mulf %49, %49 : vector<8x32xf32>
    %cst_28 = arith.constant dense<0.000000e+00> : vector<8xf32>
    %51 = vector.multi_reduction <add>, %50, %cst_28 [1] : vector<8x32xf32> to vector<8xf32>
    %52 = vector.shape_cast %51 : vector<8xf32> to vector<8x1xf32>
    %cst_29 = arith.constant 3.100000e+01 : f32
    %53 = vector.broadcast %cst_29 : f32 to vector<8x1xf32>
    %54 = arith.divf %52, %53 : vector<8x1xf32>
    %55 = math.sqrt %54 : vector<8x1xf32>
    %56 = vector.broadcast %47 : vector<8x1xf32> to vector<8x32xf32>
    %57 = arith.subf %41, %56 : vector<8x32xf32>
    %58 = vector.broadcast %42 : vector<1x32xf32> to vector<8x32xf32>
    %59 = arith.mulf %58, %57 : vector<8x32xf32>
    %cst_30 = arith.constant 9.99999997E-7 : f32
    %60 = vector.broadcast %cst_30 : f32 to vector<8x1xf32>
    %61 = arith.addf %55, %60 : vector<8x1xf32>
    %62 = vector.broadcast %61 : vector<8x1xf32> to vector<8x32xf32>
    %63 = arith.divf %59, %62 : vector<8x32xf32>
    %64 = vector.broadcast %43 : vector<1x32xf32> to vector<8x32xf32>
    %65 = arith.addf %63, %64 : vector<8x32xf32>
    %66 = arith.truncf %65 : vector<8x32xf32> to vector<8x32xbf16>
    %c0_31 = arith.constant 0 : index
    %c0_32 = arith.constant 0 : index
    %67 = vector.load %arg12[%c0_31, %c0_32] : memref<32x128xbf16, #tpu.memory_space<vmem>>, vector<32x128xbf16>
    %cst_33 = arith.constant dense<0.000000e+00> : vector<8x128xf32>
    %68 = tpu.matmul %66, %67, %cst_33 {dimension_numbers = #tpu.dot_dimension_numbers<[1], [0], [0], [1], [0, 0, 1, 1], [], []>} : vector<8x32xbf16>, vector<32x128xbf16>, vector<8x128xf32> -> vector<8x128xf32>
    %c0_34 = arith.constant 0 : index
    %c0_35 = arith.constant 0 : index
    %69 = vector.load %arg13[%c0_34, %c0_35] : memref<1x128xf32, #tpu.memory_space<vmem>>, vector<1x128xf32>
    %70 = vector.broadcast %69 : vector<1x128xf32> to vector<8x128xf32>
    %71 = arith.addf %68, %70 : vector<8x128xf32>
    %cst_36 = arith.constant 5.000000e-01 : f32
    %72 = vector.broadcast %cst_36 : f32 to vector<8x128xf32>
    %73 = arith.mulf %72, %71 : vector<8x128xf32>
    %cst_37 = arith.constant 4.471500e-02 : f32
    %74 = vector.broadcast %cst_37 : f32 to vector<8x128xf32>
    %75 = arith.mulf %74, %71 : vector<8x128xf32>
    %76 = arith.mulf %75, %71 : vector<8x128xf32>
    %77 = arith.mulf %76, %71 : vector<8x128xf32>
    %78 = arith.addf %71, %77 : vector<8x128xf32>
    %cst_38 = arith.constant 0.797884583 : f32
    %79 = vector.broadcast %cst_38 : f32 to vector<8x128xf32>
    %80 = arith.mulf %79, %78 : vector<8x128xf32>
    %81 = math.tanh %80 : vector<8x128xf32>
    %cst_39 = arith.constant 1.000000e+00 : f32
    %82 = vector.broadcast %cst_39 : f32 to vector<8x128xf32>
    %83 = arith.addf %82, %81 : vector<8x128xf32>
    %84 = arith.mulf %73, %83 : vector<8x128xf32>
    %85 = arith.truncf %84 : vector<8x128xf32> to vector<8x128xbf16>
    %c0_40 = arith.constant 0 : index
    %c0_41 = arith.constant 0 : index
    %86 = vector.load %arg14[%c0_40, %c0_41] : memref<128x32xbf16, #tpu.memory_space<vmem>>, vector<128x32xbf16>
    %cst_42 = arith.constant dense<0.000000e+00> : vector<8x32xf32>
    %87 = tpu.matmul %85, %86, %cst_42 {dimension_numbers = #tpu.dot_dimension_numbers<[1], [0], [0], [1], [0, 0, 1, 1], [], []>} : vector<8x128xbf16>, vector<128x32xbf16>, vector<8x32xf32> -> vector<8x32xf32>
    %c0_43 = arith.constant 0 : index
    %c0_44 = arith.constant 0 : index
    %88 = vector.load %arg15[%c0_43, %c0_44] : memref<1x32xf32, #tpu.memory_space<vmem>>, vector<1x32xf32>
    %89 = vector.broadcast %88 : vector<1x32xf32> to vector<8x32xf32>
    %90 = arith.addf %87, %89 : vector<8x32xf32>
    %91 = arith.addf %41, %90 : vector<8x32xf32>
    %c0_45 = arith.constant 0 : index
    %c0_46 = arith.constant 0 : index
    %c0_47 = arith.constant 0 : index
    %92 = vector.load %arg16[%c0_45, %c0_46, %c0_47] : memref<1x8x32xf32, #tpu.memory_space<vmem>>, vector<1x8x32xf32>
    %93 = vector.shape_cast %92 : vector<1x8x32xf32> to vector<8x32xf32>
    %94 = vector.shape_cast %91 : vector<8x32xf32> to vector<1x8x32xf32>
    tpu.vector_store %arg16[%c0_45, %c0_46, %c0_47], %94 {strides = array<i32>} : memref<1x8x32xf32, #tpu.memory_space<vmem>>, vector<1x8x32xf32>,
    return
  }
  func.func @transform_0(%arg0: i32, %arg1: i32) -> (i32, i32, i32) {
    %c0_i32 = arith.constant 0 : i32
    %c0_i32_0 = arith.constant 0 : i32
    %c0_i32_1 = arith.constant 0 : i32
    return %arg0, %c0_i32, %c0_i32_0 : i32, i32, i32
  }
  func.func @transform_1(%arg0: i32, %arg1: i32) -> (i32, i32, i32) {
    %c0_i32 = arith.constant 0 : i32
    %c0_i32_0 = arith.constant 0 : i32
    return %arg0, %arg1, %c0_i32 : i32, i32, i32
  }
  func.func @transform_2(%arg0: i32, %arg1: i32) -> (i32, i32) {
    %c0_i32 = arith.constant 0 : i32
    %c0_i32_0 = arith.constant 0 : i32
    %c0_i32_1 = arith.constant 0 : i32
    return %c0_i32, %c0_i32_0 : i32, i32
  }
  func.func @transform_3(%arg0: i32, %arg1: i32) -> (i32, i32) {
    %c0_i32 = arith.constant 0 : i32
    %c0_i32_0 = arith.constant 0 : i32
    %c0_i32_1 = arith.constant 0 : i32
    return %c0_i32, %c0_i32_0 : i32, i32
  }
  func.func @transform_4(%arg0: i32, %arg1: i32) -> (i32, i32) {
    %c0_i32 = arith.constant 0 : i32
    %c0_i32_0 = arith.constant 0 : i32
    %c0_i32_1 = arith.constant 0 : i32
    return %c0_i32, %c0_i32_0 : i32, i32
  }
  func.func @transform_5(%arg0: i32, %arg1: i32) -> (i32, i32) {
    %c0_i32 = arith.constant 0 : i32
    %c0_i32_0 = arith.constant 0 : i32
    %c0_i32_1 = arith.constant 0 : i32
    return %c0_i32, %c0_i32_0 : i32, i32
  }
  func.func @transform_6(%arg0: i32, %arg1: i32) -> (i32, i32) {
    %c0_i32 = arith.constant 0 : i32
    %c0_i32_0 = arith.constant 0 : i32
    %c0_i32_1 = arith.constant 0 : i32
    return %c0_i32, %c0_i32_0 : i32, i32
  }
  func.func @transform_7(%arg0: i32, %arg1: i32) -> (i32, i32) {
    %c0_i32 = arith.constant 0 : i32
    %c0_i32_0 = arith.constant 0 : i32
    %c0_i32_1 = arith.constant 0 : i32
    return %c0_i32, %c0_i32_0 : i32, i32
  }
  func.func @transform_8(%arg0: i32, %arg1: i32) -> (i32, i32) {
    %c0_i32 = arith.constant 0 : i32
    %c0_i32_0 = arith.constant 0 : i32
    %c0_i32_1 = arith.constant 0 : i32
    return %c0_i32, %c0_i32_0 : i32, i32
  }
  func.func @transform_9(%arg0: i32, %arg1: i32) -> (i32, i32) {
    %c0_i32 = arith.constant 0 : i32
    %c0_i32_0 = arith.constant 0 : i32
    %c0_i32_1 = arith.constant 0 : i32
    return %c0_i32, %c0_i32_0 : i32, i32
  }
  func.func @transform_10(%arg0: i32, %arg1: i32) -> (i32, i32) {
    %c0_i32 = arith.constant 0 : i32
    %c0_i32_0 = arith.constant 0 : i32
    %c0_i32_1 = arith.constant 0 : i32
    return %c0_i32, %c0_i32_0 : i32, i32
  }
  func.func @transform_11(%arg0: i32, %arg1: i32) -> (i32, i32) {
    %c0_i32 = arith.constant 0 : i32
    %c0_i32_0 = arith.constant 0 : i32
    %c0_i32_1 = arith.constant 0 : i32
    return %c0_i32, %c0_i32_0 : i32, i32
  }
  func.func @transform_12(%arg0: i32, %arg1: i32) -> (i32, i32) {
    %c0_i32 = arith.constant 0 : i32
    %c0_i32_0 = arith.constant 0 : i32
    %c0_i32_1 = arith.constant 0 : i32
    return %c0_i32, %c0_i32_0 : i32, i32
  }
  func.func @transform_13(%arg0: i32, %arg1: i32) -> (i32, i32) {
    %c0_i32 = arith.constant 0 : i32
    %c0_i32_0 = arith.constant 0 : i32
    %c0_i32_1 = arith.constant 0 : i32
    return %c0_i32, %c0_i32_0 : i32, i32
  }
  func.func @transform_14(%arg0: i32, %arg1: i32) -> (i32, i32, i32) {
    %c0_i32 = arith.constant 0 : i32
    %c0_i32_0 = arith.constant 0 : i32
    return %arg0, %arg1, %c0_i32 : i32, i32, i32
  }
}

</mosaic_0001>

<llo_original>
// kernel: bert_forward.3
$region0: #{bert_forward.3}
  #allocation0 [shape = 'u32[]', space=smem, size = 0x4, offset = 0x4, fixed_abs, tag = 'smem constant byte address 0x4 - core index']
  #allocation1 [shape = 'u32[144,128]{1,0:T(1,128)}', space=vmem, size = 0x12000, scoped, tag = 'internal scratch']
  #allocation2 [shape = 'bf16[3,4,8,8]{3,2,1,0:T(8,128)(2,1)}', space=vmem, size = 0x6000, scoped, tag = 'scratch operand']
  %s0 = inlined_call_operand.vmem [shape: f32[2,8,32], index: 0, kind: input, shape index: {}]
  %s1 = inlined_call_operand.vmem [shape: f32[2,8,8], index: 1, kind: input, shape index: {}]
  %s2 = inlined_call_operand.vmem [shape: bf16[32,96], index: 2, kind: input, shape index: {}]
  %s3 = inlined_call_operand.vmem [shape: f32[1,96], index: 3, kind: input, shape index: {}]
  %s4 = inlined_call_operand.vmem [shape: bf16[32,32], index: 4, kind: input, shape index: {}]
  %s5 = inlined_call_operand.vmem [shape: f32[1,32], index: 5, kind: input, shape index: {}]
  %s6 = inlined_call_operand.vmem [shape: f32[1,32], index: 6, kind: input, shape index: {}]
  %s7 = inlined_call_operand.vmem [shape: f32[1,32], index: 7, kind: input, shape index: {}]
  %s8 = inlined_call_operand.vmem [shape: f32[1,32], index: 8, kind: input, shape index: {}]
  %s9 = inlined_call_operand.vmem [shape: f32[1,32], index: 9, kind: input, shape index: {}]
  %s10 = inlined_call_operand.vmem [shape: bf16[32,128], index: 10, kind: input, shape index: {}]
  %s11 = inlined_call_operand.vmem [shape: f32[1,128], index: 11, kind: input, shape index: {}]
  %s12 = inlined_call_operand.vmem [shape: bf16[128,32], index: 12, kind: input, shape index: {}]
  %s13 = inlined_call_operand.vmem [shape: f32[1,32], index: 13, kind: input, shape index: {}]
  %s14 = inlined_call_operand.hbm [shape: f32[2,8,32], index: 14, kind: output, shape index: {}]
  %s15 = sld [smem:[#allocation0]]
  $region93: #{bert_forward.3} parent=0
    _
  %s17 = ssub.s32 1, %s15
  %s18 = scalar_select 0, %s17, %s15
  $region1: #{bert_forward.3} parent=0
    #allocation3 [shape = 'u8[8192]{0}', space=vmem, size = 0x2000, scoped, tag = 'output window, operand 0']
    #allocation4 [shape = 's32[2]{0}', space=sflag, size = 0x8, scoped, tag = 'scoped memory for bert_forward.3']
    %19 = vsyncpa [#allocation4], 0
    %s20 = scalar_lea.sflag [#allocation4], 1
    %21 = vsyncpa %s20, 0
    loop: start=0, step=1, limit=4
    $region2: #{bert_forward.3} parent=1 // loop_pre_header
      _
    $region3: #{bert_forward.3} parent=1 // loop_header
      %s23 = sphi 0, %s27
      %p24 = scmp.ge.s32.totalorder %s23, 4
      %s30 = sphi 0, %s42
      %s31 = sphi 0, %s38
      %s32 = sphi 0, %s30
      %s33 = sphi 0, %s31
      %s34 = sphi 0, %s32
      %s35 = sphi 0, %s33
      %s45 = sphi 0, %s47
      %s48 = sphi 0, %s45
      %s49 = sphi 0, %s48
      %s65 = sphi 0, %s49
      %s73 = sphi 0, %s75
      %s76 = sphi 0, %s73
      %s77 = sphi 0, %s76
      %s93 = sphi 0, %s77
      %s97 = sphi 0, %s97
      %s99 = sphi 0, %s97
      %s100 = sphi 0, %s99
      %s114 = sphi 0, %s100
      %s118 = sphi 0, %s118
      %s120 = sphi 0, %s118
      %s121 = sphi 0, %s120
      %s135 = sphi 0, %s121
      %s139 = sphi 0, %s139
      %s141 = sphi 0, %s139
      %s142 = sphi 0, %s141
      %s156 = sphi 0, %s142
      %s160 = sphi 0, %s160
      %s162 = sphi 0, %s160
      %s163 = sphi 0, %s162
      %s177 = sphi 0, %s163
      %s181 = sphi 0, %s181
      %s183 = sphi 0, %s181
      %s184 = sphi 0, %s183
      %s198 = sphi 0, %s184
      %s202 = sphi 0, %s202
      %s204 = sphi 0, %s202
      %s205 = sphi 0, %s204
      %s219 = sphi 0, %s205
      %s223 = sphi 0, %s223
      %s225 = sphi 0, %s223
      %s226 = sphi 0, %s225
      %s240 = sphi 0, %s226
      %s244 = sphi 0, %s244
      %s246 = sphi 0, %s244
      %s247 = sphi 0, %s246
      %s261 = sphi 0, %s247
      %s265 = sphi 0, %s265
      %s267 = sphi 0, %s265
      %s268 = sphi 0, %s267
      %s282 = sphi 0, %s268
      %s286 = sphi 0, %s286
      %s288 = sphi 0, %s286
      %s289 = sphi 0, %s288
      %s303 = sphi 0, %s289
      %s307 = sphi 0, %s307
      %s309 = sphi 0, %s307
      %s310 = sphi 0, %s309
      %s324 = sphi 0, %s310
      %s328 = sphi 0, %s328
      %s330 = sphi 0, %s328
      %s331 = sphi 0, %s330
      %s345 = sphi 0, %s331
      %s353 = sphi 0, %s355
      %s356 = sphi 0, %s353
      %s357 = sphi 0, %s356
      %s373 = sphi 0, %s357
    $region4: #{bert_forward.3} parent=1 // loop_header_branch
      %26 = sbr.rel (%p24) target = $region8
    $region5: #{bert_forward.3} parent=1 // loop_body
      %s28 = ssub.s32 %s23, 1
      %s29 = ssub.s32 %s23, 2
      %s36 = sadd.s32 1, %s31
      %p37 = scmp.ge.s32.totalorder %s36, 1
      %s38 = scalar_select %p37, 0, %s36
      %s39 = sadd.s32 1, %s30
      %s40 = scalar_select %p37, %s39, %s30
      %p41 = scmp.ge.s32.totalorder %s40, 2
      %s42 = scalar_select %p41, 0, %s40
      %s43 = ssub.s32 %s30, %s42
      %p44 = scmp.eq.s32.totalorder %s43, 0
      %s46 = sadd.s32 %s45, 1
      %s47 = scalar_select %p44, %s45, %s46
      %p50 = pneg %p44
      %p51 = scmp.eq.s32.totalorder %s23, 1
      %p52 = por %p50, %p51
      %p53 = scmp.ne.s32.totalorder %s45, %s48
      %p54 = scmp.eq.s32.totalorder %s23, 0
      %p55 = por %p53, %p54
      %p56 = scmp.ne.s32.totalorder %s45, %s48
      %p57 = scmp.eq.s32.totalorder %s28, 1
      %p58 = por %p56, %p57
      %p59 = scmp.ne.s32.totalorder %s48, %s49
      %p60 = scmp.eq.s32.totalorder %s28, 0
      %p61 = por %p59, %p60
      %p62 = scmp.ne.s32.totalorder %s48, %s49
      %p63 = scmp.eq.s32.totalorder %s29, 1
      %p64 = por %p62, %p63
      %p66 = scmp.ne.s32.totalorder %s49, %s65
      %p67 = scmp.eq.s32.totalorder %s29, 0
      %p68 = por %p66, %p67
      %s69 = ssub.s32 %s30, %s42
      %s70 = ssub.s32 %s31, %s38
      %s71 = sor.u32 %s69, %s70
      %p72 = scmp.eq.s32.totalorder %s71, 0
      %s74 = sadd.s32 %s73, 1
      %s75 = scalar_select %p72, %s73, %s74
      %p78 = pneg %p72
      %p79 = scmp.eq.s32.totalorder %s23, 1
      %p80 = por %p78, %p79
      %p81 = scmp.ne.s32.totalorder %s73, %s76
      %p82 = scmp.eq.s32.totalorder %s23, 0
      %p83 = por %p81, %p82
      %p84 = scmp.ne.s32.totalorder %s73, %s76
      %p85 = scmp.eq.s32.totalorder %s28, 1
      %p86 = por %p84, %p85
      %p87 = scmp.ne.s32.totalorder %s76, %s77
      %p88 = scmp.eq.s32.totalorder %s28, 0
      %p89 = por %p87, %p88
      %p90 = scmp.ne.s32.totalorder %s76, %s77
      %p91 = scmp.eq.s32.totalorder %s29, 1
      %p92 = por %p90, %p91
      %p94 = scmp.ne.s32.totalorder %s77, %s93
      %p95 = scmp.eq.s32.totalorder %s29, 0
      %p96 = por %p94, %p95
      %s98 = sadd.s32 %s97, 1
      %p101 = scmp.eq.s32.totalorder %s23, 1
      %p102 = scmp.ne.s32.totalorder %s97, %s99
      %p103 = scmp.eq.s32.totalorder %s23, 0
      %p104 = por %p102, %p103
      %p105 = scmp.ne.s32.totalorder %s97, %s99
      %p106 = scmp.eq.s32.totalorder %s28, 1
      %p107 = por %p105, %p106
      %p108 = scmp.ne.s32.totalorder %s99, %s100
      %p109 = scmp.eq.s32.totalorder %s28, 0
      %p110 = por %p108, %p109
      %p111 = scmp.ne.s32.totalorder %s99, %s100
      %p112 = scmp.eq.s32.totalorder %s29, 1
      %p113 = por %p111, %p112
      %p115 = scmp.ne.s32.totalorder %s100, %s114
      %p116 = scmp.eq.s32.totalorder %s29, 0
      %p117 = por %p115, %p116
      %s119 = sadd.s32 %s118, 1
      %p122 = scmp.eq.s32.totalorder %s23, 1
      %p123 = scmp.ne.s32.totalorder %s118, %s120
      %p124 = scmp.eq.s32.totalorder %s23, 0
      %p125 = por %p123, %p124
      %p126 = scmp.ne.s32.totalorder %s118, %s120
      %p127 = scmp.eq.s32.totalorder %s28, 1
      %p128 = por %p126, %p127
      %p129 = scmp.ne.s32.totalorder %s120, %s121
      %p130 = scmp.eq.s32.totalorder %s28, 0
      %p131 = por %p129, %p130
      %p132 = scmp.ne.s32.totalorder %s120, %s121
      %p133 = scmp.eq.s32.totalorder %s29, 1
      %p134 = por %p132, %p133
      %p136 = scmp.ne.s32.totalorder %s121, %s135
      %p137 = scmp.eq.s32.totalorder %s29, 0
      %p138 = por %p136, %p137
      %s140 = sadd.s32 %s139, 1
      %p143 = scmp.eq.s32.totalorder %s23, 1
      %p144 = scmp.ne.s32.totalorder %s139, %s141
      %p145 = scmp.eq.s32.totalorder %s23, 0
      %p146 = por %p144, %p145
      %p147 = scmp.ne.s32.totalorder %s139, %s141
      %p148 = scmp.eq.s32.totalorder %s28, 1
      %p149 = por %p147, %p148
      %p150 = scmp.ne.s32.totalorder %s141, %s142
      %p151 = scmp.eq.s32.totalorder %s28, 0
      %p152 = por %p150, %p151
      %p153 = scmp.ne.s32.totalorder %s141, %s142
      %p154 = scmp.eq.s32.totalorder %s29, 1
      %p155 = por %p153, %p154
      %p157 = scmp.ne.s32.totalorder %s142, %s156
      %p158 = scmp.eq.s32.totalorder %s29, 0
      %p159 = por %p157, %p158
      %s161 = sadd.s32 %s160, 1
      %p164 = scmp.eq.s32.totalorder %s23, 1
      %p165 = scmp.ne.s32.totalorder %s160, %s162
      %p166 = scmp.eq.s32.totalorder %s23, 0
      %p167 = por %p165, %p166
      %p168 = scmp.ne.s32.totalorder %s160, %s162
      %p169 = scmp.eq.s32.totalorder %s28, 1
      %p170 = por %p168, %p169
      %p171 = scmp.ne.s32.totalorder %s162, %s163
      %p172 = scmp.eq.s32.totalorder %s28, 0
      %p173 = por %p171, %p172
      %p174 = scmp.ne.s32.totalorder %s162, %s163
      %p175 = scmp.eq.s32.totalorder %s29, 1
      %p176 = por %p174, %p175
      %p178 = scmp.ne.s32.totalorder %s163, %s177
      %p179 = scmp.eq.s32.totalorder %s29, 0
      %p180 = por %p178, %p179
      %s182 = sadd.s32 %s181, 1
      %p185 = scmp.eq.s32.totalorder %s23, 1
      %p186 = scmp.ne.s32.totalorder %s181, %s183
      %p187 = scmp.eq.s32.totalorder %s23, 0
      %p188 = por %p186, %p187
      %p189 = scmp.ne.s32.totalorder %s181, %s183
      %p190 = scmp.eq.s32.totalorder %s28, 1
      %p191 = por %p189, %p190
      %p192 = scmp.ne.s32.totalorder %s183, %s184
      %p193 = scmp.eq.s32.totalorder %s28, 0
      %p194 = por %p192, %p193
      %p195 = scmp.ne.s32.totalorder %s183, %s184
      %p196 = scmp.eq.s32.totalorder %s29, 1
      %p197 = por %p195, %p196
      %p199 = scmp.ne.s32.totalorder %s184, %s198
      %p200 = scmp.eq.s32.totalorder %s29, 0
      %p201 = por %p199, %p200
      %s203 = sadd.s32 %s202, 1
      %p206 = scmp.eq.s32.totalorder %s23, 1
      %p207 = scmp.ne.s32.totalorder %s202, %s204
      %p208 = scmp.eq.s32.totalorder %s23, 0
      %p209 = por %p207, %p208
      %p210 = scmp.ne.s32.totalorder %s202, %s204
      %p211 = scmp.eq.s32.totalorder %s28, 1
      %p212 = por %p210, %p211
      %p213 = scmp.ne.s32.totalorder %s204, %s205
      %p214 = scmp.eq.s32.totalorder %s28, 0
      %p215 = por %p213, %p214
      %p216 = scmp.ne.s32.totalorder %s204, %s205
      %p217 = scmp.eq.s32.totalorder %s29, 1
      %p218 = por %p216, %p217
      %p220 = scmp.ne.s32.totalorder %s205, %s219
      %p221 = scmp.eq.s32.totalorder %s29, 0
      %p222 = por %p220, %p221
      %s224 = sadd.s32 %s223, 1
      %p227 = scmp.eq.s32.totalorder %s23, 1
      %p228 = scmp.ne.s32.totalorder %s223, %s225
      %p229 = scmp.eq.s32.totalorder %s23, 0
      %p230 = por %p228, %p229
      %p231 = scmp.ne.s32.totalorder %s223, %s225
      %p232 = scmp.eq.s32.totalorder %s28, 1
      %p233 = por %p231, %p232
      %p234 = scmp.ne.s32.totalorder %s225, %s226
      %p235 = scmp.eq.s32.totalorder %s28, 0
      %p236 = por %p234, %p235
      %p237 = scmp.ne.s32.totalorder %s225, %s226
      %p238 = scmp.eq.s32.totalorder %s29, 1
      %p239 = por %p237, %p238
      %p241 = scmp.ne.s32.totalorder %s226, %s240
      %p242 = scmp.eq.s32.totalorder %s29, 0
      %p243 = por %p241, %p242
      %s245 = sadd.s32 %s244, 1
      %p248 = scmp.eq.s32.totalorder %s23, 1
      %p249 = scmp.ne.s32.totalorder %s244, %s246
      %p250 = scmp.eq.s32.totalorder %s23, 0
      %p251 = por %p249, %p250
      %p252 = scmp.ne.s32.totalorder %s244, %s246
      %p253 = scmp.eq.s32.totalorder %s28, 1
      %p254 = por %p252, %p253
      %p255 = scmp.ne.s32.totalorder %s246, %s247
      %p256 = scmp.eq.s32.totalorder %s28, 0
      %p257 = por %p255, %p256
      %p258 = scmp.ne.s32.totalorder %s246, %s247
      %p259 = scmp.eq.s32.totalorder %s29, 1
      %p260 = por %p258, %p259
      %p262 = scmp.ne.s32.totalorder %s247, %s261
      %p263 = scmp.eq.s32.totalorder %s29, 0
      %p264 = por %p262, %p263
      %s266 = sadd.s32 %s265, 1
      %p269 = scmp.eq.s32.totalorder %s23, 1
      %p270 = scmp.ne.s32.totalorder %s265, %s267
      %p271 = scmp.eq.s32.totalorder %s23, 0
      %p272 = por %p270, %p271
      %p273 = scmp.ne.s32.totalorder %s265, %s267
      %p274 = scmp.eq.s32.totalorder %s28, 1
      %p275 = por %p273, %p274
      %p276 = scmp.ne.s32.totalorder %s267, %s268
      %p277 = scmp.eq.s32.totalorder %s28, 0
      %p278 = por %p276, %p277
      %p279 = scmp.ne.s32.totalorder %s267, %s268
      %p280 = scmp.eq.s32.totalorder %s29, 1
      %p281 = por %p279, %p280
      %p283 = scmp.ne.s32.totalorder %s268, %s282
      %p284 = scmp.eq.s32.totalorder %s29, 0
      %p285 = por %p283, %p284
      %s287 = sadd.s32 %s286, 1
      %p290 = scmp.eq.s32.totalorder %s23, 1
      %p291 = scmp.ne.s32.totalorder %s286, %s288
      %p292 = scmp.eq.s32.totalorder %s23, 0
      %p293 = por %p291, %p292
      %p294 = scmp.ne.s32.totalorder %s286, %s288
      %p295 = scmp.eq.s32.totalorder %s28, 1
      %p296 = por %p294, %p295
      %p297 = scmp.ne.s32.totalorder %s288, %s289
      %p298 = scmp.eq.s32.totalorder %s28, 0
      %p299 = por %p297, %p298
      %p300 = scmp.ne.s32.totalorder %s288, %s289
      %p301 = scmp.eq.s32.totalorder %s29, 1
      %p302 = por %p300, %p301
      %p304 = scmp.ne.s32.totalorder %s289, %s303
      %p305 = scmp.eq.s32.totalorder %s29, 0
      %p306 = por %p304, %p305
      %s308 = sadd.s32 %s307, 1
      %p311 = scmp.eq.s32.totalorder %s23, 1
      %p312 = scmp.ne.s32.totalorder %s307, %s309
      %p313 = scmp.eq.s32.totalorder %s23, 0
      %p314 = por %p312, %p313
      %p315 = scmp.ne.s32.totalorder %s307, %s309
      %p316 = scmp.eq.s32.totalorder %s28, 1
      %p317 = por %p315, %p316
      %p318 = scmp.ne.s32.totalorder %s309, %s310
      %p319 = scmp.eq.s32.totalorder %s28, 0
      %p320 = por %p318, %p319
      %p321 = scmp.ne.s32.totalorder %s309, %s310
      %p322 = scmp.eq.s32.totalorder %s29, 1
      %p323 = por %p321, %p322
      %p325 = scmp.ne.s32.totalorder %s310, %s324
      %p326 = scmp.eq.s32.totalorder %s29, 0
      %p327 = por %p325, %p326
      %s329 = sadd.s32 %s328, 1
      %p332 = scmp.eq.s32.totalorder %s23, 1
      %p333 = scmp.ne.s32.totalorder %s328, %s330
      %p334 = scmp.eq.s32.totalorder %s23, 0
      %p335 = por %p333, %p334
      %p336 = scmp.ne.s32.totalorder %s328, %s330
      %p337 = scmp.eq.s32.totalorder %s28, 1
      %p338 = por %p336, %p337
      %p339 = scmp.ne.s32.totalorder %s330, %s331
      %p340 = scmp.eq.s32.totalorder %s28, 0
      %p341 = por %p339, %p340
      %p342 = scmp.ne.s32.totalorder %s330, %s331
      %p343 = scmp.eq.s32.totalorder %s29, 1
      %p344 = por %p342, %p343
      %p346 = scmp.ne.s32.totalorder %s331, %s345
      %p347 = scmp.eq.s32.totalorder %s29, 0
      %p348 = por %p346, %p347
      %s349 = ssub.s32 %s30, %s42
      %s350 = ssub.s32 %s31, %s38
      %s351 = sor.u32 %s349, %s350
      %p352 = scmp.eq.s32.totalorder %s351, 0
      %s354 = sadd.s32 %s353, 1
      %s355 = scalar_select %p352, %s353, %s354
      %p358 = pneg %p352
      %p359 = scmp.eq.s32.totalorder %s23, 1
      %p360 = por %p358, %p359
      %p361 = scmp.ne.s32.totalorder %s353, %s356
      %p362 = scmp.eq.s32.totalorder %s23, 0
      %p363 = por %p361, %p362
      %p364 = scmp.ne.s32.totalorder %s353, %s356
      %p365 = scmp.eq.s32.totalorder %s28, 1
      %p366 = por %p364, %p365
      %p367 = scmp.ne.s32.totalorder %s356, %s357
      %p368 = scmp.eq.s32.totalorder %s28, 0
      %p369 = por %p367, %p368
      %p370 = scmp.ne.s32.totalorder %s356, %s357
      %p371 = scmp.eq.s32.totalorder %s29, 1
      %p372 = por %p370, %p371
      %p374 = scmp.ne.s32.totalorder %s357, %s373
      %p375 = scmp.eq.s32.totalorder %s29, 0
      %p376 = por %p374, %p375
      %p377 = scmp.le.s32.totalorder 1, %s23
      %p378 = scmp.lt.s32.totalorder %s23, 3
      %p379 = pnand %p377, %p378
      %p380 = pneg %p379
      // Predicated region
      $region9: #{bert_forward.3} parent=5 // pred_check
        _
      $region10: #{bert_forward.3} parent=5 // pred_check_branch
        %382 = sbr.rel (%p379) target = $region12
      $region11: #{bert_forward.3} parent=5 // pred_region
        %s383 = ssub.s32 %s23, 1
        // Predicated region
        $region13: #{bert_forward.3} parent=11 // pred_check
          %p384 = pneg %p110
        $region14: #{bert_forward.3} parent=11 // pred_check_branch
          %386 = sbr.rel (%p384) target = $region16
        $region15: #{bert_forward.3} parent=11 // pred_region
          _
        $region16: #{bert_forward.3} parent=11 // pred_fallthru
          _
        // Predicated region
        $region17: #{bert_forward.3} parent=11 // pred_check
          %p387 = pneg %p131
        $region18: #{bert_forward.3} parent=11 // pred_check_branch
          %389 = sbr.rel (%p387) target = $region20
        $region19: #{bert_forward.3} parent=11 // pred_region
          _
        $region20: #{bert_forward.3} parent=11 // pred_fallthru
          _
        // Predicated region
        $region21: #{bert_forward.3} parent=11 // pred_check
          %p390 = pneg %p152
        $region22: #{bert_forward.3} parent=11 // pred_check_branch
          %392 = sbr.rel (%p390) target = $region24
        $region23: #{bert_forward.3} parent=11 // pred_region
          _
        $region24: #{bert_forward.3} parent=11 // pred_fallthru
          _
        // Predicated region
        $region25: #{bert_forward.3} parent=11 // pred_check
          %p393 = pneg %p173
        $region26: #{bert_forward.3} parent=11 // pred_check_branch
          %395 = sbr.rel (%p393) target = $region28
        $region27: #{bert_forward.3} parent=11 // pred_region
          _
        $region28: #{bert_forward.3} parent=11 // pred_fallthru
          _
        // Predicated region
        $region29: #{bert_forward.3} parent=11 // pred_check
          %p396 = pneg %p194
        $region30: #{bert_forward.3} parent=11 // pred_check_branch
          %398 = sbr.rel (%p396) target = $region32
        $region31: #{bert_forward.3} parent=11 // pred_region
          _
        $region32: #{bert_forward.3} parent=11 // pred_fallthru
          _
        // Predicated region
        $region33: #{bert_forward.3} parent=11 // pred_check
          %p399 = pneg %p215
        $region34: #{bert_forward.3} parent=11 // pred_check_branch
          %401 = sbr.rel (%p399) target = $region36
        $region35: #{bert_forward.3} parent=11 // pred_region
          _
        $region36: #{bert_forward.3} parent=11 // pred_fallthru
          _
        // Predicated region
        $region37: #{bert_forward.3} parent=11 // pred_check
          %p402 = pneg %p236
        $region38: #{bert_forward.3} parent=11 // pred_check_branch
          %404 = sbr.rel (%p402) target = $region40
        $region39: #{bert_forward.3} parent=11 // pred_region
          _
        $region40: #{bert_forward.3} parent=11 // pred_fallthru
          _
        // Predicated region
        $region41: #{bert_forward.3} parent=11 // pred_check
          %p405 = pneg %p257
        $region42: #{bert_forward.3} parent=11 // pred_check_branch
          %407 = sbr.rel (%p405) target = $region44
        $region43: #{bert_forward.3} parent=11 // pred_region
          _
        $region44: #{bert_forward.3} parent=11 // pred_fallthru
          _
        // Predicated region
        $region45: #{bert_forward.3} parent=11 // pred_check
          %p408 = pneg %p278
        $region46: #{bert_forward.3} parent=11 // pred_check_branch
          %410 = sbr.rel (%p408) target = $region48
        $region47: #{bert_forward.3} parent=11 // pred_region
          _
        $region48: #{bert_forward.3} parent=11 // pred_fallthru
          _
        // Predicated region
        $region49: #{bert_forward.3} parent=11 // pred_check
          %p411 = pneg %p299
        $region50: #{bert_forward.3} parent=11 // pred_check_branch
          %413 = sbr.rel (%p411) target = $region52
        $region51: #{bert_forward.3} parent=11 // pred_region
          _
        $region52: #{bert_forward.3} parent=11 // pred_fallthru
          _
        // Predicated region
        $region53: #{bert_forward.3} parent=11 // pred_check
          %p414 = pneg %p320
        $region54: #{bert_forward.3} parent=11 // pred_check_branch
          %416 = sbr.rel (%p414) target = $region56
        $region55: #{bert_forward.3} parent=11 // pred_region
          _
        $region56: #{bert_forward.3} parent=11 // pred_fallthru
          _
        // Predicated region
        $region57: #{bert_forward.3} parent=11 // pred_check
          %p417 = pneg %p341
        $region58: #{bert_forward.3} parent=11 // pred_check_branch
          %419 = sbr.rel (%p417) target = $region60
        $region59: #{bert_forward.3} parent=11 // pred_region
          _
        $region60: #{bert_forward.3} parent=11 // pred_fallthru
          _
      $region12: #{bert_forward.3} parent=5 // pred_fallthru
        _
      %p420 = scmp.lt.s32.totalorder %s23, 2
      // Predicated region
      $region61: #{bert_forward.3} parent=5 // pred_check
        %p421 = pneg %p420
      $region62: #{bert_forward.3} parent=5 // pred_check_branch
        %423 = sbr.rel (%p421) target = $region64
      $region63: #{bert_forward.3} parent=5 // pred_region
        // Predicated region
        $region65: #{bert_forward.3} parent=63 // pred_check
          %p424 = pneg %p55
        $region66: #{bert_forward.3} parent=63 // pred_check_branch
          %426 = sbr.rel (%p424) target = $region68
        $region67: #{bert_forward.3} parent=63 // pred_region
          %p427 = scmp.lt.s32.totalorder %s30, 1
          %s428 = scalar_select %p427, %s30, 1
          %s429 = smul.addr %s428, 8
          %s430 = scalar_lea.vmem %s0, %s429
        $region68: #{bert_forward.3} parent=63 // pred_fallthru
          _
        // Predicated region
        $region69: #{bert_forward.3} parent=63 // pred_check
          %p431 = pneg %p83
        $region70: #{bert_forward.3} parent=63 // pred_check_branch
          %433 = sbr.rel (%p431) target = $region72
        $region71: #{bert_forward.3} parent=63 // pred_region
          %p434 = scmp.lt.s32.totalorder %s30, 1
          %s435 = scalar_select %p434, %s30, 1
          %p436 = scmp.lt.s32.totalorder %s31, 0
          %s437 = scalar_select %p436, %s31, 0
          %s438 = sadd.s32 %s437, %s435
          %s439 = smul.addr %s438, 8
          %s440 = scalar_lea.vmem %s1, %s439
        $region72: #{bert_forward.3} parent=63 // pred_fallthru
          _
      $region64: #{bert_forward.3} parent=5 // pred_fallthru
        _
      %p441 = scmp.le.s32.totalorder 1, %s23
      %p442 = scmp.lt.s32.totalorder %s23, 3
      %p443 = pnand %p441, %p442
      %p444 = pneg %p443
      // Predicated region
      $region73: #{bert_forward.3} parent=5 // pred_check
        _
      $region74: #{bert_forward.3} parent=5 // pred_check_branch
        %446 = sbr.rel (%p443) target = $region76
      $region75: #{bert_forward.3} parent=5 // pred_region
        %s447 = ssub.s32 %s23, 1
        %p448 = scmp.lt.s32.totalorder %s32, 1
        %s449 = scalar_select %p448, %s32, 1
        %s450 = smul.addr %s449, 8
        %s451 = scalar_lea.vmem %s0, %s450
        %p452 = pneg %p61
        %p453 = pneg %p58
        %p454 = scmp.lt.s32.totalorder %s32, 1
        %s455 = scalar_select %p454, %s32, 1
        %p456 = scmp.lt.s32.totalorder %s33, 0
        %s457 = scalar_select %p456, %s33, 0
        %s458 = sadd.s32 %s457, %s455
        %s459 = smul.addr %s458, 8
        %s460 = scalar_lea.vmem %s1, %s459
        %p461 = pneg %p89
        %p462 = pneg %p86
        %p463 = pneg %p110
        %p464 = pneg %p107
        %p465 = pneg %p131
        %p466 = pneg %p128
        %p467 = pneg %p152
        %p468 = pneg %p149
        %p469 = pneg %p173
        %p470 = pneg %p170
        %p471 = pneg %p194
        %p472 = pneg %p191
        %p473 = pneg %p215
        %p474 = pneg %p212
        %p475 = pneg %p236
        %p476 = pneg %p233
        %p477 = pneg %p257
        %p478 = pneg %p254
        %p479 = pneg %p278
        %p480 = pneg %p275
        %p481 = pneg %p299
        %p482 = pneg %p296
        %p483 = pneg %p320
        %p484 = pneg %p317
        %p485 = pneg %p341
        %p486 = pneg %p338
        %p487 = pneg %p369
        %p488 = pneg %p366
        %s489 = sand.u32 %s356, 1
        %s490 = scalar_lea.sflag [#allocation4], %s489
        %s491 = sand.u32 %s356, 1
        %s492 = smul.addr %s491, 8
        %s493 = scalar_lea.vmem [#allocation3], %s492
        %p494 = scmp.lt.s32.totalorder %s32, 1
        %s495 = scalar_select %p494, %s32, 1
        %s496 = smul.addr %s495, 8
        %s497 = scalar_lea.vmem %s0, %s496
        %p498 = scmp.lt.s32.totalorder %s32, 1
        %s499 = scalar_select %p498, %s32, 1
        %p500 = scmp.lt.s32.totalorder %s33, 0
        %s501 = scalar_select %p500, %s33, 0
        %s502 = sadd.s32 %s501, %s499
        %s503 = smul.addr %s502, 8
        %s504 = scalar_lea.vmem %s1, %s503
        %p506 = scmp.eq.s32.totalorder %s33, 0
        // Predicated region
        $region77: #{bert_forward.3} parent=75 // pred_check
          %p507 = pneg %p506
        $region78: #{bert_forward.3} parent=75 // pred_check_branch
          %509 = sbr.rel (%p507) target = $region80
        $region79: #{bert_forward.3} parent=75 // pred_region
          %v510 = vld [vmem:[%s497] sm:$0xff]
          %v511 = vld [vmem:[%s6] sm:$0x1]
          %v512 = vld [vmem:[%s7] sm:$0x1]
          %vm513 = vcmask 261120
          %v514 = vsel %vm513, %v510, 0.0
          %515 = vadd.xlane.f32.xlu0 %v514
          %v516 = vpop.xlane.xlu0 %515
          %v517 = vrcp.pop 32.0
          %v518 = vmul.f32 %v516, %v517
          %v519 = vsub.f32 %v510, %v518
          %v520 = vmul.f32 %v519, %v519
          %v521 = vsel %vm513, %v520, 0.0
          %522 = vadd.xlane.f32.xlu0 %v521
          %v523 = vpop.xlane.xlu0 %522
          %v524 = vrcp.pop 31.0
          %v525 = vmul.f32 %v523, %v524
          %v526 = vrsqrt.pop %v525
          %v527 = vmul.f32 %v525, %v526
          %vm528 = vcmp.eq.f32.partialorder %v525, inf
          %v529 = vsel %vm528, %v525, %v527
          %vm530 = vcmp.eq.f32.partialorder %v525, 0.0
          %v531 = vand.u32 %v525, 2147483648
          %v532 = vsel %vm530, %v531, %v529
          %v534 = vlaneseq
          %v535 = vshrl.u32 %v534, 7
          %v536 = vsub.s32 0, %v535
          %v537 = vrot.slane %v511, %v536
          %v539 = vmul.f32 %v537, %v519
          %v540 = vadd.f32 %v532, 1e-06
          %v541 = vrcp.pop %v540
          %v542 = vmul.f32 %v539, %v541
          %v544 = vlaneseq
          %v545 = vshrl.u32 %v544, 7
          %v546 = vsub.s32 0, %v545
          %v547 = vrot.slane %v512, %v546
          %v549 = vadd.f32 %v542, %v547
          %v550 = vpack.c.bf16 %v549, %v549
          %v551 = vld [vmem:[%s2] sm:$0xf]
          %v552 = vld [vmem:[%s2 + $0x4] sm:$0xf]
          %v553 = vld [vmem:[%s2 + $0x8] sm:$0xf]
          %v554 = vld [vmem:[%s2 + $0xc] sm:$0xf]
          %v555 = vld [vmem:[%s3] sm:$0x1]
          %v557 = vlaneseq
          %v558 = vshrl.u32 %v557, 7
          %v559 = vsub.s32 0, %v558
          %v560 = vrot.slane %v555, %v559
          %v566 = vunpack.c.l.b16 %v551
          %v567 = vunpack.c.l.b16 %v552
          %v568 = vunpack.c.l.b16 %v553
          %v569 = vunpack.c.l.b16 %v554
          %v570 = vpack.c.b16 %v567, %v566
          %v571 = vpack.c.b16 %v569, %v568
          %v575 = vsel %vm513, %v550, 0
          %577 = vmatprep.subr.bf16.mxu0 0
          %578 = vmatpush1.bf16.msra.mxu0 %v570
          %579 = vmatprep.subr.bf16.mxu0 0
          %580 = vmatpush1.bf16.msra.mxu0 %v571
          %581 = vmatprep.subr.bf16.mxu0 0
          %582 = vmatpush1.bf16.msra.mxu0 0
          %583 = vmatprep.subr.bf16.mxu0 0
          %584 = vmatpush1.bf16.msra.mxu0 0
          %585 = vmatprep.subr.bf16.mxu0 0
          %586 = vmatpush1.bf16.msra.mxu0 0
          %587 = vmatprep.subr.bf16.mxu0 0
          %588 = vmatpush1.bf16.msra.mxu0 0
          %589 = vmatprep.subr.bf16.mxu0 0
          %590 = vmatpush1.bf16.msra.mxu0 0
          %591 = vmatprep.subr.bf16.mxu0 0
          %592 = vmatpush1.bf16.msra.mxu0 0
          %593 = vmatprep.subr.bf16.mxu0 0
          %594 = vmatpush1.bf16.msra.mxu0 0
          %595 = vmatprep.subr.bf16.mxu0 0
          %596 = vmatpush1.bf16.msra.mxu0 0
          %597 = vmatprep.subr.bf16.mxu0 0
          %598 = vmatpush1.bf16.msra.mxu0 0
          %599 = vmatprep.subr.bf16.mxu0 0
          %600 = vmatpush1.bf16.msra.mxu0 0
          %601 = vmatprep.subr.bf16.mxu0 0
          %602 = vmatpush1.bf16.msra.mxu0 0
          %603 = vmatprep.subr.bf16.mxu0 0
          %604 = vmatpush1.bf16.msra.mxu0 0
          %605 = vmatprep.subr.bf16.mxu0 0
          %606 = vmatpush1.bf16.msra.mxu0 0
          %607 = vmatprep.subr.bf16.mxu0 0
          %608 = vmatpush1.bf16.msra.mxu0 0
          %609 = vmatprep.mubr.bf16.mxu0 0
          %610 = vmatmul.mubr.bf16.gmra.mrb[0].mxu0 %v575
          %v611 = vpop.f32.mrb[0].mxu0
          %v612 = vadd.f32 %v560, %v611
          %v613 = vpop.f32.mrb[0].mxu0
          %v614 = vpop.f32.mrb[0].mxu0
          %v615 = vpop.f32.mrb[0].mxu0
          %616 = vdwg.mxu0
          %v617 = vpack.c.bf16 %v612, %v612
          %619 = vrot.lane.b32.xlu0 %v617, 120
          %v620 = vpop.permute.xlu0 %619
          %621 = vrot.lane.b32.xlu0 %v617, 112
          %v622 = vpop.permute.xlu0 %621
          %623 = vrot.lane.b32.xlu0 %v617, 104
          %v624 = vpop.permute.xlu0 %623
          %v626 = vunpack.c.l.s4 1983009808
          %v627 = vunpack.c.0.s8 %v626
          %v628 = vlaneseq
          %v629 = vshrl.u32 %v628, 7
          %v630 = vsub.s32 %v627, %v629
          %v631 = vrot.slane %v617, %v630
          %v634 = vunpack.c.l.s4 1983009808
          %v635 = vunpack.c.0.s8 %v634
          %v636 = vlaneseq
          %v637 = vshrl.u32 %v636, 7
          %v638 = vsub.s32 %v635, %v637
          %v639 = vrot.slane %v622, %v638
          %v640 = vcombine.low %v631, %v639
          %v641 = vcombine.high %v631, %v639
          %v643 = vunpack.c.l.s4 1934713408
          %v644 = vunpack.c.0.s8 %v643
          %v645 = vlaneseq
          %v646 = vshrl.u32 %v645, 7
          %v647 = vsub.s32 %v644, %v646
          %v648 = vrot.slane %v640, %v647
          %v650 = vunpack.c.l.s4 1934713408
          %v651 = vunpack.c.0.s8 %v650
          %v652 = vlaneseq
          %v653 = vshrl.u32 %v652, 7
          %v654 = vsub.s32 %v651, %v653
          %v655 = vrot.slane %v641, %v654
          %v656 = vcombine.high %v648, 0
          %v657 = vcombine.high %v655, 0
          %v660 = vunpack.c.l.s4 1983009808
          %v661 = vunpack.c.0.s8 %v660
          %v662 = vlaneseq
          %v663 = vshrl.u32 %v662, 7
          %v664 = vsub.s32 %v661, %v663
          %v665 = vrot.slane %v620, %v664
          %v668 = vunpack.c.l.s4 1983009808
          %v669 = vunpack.c.0.s8 %v668
          %v670 = vlaneseq
          %v671 = vshrl.u32 %v670, 7
          %v672 = vsub.s32 %v669, %v671
          %v673 = vrot.slane %v624, %v672
          %v674 = vcombine.low %v665, %v673
          %v675 = vcombine.high %v665, %v673
          %v677 = vunpack.c.l.s4 1934713408
          %v678 = vunpack.c.0.s8 %v677
          %v679 = vlaneseq
          %v680 = vshrl.u32 %v679, 7
          %v681 = vsub.s32 %v678, %v680
          %v682 = vrot.slane %v674, %v681
          %v684 = vunpack.c.l.s4 1934713408
          %v685 = vunpack.c.0.s8 %v684
          %v686 = vlaneseq
          %v687 = vshrl.u32 %v686, 7
          %v688 = vsub.s32 %v685, %v687
          %v689 = vrot.slane %v675, %v688
          %v690 = vcombine.high %v682, 0
          %v691 = vcombine.high %v689, 0
          %v694 = vpack.i.b16 %v682, %v648
          %v696 = vshrl.u32 %v648, 16
          %v697 = vshrl.u32 %v682, 16
          %v698 = vpack.i.b16 %v697, %v696
          %v702 = vpack.i.b16 %v690, %v656
          %v704 = vshrl.u32 %v656, 16
          %v705 = vshrl.u32 %v690, 16
          %v706 = vpack.i.b16 %v705, %v704
          %v710 = vpack.i.b16 %v689, %v655
          %v712 = vshrl.u32 %v655, 16
          %v713 = vshrl.u32 %v689, 16
          %v714 = vpack.i.b16 %v713, %v712
          %v718 = vpack.i.b16 %v691, %v657
          %v720 = vshrl.u32 %v657, 16
          %v721 = vshrl.u32 %v691, 16
          %v722 = vpack.i.b16 %v721, %v720
          %v724 = vcombine.low %v694, %v710
          %v726 = vunpack.c.l.s4 1983009808
          %v727 = vunpack.c.0.s8 %v726
          %v728 = vlaneseq
          %v729 = vshrl.u32 %v728, 7
          %v730 = vsub.s32 %v727, %v729
          %v731 = vrot.slane %v724, %v730
          %v732 = vcombine.low %v702, %v718
          %v734 = vunpack.c.l.s4 1983009808
          %v735 = vunpack.c.0.s8 %v734
          %v736 = vlaneseq
          %v737 = vshrl.u32 %v736, 7
          %v738 = vsub.s32 %v735, %v737
          %v739 = vrot.slane %v732, %v738
          %v740 = vcombine.low %v731, %v739
          %v742 = vunpack.c.l.s4 1934713408
          %v743 = vunpack.c.0.s8 %v742
          %v744 = vlaneseq
          %v745 = vshrl.u32 %v744, 7
          %v746 = vsub.s32 %v743, %v745
          %v747 = vrot.slane %v740, %v746
          %v748 = vcombine.high %v747, 0
          %v749 = vcombine.low %v698, %v714
          %v751 = vunpack.c.l.s4 1983009808
          %v752 = vunpack.c.0.s8 %v751
          %v753 = vlaneseq
          %v754 = vshrl.u32 %v753, 7
          %v755 = vsub.s32 %v752, %v754
          %v756 = vrot.slane %v749, %v755
          %v757 = vcombine.low %v706, %v722
          %v759 = vunpack.c.l.s4 1983009808
          %v760 = vunpack.c.0.s8 %v759
          %v761 = vlaneseq
          %v762 = vshrl.u32 %v761, 7
          %v763 = vsub.s32 %v760, %v762
          %v764 = vrot.slane %v757, %v763
          %v765 = vcombine.low %v756, %v764
          %v767 = vunpack.c.l.s4 1934713408
          %v768 = vunpack.c.0.s8 %v767
          %v769 = vlaneseq
          %v770 = vshrl.u32 %v769, 7
          %v771 = vsub.s32 %v768, %v770
          %v772 = vrot.slane %v765, %v771
          %v773 = vcombine.high %v772, 0
          %v776 = vpack.i.b16 %v772, %v747
          %v778 = vshrl.u32 %v747, 16
          %v779 = vshrl.u32 %v772, 16
          %v780 = vpack.i.b16 %v779, %v778
          %v784 = vpack.i.b16 %v773, %v748
          %v786 = vshrl.u32 %v748, 16
          %v787 = vshrl.u32 %v773, 16
          %v788 = vpack.i.b16 %v787, %v786
          %vm790 = vcmask 60416
          %791 = vst.msk [vmem:[#allocation2] sm:$0xf] %vm790, %v776
          %792 = vst.msk [vmem:[#allocation2 + $0x4] sm:$0xf] %vm790, %v780
          %793 = vst.msk [vmem:[#allocation2 + $0x8] sm:$0xf] %vm790, %v784
          %794 = vst.msk [vmem:[#allocation2 + $0xc] sm:$0xf] %vm790, %v788
          %795 = vrot.lane.b32.xlu0 %v617, 96
          %v796 = vpop.permute.xlu0 %795
          %797 = vrot.lane.b32.xlu0 %v620, 96
          %v798 = vpop.permute.xlu0 %797
          %799 = vrot.lane.b32.xlu0 %v622, 96
          %v800 = vpop.permute.xlu0 %799
          %801 = vrot.lane.b32.xlu0 %v624, 96
          %v802 = vpop.permute.xlu0 %801
          %v805 = vunpack.c.l.s4 1983009808
          %v806 = vunpack.c.0.s8 %v805
          %v807 = vlaneseq
          %v808 = vshrl.u32 %v807, 7
          %v809 = vsub.s32 %v806, %v808
          %v810 = vrot.slane %v796, %v809
          %v813 = vunpack.c.l.s4 1983009808
          %v814 = vunpack.c.0.s8 %v813
          %v815 = vlaneseq
          %v816 = vshrl.u32 %v815, 7
          %v817 = vsub.s32 %v814, %v816
          %v818 = vrot.slane %v800, %v817
          %v819 = vcombine.low %v810, %v818
          %v820 = vcombine.high %v810, %v818
          %v822 = vunpack.c.l.s4 1934713408
          %v823 = vunpack.c.0.s8 %v822
          %v824 = vlaneseq
          %v825 = vshrl.u32 %v824, 7
          %v826 = vsub.s32 %v823, %v825
          %v827 = vrot.slane %v819, %v826
          %v829 = vunpack.c.l.s4 1934713408
          %v830 = vunpack.c.0.s8 %v829
          %v831 = vlaneseq
          %v832 = vshrl.u32 %v831, 7
          %v833 = vsub.s32 %v830, %v832
          %v834 = vrot.slane %v820, %v833
          %v835 = vcombine.high %v827, 0
          %v836 = vcombine.high %v834, 0
          %v839 = vunpack.c.l.s4 1983009808
          %v840 = vunpack.c.0.s8 %v839
          %v841 = vlaneseq
          %v842 = vshrl.u32 %v841, 7
          %v843 = vsub.s32 %v840, %v842
          %v844 = vrot.slane %v798, %v843
          %v847 = vunpack.c.l.s4 1983009808
          %v848 = vunpack.c.0.s8 %v847
          %v849 = vlaneseq
          %v850 = vshrl.u32 %v849, 7
          %v851 = vsub.s32 %v848, %v850
          %v852 = vrot.slane %v802, %v851
          %v853 = vcombine.low %v844, %v852
          %v854 = vcombine.high %v844, %v852
          %v856 = vunpack.c.l.s4 1934713408
          %v857 = vunpack.c.0.s8 %v856
          %v858 = vlaneseq
          %v859 = vshrl.u32 %v858, 7
          %v860 = vsub.s32 %v857, %v859
          %v861 = vrot.slane %v853, %v860
          %v863 = vunpack.c.l.s4 1934713408
          %v864 = vunpack.c.0.s8 %v863
          %v865 = vlaneseq
          %v866 = vshrl.u32 %v865, 7
          %v867 = vsub.s32 %v864, %v866
          %v868 = vrot.slane %v854, %v867
          %v869 = vcombine.high %v861, 0
          %v870 = vcombine.high %v868, 0
          %v873 = vpack.i.b16 %v861, %v827
          %v875 = vshrl.u32 %v827, 16
          %v876 = vshrl.u32 %v861, 16
          %v877 = vpack.i.b16 %v876, %v875
          %v881 = vpack.i.b16 %v869, %v835
          %v883 = vshrl.u32 %v835, 16
          %v884 = vshrl.u32 %v869, 16
          %v885 = vpack.i.b16 %v884, %v883
          %v889 = vpack.i.b16 %v868, %v834
          %v891 = vshrl.u32 %v834, 16
          %v892 = vshrl.u32 %v868, 16
          %v893 = vpack.i.b16 %v892, %v891
          %v897 = vpack.i.b16 %v870, %v836
          %v899 = vshrl.u32 %v836, 16
          %v900 = vshrl.u32 %v870, 16
          %v901 = vpack.i.b16 %v900, %v899
          %v903 = vcombine.low %v873, %v889
          %v905 = vunpack.c.l.s4 1983009808
          %v906 = vunpack.c.0.s8 %v905
          %v907 = vlaneseq
          %v908 = vshrl.u32 %v907, 7
          %v909 = vsub.s32 %v906, %v908
          %v910 = vrot.slane %v903, %v909
          %v911 = vcombine.low %v881, %v897
          %v913 = vunpack.c.l.s4 1983009808
          %v914 = vunpack.c.0.s8 %v913
          %v915 = vlaneseq
          %v916 = vshrl.u32 %v915, 7
          %v917 = vsub.s32 %v914, %v916
          %v918 = vrot.slane %v911, %v917
          %v919 = vcombine.low %v910, %v918
          %v921 = vunpack.c.l.s4 1934713408
          %v922 = vunpack.c.0.s8 %v921
          %v923 = vlaneseq
          %v924 = vshrl.u32 %v923, 7
          %v925 = vsub.s32 %v922, %v924
          %v926 = vrot.slane %v919, %v925
          %v927 = vcombine.high %v926, 0
          %v928 = vcombine.low %v877, %v893
          %v930 = vunpack.c.l.s4 1983009808
          %v931 = vunpack.c.0.s8 %v930
          %v932 = vlaneseq
          %v933 = vshrl.u32 %v932, 7
          %v934 = vsub.s32 %v931, %v933
          %v935 = vrot.slane %v928, %v934
          %v936 = vcombine.low %v885, %v901
          %v938 = vunpack.c.l.s4 1983009808
          %v939 = vunpack.c.0.s8 %v938
          %v940 = vlaneseq
          %v941 = vshrl.u32 %v940, 7
          %v942 = vsub.s32 %v939, %v941
          %v943 = vrot.slane %v936, %v942
          %v944 = vcombine.low %v935, %v943
          %v946 = vunpack.c.l.s4 1934713408
          %v947 = vunpack.c.0.s8 %v946
          %v948 = vlaneseq
          %v949 = vshrl.u32 %v948, 7
          %v950 = vsub.s32 %v947, %v949
          %v951 = vrot.slane %v944, %v950
          %v952 = vcombine.high %v951, 0
          %v955 = vpack.i.b16 %v951, %v926
          %v957 = vshrl.u32 %v926, 16
          %v958 = vshrl.u32 %v951, 16
          %v959 = vpack.i.b16 %v958, %v957
          %v963 = vpack.i.b16 %v952, %v927
          %v965 = vshrl.u32 %v927, 16
          %v966 = vshrl.u32 %v952, 16
          %v967 = vpack.i.b16 %v966, %v965
          %s969 = scalar_lea.vmem [#allocation2], 16
          %970 = vst.msk [vmem:[%s969] sm:$0xf] %vm790, %v955
          %971 = vst.msk [vmem:[%s969 + $0x4] sm:$0xf] %vm790, %v959
          %972 = vst.msk [vmem:[%s969 + $0x8] sm:$0xf] %vm790, %v963
          %973 = vst.msk [vmem:[%s969 + $0xc] sm:$0xf] %vm790, %v967
          %974 = vrot.lane.b32.xlu0 %v617, 64
          %v975 = vpop.permute.xlu0 %974
          %976 = vrot.lane.b32.xlu0 %v620, 64
          %v977 = vpop.permute.xlu0 %976
          %978 = vrot.lane.b32.xlu0 %v622, 64
          %v979 = vpop.permute.xlu0 %978
          %980 = vrot.lane.b32.xlu0 %v624, 64
          %v981 = vpop.permute.xlu0 %980
          %v984 = vunpack.c.l.s4 1983009808
          %v985 = vunpack.c.0.s8 %v984
          %v986 = vlaneseq
          %v987 = vshrl.u32 %v986, 7
          %v988 = vsub.s32 %v985, %v987
          %v989 = vrot.slane %v975, %v988
          %v992 = vunpack.c.l.s4 1983009808
          %v993 = vunpack.c.0.s8 %v992
          %v994 = vlaneseq
          %v995 = vshrl.u32 %v994, 7
          %v996 = vsub.s32 %v993, %v995
          %v997 = vrot.slane %v979, %v996
          %v998 = vcombine.low %v989, %v997
          %v999 = vcombine.high %v989, %v997
          %v1001 = vunpack.c.l.s4 1934713408
          %v1002 = vunpack.c.0.s8 %v1001
          %v1003 = vlaneseq
          %v1004 = vshrl.u32 %v1003, 7
          %v1005 = vsub.s32 %v1002, %v1004
          %v1006 = vrot.slane %v998, %v1005
          %v1008 = vunpack.c.l.s4 1934713408
          %v1009 = vunpack.c.0.s8 %v1008
          %v1010 = vlaneseq
          %v1011 = vshrl.u32 %v1010, 7
          %v1012 = vsub.s32 %v1009, %v1011
          %v1013 = vrot.slane %v999, %v1012
          %v1014 = vcombine.high %v1006, 0
          %v1015 = vcombine.high %v1013, 0
          %v1018 = vunpack.c.l.s4 1983009808
          %v1019 = vunpack.c.0.s8 %v1018
          %v1020 = vlaneseq
          %v1021 = vshrl.u32 %v1020, 7
          %v1022 = vsub.s32 %v1019, %v1021
          %v1023 = vrot.slane %v977, %v1022
          %v1026 = vunpack.c.l.s4 1983009808
          %v1027 = vunpack.c.0.s8 %v1026
          %v1028 = vlaneseq
          %v1029 = vshrl.u32 %v1028, 7
          %v1030 = vsub.s32 %v1027, %v1029
          %v1031 = vrot.slane %v981, %v1030
          %v1032 = vcombine.low %v1023, %v1031
          %v1033 = vcombine.high %v1023, %v1031
          %v1035 = vunpack.c.l.s4 1934713408
          %v1036 = vunpack.c.0.s8 %v1035
          %v1037 = vlaneseq
          %v1038 = vshrl.u32 %v1037, 7
          %v1039 = vsub.s32 %v1036, %v1038
          %v1040 = vrot.slane %v1032, %v1039
          %v1042 = vunpack.c.l.s4 1934713408
          %v1043 = vunpack.c.0.s8 %v1042
          %v1044 = vlaneseq
          %v1045 = vshrl.u32 %v1044, 7
          %v1046 = vsub.s32 %v1043, %v1045
          %v1047 = vrot.slane %v1033, %v1046
          %v1048 = vcombine.high %v1040, 0
          %v1049 = vcombine.high %v1047, 0
          %v1052 = vpack.i.b16 %v1040, %v1006
          %v1054 = vshrl.u32 %v1006, 16
          %v1055 = vshrl.u32 %v1040, 16
          %v1056 = vpack.i.b16 %v1055, %v1054
          %v1060 = vpack.i.b16 %v1048, %v1014
          %v1062 = vshrl.u32 %v1014, 16
          %v1063 = vshrl.u32 %v1048, 16
          %v1064 = vpack.i.b16 %v1063, %v1062
          %v1068 = vpack.i.b16 %v1047, %v1013
          %v1070 = vshrl.u32 %v1013, 16
          %v1071 = vshrl.u32 %v1047, 16
          %v1072 = vpack.i.b16 %v1071, %v1070
          %v1076 = vpack.i.b16 %v1049, %v1015
          %v1078 = vshrl.u32 %v1015, 16
          %v1079 = vshrl.u32 %v1049, 16
          %v1080 = vpack.i.b16 %v1079, %v1078
          %v1082 = vcombine.low %v1052, %v1068
          %v1084 = vunpack.c.l.s4 1983009808
          %v1085 = vunpack.c.0.s8 %v1084
          %v1086 = vlaneseq
          %v1087 = vshrl.u32 %v1086, 7
          %v1088 = vsub.s32 %v1085, %v1087
          %v1089 = vrot.slane %v1082, %v1088
          %v1090 = vcombine.low %v1060, %v1076
          %v1092 = vunpack.c.l.s4 1983009808
          %v1093 = vunpack.c.0.s8 %v1092
          %v1094 = vlaneseq
          %v1095 = vshrl.u32 %v1094, 7
          %v1096 = vsub.s32 %v1093, %v1095
          %v1097 = vrot.slane %v1090, %v1096
          %v1098 = vcombine.low %v1089, %v1097
          %v1100 = vunpack.c.l.s4 1934713408
          %v1101 = vunpack.c.0.s8 %v1100
          %v1102 = vlaneseq
          %v1103 = vshrl.u32 %v1102, 7
          %v1104 = vsub.s32 %v1101, %v1103
          %v1105 = vrot.slane %v1098, %v1104
          %v1106 = vcombine.high %v1105, 0
          %v1107 = vcombine.low %v1056, %v1072
          %v1109 = vunpack.c.l.s4 1983009808
          %v1110 = vunpack.c.0.s8 %v1109
          %v1111 = vlaneseq
          %v1112 = vshrl.u32 %v1111, 7
          %v1113 = vsub.s32 %v1110, %v1112
          %v1114 = vrot.slane %v1107, %v1113
          %v1115 = vcombine.low %v1064, %v1080
          %v1117 = vunpack.c.l.s4 1983009808
          %v1118 = vunpack.c.0.s8 %v1117
          %v1119 = vlaneseq
          %v1120 = vshrl.u32 %v1119, 7
          %v1121 = vsub.s32 %v1118, %v1120
          %v1122 = vrot.slane %v1115, %v1121
          %v1123 = vcombine.low %v1114, %v1122
          %v1125 = vunpack.c.l.s4 1934713408
          %v1126 = vunpack.c.0.s8 %v1125
          %v1127 = vlaneseq
          %v1128 = vshrl.u32 %v1127, 7
          %v1129 = vsub.s32 %v1126, %v1128
          %v1130 = vrot.slane %v1123, %v1129
          %v1131 = vcombine.high %v1130, 0
          %v1134 = vpack.i.b16 %v1130, %v1105
          %v1136 = vshrl.u32 %v1105, 16
          %v1137 = vshrl.u32 %v1130, 16
          %v1138 = vpack.i.b16 %v1137, %v1136
          %v1142 = vpack.i.b16 %v1131, %v1106
          %v1144 = vshrl.u32 %v1106, 16
          %v1145 = vshrl.u32 %v1131, 16
          %v1146 = vpack.i.b16 %v1145, %v1144
          %s1148 = scalar_lea.vmem [#allocation2], 32
          %1149 = vst.msk [vmem:[%s1148] sm:$0xf] %vm790, %v1134
          %1150 = vst.msk [vmem:[%s1148 + $0x4] sm:$0xf] %vm790, %v1138
          %1151 = vst.msk [vmem:[%s1148 + $0x8] sm:$0xf] %vm790, %v1142
          %1152 = vst.msk [vmem:[%s1148 + $0xc] sm:$0xf] %vm790, %v1146
        $region80: #{bert_forward.3} parent=75 // pred_fallthru
          _
        %s1153 = smul.u32 %s33, 8
        %s1154 = scalar_lea.vmem %s497, %s1153
        %v1155 = vld [vmem:[%s1154] sm:$0xff]
        %s1156 = sshra.s32 %s1153, 3
        %s1157 = sand.u32 %s1153, 7
        %s1158 = smul.addr %s1156, 4
        %s1159 = scalar_lea.vmem [#allocation2], %s1158
        %v1160 = vld [vmem:[%s1159] sm:$0xf]
        %v1161 = vld [vmem:[%s1159 + $0x4] sm:$0xf]
        %v1162 = vld [vmem:[%s1159 + $0x8] sm:$0xf]
        %v1163 = vld [vmem:[%s1159 + $0xc] sm:$0xf]
        %s1164 = scalar_lea.vmem [#allocation2], 16
        %v1165 = vld [vmem:[%s1164] sm:$0xf]
        %v1166 = vld [vmem:[%s1164 + $0x4] sm:$0xf]
        %v1167 = vld [vmem:[%s1164 + $0x8] sm:$0xf]
        %v1168 = vld [vmem:[%s1164 + $0xc] sm:$0xf]
        %s1169 = scalar_lea.vmem [#allocation2], 32
        %v1170 = vld [vmem:[%s1169] sm:$0xf]
        %v1171 = vld [vmem:[%s1169 + $0x4] sm:$0xf]
        %v1172 = vld [vmem:[%s1169 + $0x8] sm:$0xf]
        %v1173 = vld [vmem:[%s1169 + $0xc] sm:$0xf]
        %v1174 = vld [vmem:[%s504] sm:$0xff]
        %vm1175 = vcmask 64512
        %v1177 = vsel %vm1175, %v1160, 0
        %v1180 = vsel %vm1175, %v1165, 0
        %1182 = vmatprep.subr.bf16.mxu0 0
        %1183 = vmatpush1.bf16.xpose.msra.mxu0 %v1180
        %1184 = vmatprep.subr.bf16.mxu0 0
        %1185 = vmatpush1.bf16.xpose.msra.mxu0 0
        %1186 = vmatprep.subr.bf16.mxu0 0
        %1187 = vmatpush1.bf16.xpose.msra.mxu0 0
        %1188 = vmatprep.subr.bf16.mxu0 0
        %1189 = vmatpush1.bf16.xpose.msra.mxu0 0
        %1190 = vmatprep.subr.bf16.mxu0 0
        %1191 = vmatpush1.bf16.xpose.msra.mxu0 0
        %1192 = vmatprep.subr.bf16.mxu0 0
        %1193 = vmatpush1.bf16.xpose.msra.mxu0 0
        %1194 = vmatprep.subr.bf16.mxu0 0
        %1195 = vmatpush1.bf16.xpose.msra.mxu0 0
        %1196 = vmatprep.subr.bf16.mxu0 0
        %1197 = vmatpush1.bf16.xpose.msra.mxu0 0
        %1198 = vmatprep.subr.bf16.mxu0 0
        %1199 = vmatpush1.bf16.xpose.msra.mxu0 0
        %1200 = vmatprep.subr.bf16.mxu0 0
        %1201 = vmatpush1.bf16.xpose.msra.mxu0 0
        %1202 = vmatprep.subr.bf16.mxu0 0
        %1203 = vmatpush1.bf16.xpose.msra.mxu0 0
        %1204 = vmatprep.subr.bf16.mxu0 0
        %1205 = vmatpush1.bf16.xpose.msra.mxu0 0
        %1206 = vmatprep.subr.bf16.mxu0 0
        %1207 = vmatpush1.bf16.xpose.msra.mxu0 0
        %1208 = vmatprep.subr.bf16.mxu0 0
        %1209 = vmatpush1.bf16.xpose.msra.mxu0 0
        %1210 = vmatprep.subr.bf16.mxu0 0
        %1211 = vmatpush1.bf16.xpose.msra.mxu0 0
        %1212 = vmatprep.subr.bf16.mxu0 0
        %1213 = vmatpush1.bf16.xpose.msra.mxu0 0
        %1214 = vmatprep.mubr.bf16.mxu0 0
        %1215 = vmatmul.mubr.bf16.gmra.mrb[0].mxu0 %v1177
        %v1216 = vpop.f32.mrb[0].mxu0
        %v1217 = vadd.f32 %v1174, %v1216
        %v1218 = vpop.f32.mrb[0].mxu0
        %v1219 = vpop.f32.mrb[0].mxu0
        %v1220 = vpop.f32.mrb[0].mxu0
        %1221 = vdwg.mxu0
        %v1223 = vsel %vm1175, %v1161, 0
        %v1226 = vsel %vm1175, %v1166, 0
        %1228 = vmatprep.subr.bf16.mxu0 0
        %1229 = vmatpush1.bf16.xpose.msra.mxu0 %v1226
        %1230 = vmatprep.subr.bf16.mxu0 0
        %1231 = vmatpush1.bf16.xpose.msra.mxu0 0
        %1232 = vmatprep.subr.bf16.mxu0 0
        %1233 = vmatpush1.bf16.xpose.msra.mxu0 0
        %1234 = vmatprep.subr.bf16.mxu0 0
        %1235 = vmatpush1.bf16.xpose.msra.mxu0 0
        %1236 = vmatprep.subr.bf16.mxu0 0
        %1237 = vmatpush1.bf16.xpose.msra.mxu0 0
        %1238 = vmatprep.subr.bf16.mxu0 0
        %1239 = vmatpush1.bf16.xpose.msra.mxu0 0
        %1240 = vmatprep.subr.bf16.mxu0 0
        %1241 = vmatpush1.bf16.xpose.msra.mxu0 0
        %1242 = vmatprep.subr.bf16.mxu0 0
        %1243 = vmatpush1.bf16.xpose.msra.mxu0 0
        %1244 = vmatprep.subr.bf16.mxu0 0
        %1245 = vmatpush1.bf16.xpose.msra.mxu0 0
        %1246 = vmatprep.subr.bf16.mxu0 0
        %1247 = vmatpush1.bf16.xpose.msra.mxu0 0
        %1248 = vmatprep.subr.bf16.mxu0 0
        %1249 = vmatpush1.bf16.xpose.msra.mxu0 0
        %1250 = vmatprep.subr.bf16.mxu0 0
        %1251 = vmatpush1.bf16.xpose.msra.mxu0 0
        %1252 = vmatprep.subr.bf16.mxu0 0
        %1253 = vmatpush1.bf16.xpose.msra.mxu0 0
        %1254 = vmatprep.subr.bf16.mxu0 0
        %1255 = vmatpush1.bf16.xpose.msra.mxu0 0
        %1256 = vmatprep.subr.bf16.mxu0 0
        %1257 = vmatpush1.bf16.xpose.msra.mxu0 0
        %1258 = vmatprep.subr.bf16.mxu0 0
        %1259 = vmatpush1.bf16.xpose.msra.mxu0 0
        %1260 = vmatprep.mubr.bf16.mxu0 0
        %1261 = vmatmul.mubr.bf16.gmra.mrb[0].mxu0 %v1223
        %v1262 = vpop.f32.mrb[0].mxu0
        %v1263 = vadd.f32 %v1174, %v1262
        %v1264 = vpop.f32.mrb[0].mxu0
        %v1265 = vpop.f32.mrb[0].mxu0
        %v1266 = vpop.f32.mrb[0].mxu0
        %1267 = vdwg.mxu0
        %v1269 = vsel %vm1175, %v1162, 0
        %v1272 = vsel %vm1175, %v1167, 0
        %1274 = vmatprep.subr.bf16.mxu0 0
        %1275 = vmatpush1.bf16.xpose.msra.mxu0 %v1272
        %1276 = vmatprep.subr.bf16.mxu0 0
        %1277 = vmatpush1.bf16.xpose.msra.mxu0 0
        %1278 = vmatprep.subr.bf16.mxu0 0
        %1279 = vmatpush1.bf16.xpose.msra.mxu0 0
        %1280 = vmatprep.subr.bf16.mxu0 0
        %1281 = vmatpush1.bf16.xpose.msra.mxu0 0
        %1282 = vmatprep.subr.bf16.mxu0 0
        %1283 = vmatpush1.bf16.xpose.msra.mxu0 0
        %1284 = vmatprep.subr.bf16.mxu0 0
        %1285 = vmatpush1.bf16.xpose.msra.mxu0 0
        %1286 = vmatprep.subr.bf16.mxu0 0
        %1287 = vmatpush1.bf16.xpose.msra.mxu0 0
        %1288 = vmatprep.subr.bf16.mxu0 0
        %1289 = vmatpush1.bf16.xpose.msra.mxu0 0
        %1290 = vmatprep.subr.bf16.mxu0 0
        %1291 = vmatpush1.bf16.xpose.msra.mxu0 0
        %1292 = vmatprep.subr.bf16.mxu0 0
        %1293 = vmatpush1.bf16.xpose.msra.mxu0 0
        %1294 = vmatprep.subr.bf16.mxu0 0
        %1295 = vmatpush1.bf16.xpose.msra.mxu0 0
        %1296 = vmatprep.subr.bf16.mxu0 0
        %1297 = vmatpush1.bf16.xpose.msra.mxu0 0
        %1298 = vmatprep.subr.bf16.mxu0 0
        %1299 = vmatpush1.bf16.xpose.msra.mxu0 0
        %1300 = vmatprep.subr.bf16.mxu0 0
        %1301 = vmatpush1.bf16.xpose.msra.mxu0 0
        %1302 = vmatprep.subr.bf16.mxu0 0
        %1303 = vmatpush1.bf16.xpose.msra.mxu0 0
        %1304 = vmatprep.subr.bf16.mxu0 0
        %1305 = vmatpush1.bf16.xpose.msra.mxu0 0
        %1306 = vmatprep.mubr.bf16.mxu0 0
        %1307 = vmatmul.mubr.bf16.gmra.mrb[0].mxu0 %v1269
        %v1308 = vpop.f32.mrb[0].mxu0
        %v1309 = vadd.f32 %v1174, %v1308
        %v1310 = vpop.f32.mrb[0].mxu0
        %v1311 = vpop.f32.mrb[0].mxu0
        %v1312 = vpop.f32.mrb[0].mxu0
        %1313 = vdwg.mxu0
        %v1315 = vsel %vm1175, %v1163, 0
        %v1318 = vsel %vm1175, %v1168, 0
        %1320 = vmatprep.subr.bf16.mxu0 0
        %1321 = vmatpush1.bf16.xpose.msra.mxu0 %v1318
        %1322 = vmatprep.subr.bf16.mxu0 0
        %1323 = vmatpush1.bf16.xpose.msra.mxu0 0
        %1324 = vmatprep.subr.bf16.mxu0 0
        %1325 = vmatpush1.bf16.xpose.msra.mxu0 0
        %1326 = vmatprep.subr.bf16.mxu0 0
        %1327 = vmatpush1.bf16.xpose.msra.mxu0 0
        %1328 = vmatprep.subr.bf16.mxu0 0
        %1329 = vmatpush1.bf16.xpose.msra.mxu0 0
        %1330 = vmatprep.subr.bf16.mxu0 0
        %1331 = vmatpush1.bf16.xpose.msra.mxu0 0
        %1332 = vmatprep.subr.bf16.mxu0 0
        %1333 = vmatpush1.bf16.xpose.msra.mxu0 0
        %1334 = vmatprep.subr.bf16.mxu0 0
        %1335 = vmatpush1.bf16.xpose.msra.mxu0 0
        %1336 = vmatprep.subr.bf16.mxu0 0
        %1337 = vmatpush1.bf16.xpose.msra.mxu0 0
        %1338 = vmatprep.subr.bf16.mxu0 0
        %1339 = vmatpush1.bf16.xpose.msra.mxu0 0
        %1340 = vmatprep.subr.bf16.mxu0 0
        %1341 = vmatpush1.bf16.xpose.msra.mxu0 0
        %1342 = vmatprep.subr.bf16.mxu0 0
        %1343 = vmatpush1.bf16.xpose.msra.mxu0 0
        %1344 = vmatprep.subr.bf16.mxu0 0
        %1345 = vmatpush1.bf16.xpose.msra.mxu0 0
        %1346 = vmatprep.subr.bf16.mxu0 0
        %1347 = vmatpush1.bf16.xpose.msra.mxu0 0
        %1348 = vmatprep.subr.bf16.mxu0 0
        %1349 = vmatpush1.bf16.xpose.msra.mxu0 0
        %1350 = vmatprep.subr.bf16.mxu0 0
        %1351 = vmatpush1.bf16.xpose.msra.mxu0 0
        %1352 = vmatprep.mubr.bf16.mxu0 0
        %1353 = vmatmul.mubr.bf16.gmra.mrb[0].mxu0 %v1315
        %v1354 = vpop.f32.mrb[0].mxu0
        %v1355 = vadd.f32 %v1174, %v1354
        %v1356 = vpop.f32.mrb[0].mxu0
        %v1357 = vpop.f32.mrb[0].mxu0
        %v1358 = vpop.f32.mrb[0].mxu0
        %1359 = vdwg.mxu0
        %v1360 = vsel %vm1175, %v1217, -inf
        %1361 = vmax.xlane.f32.xlu0 %v1360
        %v1362 = vpop.xlane.xlu0 %1361
        %v1363 = vsel %vm1175, %v1263, -inf
        %1364 = vmax.xlane.f32.xlu0 %v1363
        %v1365 = vpop.xlane.xlu0 %1364
        %v1366 = vsel %vm1175, %v1309, -inf
        %1367 = vmax.xlane.f32.xlu0 %v1366
        %v1368 = vpop.xlane.xlu0 %1367
        %v1369 = vsel %vm1175, %v1355, -inf
        %1370 = vmax.xlane.f32.xlu0 %v1369
        %v1371 = vpop.xlane.xlu0 %1370
        %v1372 = vsub.f32 %v1217, %v1362
        %v1373 = vsub.f32 %v1263, %v1365
        %v1374 = vsub.f32 %v1309, %v1368
        %v1375 = vsub.f32 %v1355, %v1371
        %v1376 = vmul.f32 %v1372, 1.442695
        %v1377 = vpow.pop %v1376
        %v1378 = vmul.f32 %v1373, 1.442695
        %v1379 = vpow.pop %v1378
        %v1380 = vmul.f32 %v1374, 1.442695
        %v1381 = vpow.pop %v1380
        %v1382 = vmul.f32 %v1375, 1.442695
        %v1383 = vpow.pop %v1382
        %v1384 = vsel %vm1175, %v1377, 0.0
        %1385 = vadd.xlane.f32.xlu0 %v1384
        %v1386 = vpop.xlane.xlu0 %1385
        %v1387 = vsel %vm1175, %v1379, 0.0
        %1388 = vadd.xlane.f32.xlu0 %v1387
        %v1389 = vpop.xlane.xlu0 %1388
        %v1390 = vsel %vm1175, %v1381, 0.0
        %1391 = vadd.xlane.f32.xlu0 %v1390
        %v1392 = vpop.xlane.xlu0 %1391
        %v1393 = vsel %vm1175, %v1383, 0.0
        %1394 = vadd.xlane.f32.xlu0 %v1393
        %v1395 = vpop.xlane.xlu0 %1394
        %v1396 = vrcp.pop %v1386
        %v1397 = vrcp.pop %v1389
        %v1398 = vrcp.pop %v1392
        %v1399 = vrcp.pop %v1395
        %v1400 = vmul.f32 %v1377, %v1396
        %v1401 = vmul.f32 %v1379, %v1397
        %v1402 = vmul.f32 %v1381, %v1398
        %v1403 = vmul.f32 %v1383, %v1399
        %v1404 = vpack.c.bf16 %v1400, %v1400
        %v1405 = vpack.c.bf16 %v1401, %v1401
        %v1406 = vpack.c.bf16 %v1402, %v1402
        %v1407 = vpack.c.bf16 %v1403, %v1403
        %v1409 = vsel %vm1175, %v1404, 0
        %vm1411 = vcmask 1043456
        %v1413 = vsel %vm1411, %v1170, 0
        %1415 = vmatprep.subr.bf16.mxu0 0
        %1416 = vmatpush1.bf16.msra.mxu0 %v1413
        %1417 = vmatprep.subr.bf16.mxu0 0
        %1418 = vmatpush1.bf16.msra.mxu0 0
        %1419 = vmatprep.subr.bf16.mxu0 0
        %1420 = vmatpush1.bf16.msra.mxu0 0
        %1421 = vmatprep.subr.bf16.mxu0 0
        %1422 = vmatpush1.bf16.msra.mxu0 0
        %1423 = vmatprep.subr.bf16.mxu0 0
        %1424 = vmatpush1.bf16.msra.mxu0 0
        %1425 = vmatprep.subr.bf16.mxu0 0
        %1426 = vmatpush1.bf16.msra.mxu0 0
        %1427 = vmatprep.subr.bf16.mxu0 0
        %1428 = vmatpush1.bf16.msra.mxu0 0
        %1429 = vmatprep.subr.bf16.mxu0 0
        %1430 = vmatpush1.bf16.msra.mxu0 0
        %1431 = vmatprep.subr.bf16.mxu0 0
        %1432 = vmatpush1.bf16.msra.mxu0 0
        %1433 = vmatprep.subr.bf16.mxu0 0
        %1434 = vmatpush1.bf16.msra.mxu0 0
        %1435 = vmatprep.subr.bf16.mxu0 0
        %1436 = vmatpush1.bf16.msra.mxu0 0
        %1437 = vmatprep.subr.bf16.mxu0 0
        %1438 = vmatpush1.bf16.msra.mxu0 0
        %1439 = vmatprep.subr.bf16.mxu0 0
        %1440 = vmatpush1.bf16.msra.mxu0 0
        %1441 = vmatprep.subr.bf16.mxu0 0
        %1442 = vmatpush1.bf16.msra.mxu0 0
        %1443 = vmatprep.subr.bf16.mxu0 0
        %1444 = vmatpush1.bf16.msra.mxu0 0
        %1445 = vmatprep.subr.bf16.mxu0 0
        %1446 = vmatpush1.bf16.msra.mxu0 0
        %1447 = vmatprep.mubr.bf16.mxu0 0
        %1448 = vmatmul.mubr.bf16.gmra.mrb[0].mxu0 %v1409
        %v1449 = vpop.f32.mrb[0].mxu0
        %v1450 = vadd.f32 0.0, %v1449
        %v1451 = vpop.f32.mrb[0].mxu0
        %v1452 = vpop.f32.mrb[0].mxu0
        %v1453 = vpop.f32.mrb[0].mxu0
        %1454 = vdwg.mxu0
        %v1456 = vsel %vm1175, %v1405, 0
        %v1459 = vsel %vm1411, %v1171, 0
        %1461 = vmatprep.subr.bf16.mxu0 0
        %1462 = vmatpush1.bf16.msra.mxu0 %v1459
        %1463 = vmatprep.subr.bf16.mxu0 0
        %1464 = vmatpush1.bf16.msra.mxu0 0
        %1465 = vmatprep.subr.bf16.mxu0 0
        %1466 = vmatpush1.bf16.msra.mxu0 0
        %1467 = vmatprep.subr.bf16.mxu0 0
        %1468 = vmatpush1.bf16.msra.mxu0 0
        %1469 = vmatprep.subr.bf16.mxu0 0
        %1470 = vmatpush1.bf16.msra.mxu0 0
        %1471 = vmatprep.subr.bf16.mxu0 0
        %1472 = vmatpush1.bf16.msra.mxu0 0
        %1473 = vmatprep.subr.bf16.mxu0 0
        %1474 = vmatpush1.bf16.msra.mxu0 0
        %1475 = vmatprep.subr.bf16.mxu0 0
        %1476 = vmatpush1.bf16.msra.mxu0 0
        %1477 = vmatprep.subr.bf16.mxu0 0
        %1478 = vmatpush1.bf16.msra.mxu0 0
        %1479 = vmatprep.subr.bf16.mxu0 0
        %1480 = vmatpush1.bf16.msra.mxu0 0
        %1481 = vmatprep.subr.bf16.mxu0 0
        %1482 = vmatpush1.bf16.msra.mxu0 0
        %1483 = vmatprep.subr.bf16.mxu0 0
        %1484 = vmatpush1.bf16.msra.mxu0 0
        %1485 = vmatprep.subr.bf16.mxu0 0
        %1486 = vmatpush1.bf16.msra.mxu0 0
        %1487 = vmatprep.subr.bf16.mxu0 0
        %1488 = vmatpush1.bf16.msra.mxu0 0
        %1489 = vmatprep.subr.bf16.mxu0 0
        %1490 = vmatpush1.bf16.msra.mxu0 0
        %1491 = vmatprep.subr.bf16.mxu0 0
        %1492 = vmatpush1.bf16.msra.mxu0 0
        %1493 = vmatprep.mubr.bf16.mxu0 0
        %1494 = vmatmul.mubr.bf16.gmra.mrb[0].mxu0 %v1456
        %v1495 = vpop.f32.mrb[0].mxu0
        %v1496 = vadd.f32 0.0, %v1495
        %v1497 = vpop.f32.mrb[0].mxu0
        %v1498 = vpop.f32.mrb[0].mxu0
        %v1499 = vpop.f32.mrb[0].mxu0
        %1500 = vdwg.mxu0
        %v1502 = vsel %vm1175, %v1406, 0
        %v1505 = vsel %vm1411, %v1172, 0
        %1507 = vmatprep.subr.bf16.mxu0 0
        %1508 = vmatpush1.bf16.msra.mxu0 %v1505
        %1509 = vmatprep.subr.bf16.mxu0 0
        %1510 = vmatpush1.bf16.msra.mxu0 0
        %1511 = vmatprep.subr.bf16.mxu0 0
        %1512 = vmatpush1.bf16.msra.mxu0 0
        %1513 = vmatprep.subr.bf16.mxu0 0
        %1514 = vmatpush1.bf16.msra.mxu0 0
        %1515 = vmatprep.subr.bf16.mxu0 0
        %1516 = vmatpush1.bf16.msra.mxu0 0
        %1517 = vmatprep.subr.bf16.mxu0 0
        %1518 = vmatpush1.bf16.msra.mxu0 0
        %1519 = vmatprep.subr.bf16.mxu0 0
        %1520 = vmatpush1.bf16.msra.mxu0 0
        %1521 = vmatprep.subr.bf16.mxu0 0
        %1522 = vmatpush1.bf16.msra.mxu0 0
        %1523 = vmatprep.subr.bf16.mxu0 0
        %1524 = vmatpush1.bf16.msra.mxu0 0
        %1525 = vmatprep.subr.bf16.mxu0 0
        %1526 = vmatpush1.bf16.msra.mxu0 0
        %1527 = vmatprep.subr.bf16.mxu0 0
        %1528 = vmatpush1.bf16.msra.mxu0 0
        %1529 = vmatprep.subr.bf16.mxu0 0
        %1530 = vmatpush1.bf16.msra.mxu0 0
        %1531 = vmatprep.subr.bf16.mxu0 0
        %1532 = vmatpush1.bf16.msra.mxu0 0
        %1533 = vmatprep.subr.bf16.mxu0 0
        %1534 = vmatpush1.bf16.msra.mxu0 0
        %1535 = vmatprep.subr.bf16.mxu0 0
        %1536 = vmatpush1.bf16.msra.mxu0 0
        %1537 = vmatprep.subr.bf16.mxu0 0
        %1538 = vmatpush1.bf16.msra.mxu0 0
        %1539 = vmatprep.mubr.bf16.mxu0 0
        %1540 = vmatmul.mubr.bf16.gmra.mrb[0].mxu0 %v1502
        %v1541 = vpop.f32.mrb[0].mxu0
        %v1542 = vadd.f32 0.0, %v1541
        %v1543 = vpop.f32.mrb[0].mxu0
        %v1544 = vpop.f32.mrb[0].mxu0
        %v1545 = vpop.f32.mrb[0].mxu0
        %1546 = vdwg.mxu0
        %v1548 = vsel %vm1175, %v1407, 0
        %v1551 = vsel %vm1411, %v1173, 0
        %1553 = vmatprep.subr.bf16.mxu0 0
        %1554 = vmatpush1.bf16.msra.mxu0 %v1551
        %1555 = vmatprep.subr.bf16.mxu0 0
        %1556 = vmatpush1.bf16.msra.mxu0 0
        %1557 = vmatprep.subr.bf16.mxu0 0
        %1558 = vmatpush1.bf16.msra.mxu0 0
        %1559 = vmatprep.subr.bf16.mxu0 0
        %1560 = vmatpush1.bf16.msra.mxu0 0
        %1561 = vmatprep.subr.bf16.mxu0 0
        %1562 = vmatpush1.bf16.msra.mxu0 0
        %1563 = vmatprep.subr.bf16.mxu0 0
        %1564 = vmatpush1.bf16.msra.mxu0 0
        %1565 = vmatprep.subr.bf16.mxu0 0
        %1566 = vmatpush1.bf16.msra.mxu0 0
        %1567 = vmatprep.subr.bf16.mxu0 0
        %1568 = vmatpush1.bf16.msra.mxu0 0
        %1569 = vmatprep.subr.bf16.mxu0 0
        %1570 = vmatpush1.bf16.msra.mxu0 0
        %1571 = vmatprep.subr.bf16.mxu0 0
        %1572 = vmatpush1.bf16.msra.mxu0 0
        %1573 = vmatprep.subr.bf16.mxu0 0
        %1574 = vmatpush1.bf16.msra.mxu0 0
        %1575 = vmatprep.subr.bf16.mxu0 0
        %1576 = vmatpush1.bf16.msra.mxu0 0
        %1577 = vmatprep.subr.bf16.mxu0 0
        %1578 = vmatpush1.bf16.msra.mxu0 0
        %1579 = vmatprep.subr.bf16.mxu0 0
        %1580 = vmatpush1.bf16.msra.mxu0 0
        %1581 = vmatprep.subr.bf16.mxu0 0
        %1582 = vmatpush1.bf16.msra.mxu0 0
        %1583 = vmatprep.subr.bf16.mxu0 0
        %1584 = vmatpush1.bf16.msra.mxu0 0
        %1585 = vmatprep.mubr.bf16.mxu0 0
        %1586 = vmatmul.mubr.bf16.gmra.mrb[0].mxu0 %v1548
        %v1587 = vpop.f32.mrb[0].mxu0
        %v1588 = vadd.f32 0.0, %v1587
        %v1589 = vpop.f32.mrb[0].mxu0
        %v1590 = vpop.f32.mrb[0].mxu0
        %v1591 = vpop.f32.mrb[0].mxu0
        %1592 = vdwg.mxu0
        %v1593 = vcombine.low %v1450, %v1542
        %v1594 = vcombine.high %v1450, %v1542
        %v1596 = vunpack.c.l.s4 1983009808
        %v1597 = vunpack.c.0.s8 %v1596
        %v1598 = vlaneseq
        %v1599 = vshrl.u32 %v1598, 7
        %v1600 = vsub.s32 %v1597, %v1599
        %v1601 = vrot.slane %v1593, %v1600
        %v1603 = vunpack.c.l.s4 1983009808
        %v1604 = vunpack.c.0.s8 %v1603
        %v1605 = vlaneseq
        %v1606 = vshrl.u32 %v1605, 7
        %v1607 = vsub.s32 %v1604, %v1606
        %v1608 = vrot.slane %v1594, %v1607
        %v1609 = vcombine.low %v1496, %v1588
        %v1610 = vcombine.high %v1496, %v1588
        %v1612 = vunpack.c.l.s4 1983009808
        %v1613 = vunpack.c.0.s8 %v1612
        %v1614 = vlaneseq
        %v1615 = vshrl.u32 %v1614, 7
        %v1616 = vsub.s32 %v1613, %v1615
        %v1617 = vrot.slane %v1609, %v1616
        %v1619 = vunpack.c.l.s4 1983009808
        %v1620 = vunpack.c.0.s8 %v1619
        %v1621 = vlaneseq
        %v1622 = vshrl.u32 %v1621, 7
        %v1623 = vsub.s32 %v1620, %v1622
        %v1624 = vrot.slane %v1610, %v1623
        %v1625 = vcombine.low %v1601, %v1617
        %v1626 = vcombine.high %v1601, %v1617
        %v1628 = vunpack.c.l.s4 1934713408
        %v1629 = vunpack.c.0.s8 %v1628
        %v1630 = vlaneseq
        %v1631 = vshrl.u32 %v1630, 7
        %v1632 = vsub.s32 %v1629, %v1631
        %v1633 = vrot.slane %v1625, %v1632
        %v1635 = vunpack.c.l.s4 1934713408
        %v1636 = vunpack.c.0.s8 %v1635
        %v1637 = vlaneseq
        %v1638 = vshrl.u32 %v1637, 7
        %v1639 = vsub.s32 %v1636, %v1638
        %v1640 = vrot.slane %v1626, %v1639
        %v1641 = vcombine.low %v1608, %v1624
        %v1642 = vcombine.high %v1608, %v1624
        %v1644 = vunpack.c.l.s4 1934713408
        %v1645 = vunpack.c.0.s8 %v1644
        %v1646 = vlaneseq
        %v1647 = vshrl.u32 %v1646, 7
        %v1648 = vsub.s32 %v1645, %v1647
        %v1649 = vrot.slane %v1641, %v1648
        %v1651 = vunpack.c.l.s4 1934713408
        %v1652 = vunpack.c.0.s8 %v1651
        %v1653 = vlaneseq
        %v1654 = vshrl.u32 %v1653, 7
        %v1655 = vsub.s32 %v1652, %v1654
        %v1656 = vrot.slane %v1642, %v1655
        %v1657 = vcombine.high %v1633, 0.0
        %v1658 = vcombine.high %v1640, 0.0
        %v1659 = vcombine.high %v1649, 0.0
        %v1660 = vcombine.high %v1656, 0.0
        %v1661 = vcombine.low %v1633, %v1640
        %v1663 = vunpack.c.l.s4 1983009808
        %v1664 = vunpack.c.0.s8 %v1663
        %v1665 = vlaneseq
        %v1666 = vshrl.u32 %v1665, 7
        %v1667 = vsub.s32 %v1664, %v1666
        %v1668 = vrot.slane %v1661, %v1667
        %v1669 = vcombine.low %v1657, %v1658
        %v1671 = vunpack.c.l.s4 1983009808
        %v1672 = vunpack.c.0.s8 %v1671
        %v1673 = vlaneseq
        %v1674 = vshrl.u32 %v1673, 7
        %v1675 = vsub.s32 %v1672, %v1674
        %v1676 = vrot.slane %v1669, %v1675
        %v1677 = vcombine.low %v1649, %v1656
        %v1679 = vunpack.c.l.s4 1983009808
        %v1680 = vunpack.c.0.s8 %v1679
        %v1681 = vlaneseq
        %v1682 = vshrl.u32 %v1681, 7
        %v1683 = vsub.s32 %v1680, %v1682
        %v1684 = vrot.slane %v1677, %v1683
        %v1685 = vcombine.low %v1659, %v1660
        %v1687 = vunpack.c.l.s4 1983009808
        %v1688 = vunpack.c.0.s8 %v1687
        %v1689 = vlaneseq
        %v1690 = vshrl.u32 %v1689, 7
        %v1691 = vsub.s32 %v1688, %v1690
        %v1692 = vrot.slane %v1685, %v1691
        %v1693 = vcombine.low %v1668, %v1676
        %v1694 = vcombine.high %v1668, %v1676
        %v1696 = vunpack.c.l.s4 1934713408
        %v1697 = vunpack.c.0.s8 %v1696
        %v1698 = vlaneseq
        %v1699 = vshrl.u32 %v1698, 7
        %v1700 = vsub.s32 %v1697, %v1699
        %v1701 = vrot.slane %v1693, %v1700
        %v1703 = vunpack.c.l.s4 1934713408
        %v1704 = vunpack.c.0.s8 %v1703
        %v1705 = vlaneseq
        %v1706 = vshrl.u32 %v1705, 7
        %v1707 = vsub.s32 %v1704, %v1706
        %v1708 = vrot.slane %v1694, %v1707
        %v1709 = vcombine.low %v1684, %v1692
        %v1710 = vcombine.high %v1684, %v1692
        %v1712 = vunpack.c.l.s4 1934713408
        %v1713 = vunpack.c.0.s8 %v1712
        %v1714 = vlaneseq
        %v1715 = vshrl.u32 %v1714, 7
        %v1716 = vsub.s32 %v1713, %v1715
        %v1717 = vrot.slane %v1709, %v1716
        %v1719 = vunpack.c.l.s4 1934713408
        %v1720 = vunpack.c.0.s8 %v1719
        %v1721 = vlaneseq
        %v1722 = vshrl.u32 %v1721, 7
        %v1723 = vsub.s32 %v1720, %v1722
        %v1724 = vrot.slane %v1710, %v1723
        %v1725 = vcombine.low %v1701, %v1717
        %v1726 = vcombine.high %v1701, %v1717
        %v1727 = vcombine.low %v1708, %v1724
        %v1728 = vcombine.high %v1708, %v1724
        %1730 = vrot.lane.b32.xlu0 %v1726, 8
        %v1731 = vpop.permute.xlu0 %1730
        %1734 = vrot.lane.b32.xlu0 %v1727, 16
        %v1735 = vpop.permute.xlu0 %1734
        %1738 = vrot.lane.b32.xlu0 %v1728, 24
        %v1739 = vpop.permute.xlu0 %1738
        %v1741 = vsel %vm1175, %v1725, %v1731
        %vm1742 = vcmask 130048
        %v1743 = vsel %vm1742, %v1741, %v1735
        %vm1744 = vcmask 195584
        %v1745 = vsel %vm1744, %v1743, %v1739
        %v1746 = vpack.c.bf16 %v1745, %v1745
        %v1747 = vld [vmem:[%s4] sm:$0xf]
        %v1748 = vld [vmem:[%s4 + $0x4] sm:$0xf]
        %v1749 = vld [vmem:[%s4 + $0x8] sm:$0xf]
        %v1750 = vld [vmem:[%s4 + $0xc] sm:$0xf]
        %v1751 = vld [vmem:[%s5] sm:$0x1]
        %v1753 = vlaneseq
        %v1754 = vshrl.u32 %v1753, 7
        %v1755 = vsub.s32 0, %v1754
        %v1756 = vrot.slane %v1751, %v1755
        %v1762 = vunpack.c.l.b16 %v1747
        %v1763 = vunpack.c.l.b16 %v1748
        %v1764 = vunpack.c.l.b16 %v1749
        %v1765 = vunpack.c.l.b16 %v1750
        %v1766 = vpack.c.b16 %v1763, %v1762
        %v1767 = vpack.c.b16 %v1765, %v1764
        %vm1770 = vcmask 261120
        %v1772 = vsel %vm1770, %v1746, 0
        %1774 = vmatprep.subr.bf16.mxu0 0
        %1775 = vmatpush1.bf16.msra.mxu0 %v1766
        %1776 = vmatprep.subr.bf16.mxu0 0
        %1777 = vmatpush1.bf16.msra.mxu0 %v1767
        %1778 = vmatprep.subr.bf16.mxu0 0
        %1779 = vmatpush1.bf16.msra.mxu0 0
        %1780 = vmatprep.subr.bf16.mxu0 0
        %1781 = vmatpush1.bf16.msra.mxu0 0
        %1782 = vmatprep.subr.bf16.mxu0 0
        %1783 = vmatpush1.bf16.msra.mxu0 0
        %1784 = vmatprep.subr.bf16.mxu0 0
        %1785 = vmatpush1.bf16.msra.mxu0 0
        %1786 = vmatprep.subr.bf16.mxu0 0
        %1787 = vmatpush1.bf16.msra.mxu0 0
        %1788 = vmatprep.subr.bf16.mxu0 0
        %1789 = vmatpush1.bf16.msra.mxu0 0
        %1790 = vmatprep.subr.bf16.mxu0 0
        %1791 = vmatpush1.bf16.msra.mxu0 0
        %1792 = vmatprep.subr.bf16.mxu0 0
        %1793 = vmatpush1.bf16.msra.mxu0 0
        %1794 = vmatprep.subr.bf16.mxu0 0
        %1795 = vmatpush1.bf16.msra.mxu0 0
        %1796 = vmatprep.subr.bf16.mxu0 0
        %1797 = vmatpush1.bf16.msra.mxu0 0
        %1798 = vmatprep.subr.bf16.mxu0 0
        %1799 = vmatpush1.bf16.msra.mxu0 0
        %1800 = vmatprep.subr.bf16.mxu0 0
        %1801 = vmatpush1.bf16.msra.mxu0 0
        %1802 = vmatprep.subr.bf16.mxu0 0
        %1803 = vmatpush1.bf16.msra.mxu0 0
        %1804 = vmatprep.subr.bf16.mxu0 0
        %1805 = vmatpush1.bf16.msra.mxu0 0
        %1806 = vmatprep.mubr.bf16.mxu0 0
        %1807 = vmatmul.mubr.bf16.gmra.mrb[0].mxu0 %v1772
        %v1808 = vpop.f32.mrb[0].mxu0
        %v1809 = vadd.f32 %v1756, %v1808
        %v1810 = vpop.f32.mrb[0].mxu0
        %v1811 = vpop.f32.mrb[0].mxu0
        %v1812 = vpop.f32.mrb[0].mxu0
        %1813 = vdwg.mxu0
        %v1814 = vadd.f32 %v1155, %v1809
        %v1815 = vld [vmem:[%s8] sm:$0x1]
        %v1816 = vld [vmem:[%s9] sm:$0x1]
        %v1817 = vsel %vm1770, %v1814, 0.0
        %1818 = vadd.xlane.f32.xlu0 %v1817
        %v1819 = vpop.xlane.xlu0 %1818
        %v1820 = vrcp.pop 32.0
        %v1821 = vmul.f32 %v1819, %v1820
        %v1822 = vsub.f32 %v1814, %v1821
        %v1823 = vmul.f32 %v1822, %v1822
        %v1824 = vsel %vm1770, %v1823, 0.0
        %1825 = vadd.xlane.f32.xlu0 %v1824
        %v1826 = vpop.xlane.xlu0 %1825
        %v1827 = vrcp.pop 31.0
        %v1828 = vmul.f32 %v1826, %v1827
        %v1829 = vrsqrt.pop %v1828
        %v1830 = vmul.f32 %v1828, %v1829
        %vm1831 = vcmp.eq.f32.partialorder %v1828, inf
        %v1832 = vsel %vm1831, %v1828, %v1830
        %vm1833 = vcmp.eq.f32.partialorder %v1828, 0.0
        %v1834 = vand.u32 %v1828, 2147483648
        %v1835 = vsel %vm1833, %v1834, %v1832
        %v1837 = vlaneseq
        %v1838 = vshrl.u32 %v1837, 7
        %v1839 = vsub.s32 0, %v1838
        %v1840 = vrot.slane %v1815, %v1839
        %v1842 = vmul.f32 %v1840, %v1822
        %v1843 = vadd.f32 %v1835, 1e-06
        %v1844 = vrcp.pop %v1843
        %v1845 = vmul.f32 %v1842, %v1844
        %v1847 = vlaneseq
        %v1848 = vshrl.u32 %v1847, 7
        %v1849 = vsub.s32 0, %v1848
        %v1850 = vrot.slane %v1816, %v1849
        %v1852 = vadd.f32 %v1845, %v1850
        %v1853 = vpack.c.bf16 %v1852, %v1852
        %v1854 = vld [vmem:[%s10] sm:$0xf]
        %v1855 = vld [vmem:[%s10 + $0x4] sm:$0xf]
        %v1856 = vld [vmem:[%s10 + $0x8] sm:$0xf]
        %v1857 = vld [vmem:[%s10 + $0xc] sm:$0xf]
        %v1858 = vld [vmem:[%s11] sm:$0x1]
        %v1860 = vlaneseq
        %v1861 = vshrl.u32 %v1860, 7
        %v1862 = vsub.s32 0, %v1861
        %v1863 = vrot.slane %v1858, %v1862
        %v1869 = vunpack.c.l.b16 %v1854
        %v1870 = vunpack.c.l.b16 %v1855
        %v1871 = vunpack.c.l.b16 %v1856
        %v1872 = vunpack.c.l.b16 %v1857
        %v1873 = vpack.c.b16 %v1870, %v1869
        %v1874 = vpack.c.b16 %v1872, %v1871
        %v1878 = vsel %vm1770, %v1853, 0
        %1880 = vmatprep.subr.bf16.mxu0 0
        %1881 = vmatpush1.bf16.msra.mxu0 %v1873
        %1882 = vmatprep.subr.bf16.mxu0 0
        %1883 = vmatpush1.bf16.msra.mxu0 %v1874
        %1884 = vmatprep.subr.bf16.mxu0 0
        %1885 = vmatpush1.bf16.msra.mxu0 0
        %1886 = vmatprep.subr.bf16.mxu0 0
        %1887 = vmatpush1.bf16.msra.mxu0 0
        %1888 = vmatprep.subr.bf16.mxu0 0
        %1889 = vmatpush1.bf16.msra.mxu0 0
        %1890 = vmatprep.subr.bf16.mxu0 0
        %1891 = vmatpush1.bf16.msra.mxu0 0
        %1892 = vmatprep.subr.bf16.mxu0 0
        %1893 = vmatpush1.bf16.msra.mxu0 0
        %1894 = vmatprep.subr.bf16.mxu0 0
        %1895 = vmatpush1.bf16.msra.mxu0 0
        %1896 = vmatprep.subr.bf16.mxu0 0
        %1897 = vmatpush1.bf16.msra.mxu0 0
        %1898 = vmatprep.subr.bf16.mxu0 0
        %1899 = vmatpush1.bf16.msra.mxu0 0
        %1900 = vmatprep.subr.bf16.mxu0 0
        %1901 = vmatpush1.bf16.msra.mxu0 0
        %1902 = vmatprep.subr.bf16.mxu0 0
        %1903 = vmatpush1.bf16.msra.mxu0 0
        %1904 = vmatprep.subr.bf16.mxu0 0
        %1905 = vmatpush1.bf16.msra.mxu0 0
        %1906 = vmatprep.subr.bf16.mxu0 0
        %1907 = vmatpush1.bf16.msra.mxu0 0
        %1908 = vmatprep.subr.bf16.mxu0 0
        %1909 = vmatpush1.bf16.msra.mxu0 0
        %1910 = vmatprep.subr.bf16.mxu0 0
        %1911 = vmatpush1.bf16.msra.mxu0 0
        %1912 = vmatprep.mubr.bf16.mxu0 0
        %1913 = vmatmul.mubr.bf16.gmra.mrb[0].mxu0 %v1878
        %v1914 = vpop.f32.mrb[0].mxu0
        %v1915 = vadd.f32 %v1863, %v1914
        %v1916 = vpop.f32.mrb[0].mxu0
        %v1917 = vpop.f32.mrb[0].mxu0
        %v1918 = vpop.f32.mrb[0].mxu0
        %1919 = vdwg.mxu0
        %v1920 = vmul.f32 %v1915, 0.5
        %v1921 = vmul.f32 %v1915, 0.044715
        %v1922 = vmul.f32 %v1921, %v1915
        %v1923 = vmul.f32 %v1922, %v1915
        %v1924 = vadd.f32 %v1915, %v1923
        %v1925 = vmul.f32 %v1924, 0.7978846
        %v1926 = vtanh.pop %v1925
        %v1927 = vadd.f32 %v1926, 1.0
        %v1928 = vmul.f32 %v1920, %v1927
        %v1929 = vpack.c.bf16 %v1928, %v1928
        %v1930 = vld [vmem:[%s12] sm:$0xf]
        %v1931 = vld [vmem:[%s12 + $0x4] sm:$0xf]
        %v1932 = vld [vmem:[%s12 + $0x8] sm:$0xf]
        %v1933 = vld [vmem:[%s12 + $0xc] sm:$0xf]
        %v1934 = vld [vmem:[%s12 + $0x10] sm:$0xf]
        %v1935 = vld [vmem:[%s12 + $0x14] sm:$0xf]
        %v1936 = vld [vmem:[%s12 + $0x18] sm:$0xf]
        %v1937 = vld [vmem:[%s12 + $0x1c] sm:$0xf]
        %v1938 = vld [vmem:[%s12 + $0x20] sm:$0xf]
        %v1939 = vld [vmem:[%s12 + $0x24] sm:$0xf]
        %v1940 = vld [vmem:[%s12 + $0x28] sm:$0xf]
        %v1941 = vld [vmem:[%s12 + $0x2c] sm:$0xf]
        %v1942 = vld [vmem:[%s12 + $0x30] sm:$0xf]
        %v1943 = vld [vmem:[%s12 + $0x34] sm:$0xf]
        %v1944 = vld [vmem:[%s12 + $0x38] sm:$0xf]
        %v1945 = vld [vmem:[%s12 + $0x3c] sm:$0xf]
        %v1946 = vld [vmem:[%s13] sm:$0x1]
        %v1948 = vlaneseq
        %v1949 = vshrl.u32 %v1948, 7
        %v1950 = vsub.s32 0, %v1949
        %v1951 = vrot.slane %v1946, %v1950
        %v1969 = vunpack.c.l.b16 %v1930
        %v1970 = vunpack.c.l.b16 %v1931
        %v1971 = vunpack.c.l.b16 %v1932
        %v1972 = vunpack.c.l.b16 %v1933
        %v1973 = vunpack.c.l.b16 %v1934
        %v1974 = vunpack.c.l.b16 %v1935
        %v1975 = vunpack.c.l.b16 %v1936
        %v1976 = vunpack.c.l.b16 %v1937
        %v1977 = vunpack.c.l.b16 %v1938
        %v1978 = vunpack.c.l.b16 %v1939
        %v1979 = vunpack.c.l.b16 %v1940
        %v1980 = vunpack.c.l.b16 %v1941
        %v1981 = vunpack.c.l.b16 %v1942
        %v1982 = vunpack.c.l.b16 %v1943
        %v1983 = vunpack.c.l.b16 %v1944
        %v1984 = vunpack.c.l.b16 %v1945
        %v1985 = vpack.c.b16 %v1970, %v1969
        %v1986 = vpack.c.b16 %v1972, %v1971
        %v1987 = vpack.c.b16 %v1974, %v1973
        %v1988 = vpack.c.b16 %v1976, %v1975
        %v1989 = vpack.c.b16 %v1978, %v1977
        %v1990 = vpack.c.b16 %v1980, %v1979
        %v1991 = vpack.c.b16 %v1982, %v1981
        %v1992 = vpack.c.b16 %v1984, %v1983
        %2001 = vmatprep.subr.bf16.mxu0 0
        %2002 = vmatpush1.bf16.msra.mxu0 %v1985
        %2003 = vmatprep.subr.bf16.mxu0 0
        %2004 = vmatpush1.bf16.msra.mxu0 %v1986
        %2005 = vmatprep.subr.bf16.mxu0 0
        %2006 = vmatpush1.bf16.msra.mxu0 %v1987
        %2007 = vmatprep.subr.bf16.mxu0 0
        %2008 = vmatpush1.bf16.msra.mxu0 %v1988
        %2009 = vmatprep.subr.bf16.mxu0 0
        %2010 = vmatpush1.bf16.msra.mxu0 %v1989
        %2011 = vmatprep.subr.bf16.mxu0 0
        %2012 = vmatpush1.bf16.msra.mxu0 %v1990
        %2013 = vmatprep.subr.bf16.mxu0 0
        %2014 = vmatpush1.bf16.msra.mxu0 %v1991
        %2015 = vmatprep.subr.bf16.mxu0 0
        %2016 = vmatpush1.bf16.msra.mxu0 %v1992
        %2017 = vmatprep.subr.bf16.mxu0 0
        %2018 = vmatpush1.bf16.msra.mxu0 0
        %2019 = vmatprep.subr.bf16.mxu0 0
        %2020 = vmatpush1.bf16.msra.mxu0 0
        %2021 = vmatprep.subr.bf16.mxu0 0
        %2022 = vmatpush1.bf16.msra.mxu0 0
        %2023 = vmatprep.subr.bf16.mxu0 0
        %2024 = vmatpush1.bf16.msra.mxu0 0
        %2025 = vmatprep.subr.bf16.mxu0 0
        %2026 = vmatpush1.bf16.msra.mxu0 0
        %2027 = vmatprep.subr.bf16.mxu0 0
        %2028 = vmatpush1.bf16.msra.mxu0 0
        %2029 = vmatprep.subr.bf16.mxu0 0
        %2030 = vmatpush1.bf16.msra.mxu0 0
        %2031 = vmatprep.subr.bf16.mxu0 0
        %2032 = vmatpush1.bf16.msra.mxu0 0
        %2033 = vmatprep.mubr.bf16.mxu0 0
        %2034 = vmatmul.mubr.bf16.gmra.mrb[0].mxu0 %v1929
        %v2035 = vpop.f32.mrb[0].mxu0
        %v2036 = vadd.f32 %v1951, %v2035
        %v2037 = vpop.f32.mrb[0].mxu0
        %v2038 = vpop.f32.mrb[0].mxu0
        %v2039 = vpop.f32.mrb[0].mxu0
        %2040 = vdwg.mxu0
        %v2041 = vadd.f32 %v1814, %v2036
        %2042 = vst.msk [vmem:[%s493] sm:$0xff] %vm1770, %v2041
        %s2043 = sand.u32 %s356, 1
        %s2044 = scalar_lea.sflag [#allocation4], %s2043
        %s2045 = sand.u32 %s356, 1
        %s2046 = smul.addr %s2045, 8
        %s2047 = scalar_lea.vmem [#allocation3], %s2046
        // Predicated region
        $region81: #{bert_forward.3} parent=75 // pred_check
          %p2048 = pneg %p366
        $region82: #{bert_forward.3} parent=75 // pred_check_branch
          %2050 = sbr.rel (%p2048) target = $region84
        $region83: #{bert_forward.3} parent=75 // pred_region
          %s2052 = ssub.s32 128, 128
          %2053 = vsyncadd %s2044, %s2052
          %s2054 = sadd.s32 %s33, %s32
          %s2055 = smul.addr %s2054, 128
          %s2056 = scalar_lea.hbm %s14, %s2055
          %s2058 = sshll.u32 %s2047, 4
          %s2059 = int_to_ptr.vmem [resolvable:$true] %s2058
          %2061 = dma.vmem_to_hbm [thread:$0]  %s2059, 128, %s2056, %s2044
        $region84: #{bert_forward.3} parent=75 // pred_fallthru
          _
      $region76: #{bert_forward.3} parent=5 // pred_fallthru
        _
      %p2062 = scmp.le.s32.totalorder 2, %s23
      // Predicated region
      $region85: #{bert_forward.3} parent=5 // pred_check
        %p2063 = pneg %p2062
      $region86: #{bert_forward.3} parent=5 // pred_check_branch
        %2065 = sbr.rel (%p2063) target = $region88
      $region87: #{bert_forward.3} parent=5 // pred_region
        %s2066 = ssub.s32 %s23, 2
        // Predicated region
        $region89: #{bert_forward.3} parent=87 // pred_check
          %p2067 = pneg %p372
        $region90: #{bert_forward.3} parent=87 // pred_check_branch
          %2069 = sbr.rel (%p2067) target = $region92
        $region91: #{bert_forward.3} parent=87 // pred_region
          %s2070 = sand.u32 %s357, 1
          %s2071 = scalar_lea.sflag [#allocation4], %s2070
          %s2072 = sand.u32 %s357, 1
          %s2073 = smul.addr %s2072, 8
          %s2074 = scalar_lea.vmem [#allocation3], %s2073
          %2075 = dma.done %s2071, 128
        $region92: #{bert_forward.3} parent=87 // pred_fallthru
          _
      $region88: #{bert_forward.3} parent=5 // pred_fallthru
        _
    $region6: #{bert_forward.3} parent=1 // loop_footer
      %s27 = sadd.s32 1, %s23
    $region7: #{bert_forward.3} parent=1 // loop_footer_branch
      %22 = sbr.rel target = $region3
    $region8: #{bert_forward.3} parent=1 // loop_exit
      _
    %2076 = vsyncpa [#allocation4], 1
    %s2077 = scalar_lea.sflag [#allocation4], 1
    %2078 = vsyncpa %s2077, 1

// kernel: bert_forward.2
$region0: #{bert_forward.2}
  #allocation0 [shape = 'u32[]', space=smem, size = 0x4, offset = 0x4, fixed_abs, tag = 'smem constant byte address 0x4 - core index']
  #allocation1 [shape = 'u32[144,128]{1,0:T(1,128)}', space=vmem, size = 0x12000, scoped, tag = 'internal scratch']
  #allocation2 [shape = 'bf16[3,4,8,8]{3,2,1,0:T(8,128)(2,1)}', space=vmem, size = 0x6000, scoped, tag = 'scratch operand']
  %s0 = inlined_call_operand.vmem [shape: f32[2,8,32], index: 0, kind: input, shape index: {}]
  %s1 = inlined_call_operand.vmem [shape: f32[2,8,8], index: 1, kind: input, shape index: {}]
  %s2 = inlined_call_operand.vmem [shape: bf16[32,96], index: 2, kind: input, shape index: {}]
  %s3 = inlined_call_operand.vmem [shape: f32[1,96], index: 3, kind: input, shape index: {}]
  %s4 = inlined_call_operand.vmem [shape: bf16[32,32], index: 4, kind: input, shape index: {}]
  %s5 = inlined_call_operand.vmem [shape: f32[1,32], index: 5, kind: input, shape index: {}]
  %s6 = inlined_call_operand.vmem [shape: f32[1,32], index: 6, kind: input, shape index: {}]
  %s7 = inlined_call_operand.vmem [shape: f32[1,32], index: 7, kind: input, shape index: {}]
  %s8 = inlined_call_operand.vmem [shape: f32[1,32], index: 8, kind: input, shape index: {}]
  %s9 = inlined_call_operand.vmem [shape: f32[1,32], index: 9, kind: input, shape index: {}]
  %s10 = inlined_call_operand.vmem [shape: bf16[32,128], index: 10, kind: input, shape index: {}]
  %s11 = inlined_call_operand.hbm [shape: f32[1,128], index: 11, kind: input, shape index: {}]
  %s12 = inlined_call_operand.vmem [shape: bf16[128,32], index: 12, kind: input, shape index: {}]
  %s13 = inlined_call_operand.vmem [shape: f32[1,32], index: 13, kind: input, shape index: {}]
  %s14 = inlined_call_operand.vmem [shape: f32[2,8,32], index: 14, kind: output, shape index: {}]
  %s15 = sld [smem:[#allocation0]]
  $region97: #{bert_forward.2} parent=0
    _
  %s17 = ssub.s32 1, %s15
  %s18 = scalar_select 0, %s17, %s15
  $region1: #{bert_forward.2} parent=0
    #allocation3 [shape = 'u8[512]{0}', space=vmem, size = 0x400, scoped, tag = 'input window, operand 11, single buffered']
    #allocation4 [shape = 's32[2]{0}', space=sflag, size = 0x8, scoped, tag = 'scoped memory for bert_forward.2']
    %19 = vsyncpa [#allocation4], 0
    loop: start=0, step=1, limit=4
    $region2: #{bert_forward.2} parent=1 // loop_pre_header
      _
    $region3: #{bert_forward.2} parent=1 // loop_header
      %s21 = sphi 0, %s25
      %p22 = scmp.ge.s32.totalorder %s21, 4
      %s28 = sphi 0, %s40
      %s29 = sphi 0, %s36
      %s30 = sphi 0, %s28
      %s31 = sphi 0, %s29
      %s32 = sphi 0, %s30
      %s33 = sphi 0, %s31
      %s43 = sphi 0, %s45
      %s46 = sphi 0, %s43
      %s47 = sphi 0, %s46
      %s63 = sphi 0, %s47
      %s71 = sphi 0, %s73
      %s74 = sphi 0, %s71
      %s75 = sphi 0, %s74
      %s91 = sphi 0, %s75
      %s95 = sphi 0, %s95
      %s97 = sphi 0, %s95
      %s98 = sphi 0, %s97
      %s112 = sphi 0, %s98
      %s116 = sphi 0, %s116
      %s118 = sphi 0, %s116
      %s119 = sphi 0, %s118
      %s133 = sphi 0, %s119
      %s137 = sphi 0, %s137
      %s139 = sphi 0, %s137
      %s140 = sphi 0, %s139
      %s154 = sphi 0, %s140
      %s158 = sphi 0, %s158
      %s160 = sphi 0, %s158
      %s161 = sphi 0, %s160
      %s175 = sphi 0, %s161
      %s179 = sphi 0, %s179
      %s181 = sphi 0, %s179
      %s182 = sphi 0, %s181
      %s196 = sphi 0, %s182
      %s200 = sphi 0, %s200
      %s202 = sphi 0, %s200
      %s203 = sphi 0, %s202
      %s217 = sphi 0, %s203
      %s221 = sphi 0, %s221
      %s223 = sphi 0, %s221
      %s224 = sphi 0, %s223
      %s238 = sphi 0, %s224
      %s242 = sphi 0, %s242
      %s244 = sphi 0, %s242
      %s245 = sphi 0, %s244
      %s259 = sphi 0, %s245
      %s263 = sphi 0, %s263
      %s265 = sphi 0, %s263
      %s266 = sphi 0, %s265
      %s280 = sphi 0, %s266
      %s284 = sphi 0, %s284
      %s286 = sphi 0, %s284
      %s287 = sphi 0, %s286
      %s301 = sphi 0, %s287
      %s305 = sphi 0, %s305
      %s307 = sphi 0, %s305
      %s308 = sphi 0, %s307
      %s322 = sphi 0, %s308
      %s326 = sphi 0, %s326
      %s328 = sphi 0, %s326
      %s329 = sphi 0, %s328
      %s343 = sphi 0, %s329
      %s351 = sphi 0, %s353
      %s354 = sphi 0, %s351
      %s355 = sphi 0, %s354
      %s371 = sphi 0, %s355
    $region4: #{bert_forward.2} parent=1 // loop_header_branch
      %24 = sbr.rel (%p22) target = $region8
    $region5: #{bert_forward.2} parent=1 // loop_body
      %s26 = ssub.s32 %s21, 1
      %s27 = ssub.s32 %s21, 2
      %s34 = sadd.s32 1, %s29
      %p35 = scmp.ge.s32.totalorder %s34, 1
      %s36 = scalar_select %p35, 0, %s34
      %s37 = sadd.s32 1, %s28
      %s38 = scalar_select %p35, %s37, %s28
      %p39 = scmp.ge.s32.totalorder %s38, 2
      %s40 = scalar_select %p39, 0, %s38
      %s41 = ssub.s32 %s28, %s40
      %p42 = scmp.eq.s32.totalorder %s41, 0
      %s44 = sadd.s32 %s43, 1
      %s45 = scalar_select %p42, %s43, %s44
      %p48 = pneg %p42
      %p49 = scmp.eq.s32.totalorder %s21, 1
      %p50 = por %p48, %p49
      %p51 = scmp.ne.s32.totalorder %s43, %s46
      %p52 = scmp.eq.s32.totalorder %s21, 0
      %p53 = por %p51, %p52
      %p54 = scmp.ne.s32.totalorder %s43, %s46
      %p55 = scmp.eq.s32.totalorder %s26, 1
      %p56 = por %p54, %p55
      %p57 = scmp.ne.s32.totalorder %s46, %s47
      %p58 = scmp.eq.s32.totalorder %s26, 0
      %p59 = por %p57, %p58
      %p60 = scmp.ne.s32.totalorder %s46, %s47
      %p61 = scmp.eq.s32.totalorder %s27, 1
      %p62 = por %p60, %p61
      %p64 = scmp.ne.s32.totalorder %s47, %s63
      %p65 = scmp.eq.s32.totalorder %s27, 0
      %p66 = por %p64, %p65
      %s67 = ssub.s32 %s28, %s40
      %s68 = ssub.s32 %s29, %s36
      %s69 = sor.u32 %s67, %s68
      %p70 = scmp.eq.s32.totalorder %s69, 0
      %s72 = sadd.s32 %s71, 1
      %s73 = scalar_select %p70, %s71, %s72
      %p76 = pneg %p70
      %p77 = scmp.eq.s32.totalorder %s21, 1
      %p78 = por %p76, %p77
      %p79 = scmp.ne.s32.totalorder %s71, %s74
      %p80 = scmp.eq.s32.totalorder %s21, 0
      %p81 = por %p79, %p80
      %p82 = scmp.ne.s32.totalorder %s71, %s74
      %p83 = scmp.eq.s32.totalorder %s26, 1
      %p84 = por %p82, %p83
      %p85 = scmp.ne.s32.totalorder %s74, %s75
      %p86 = scmp.eq.s32.totalorder %s26, 0
      %p87 = por %p85, %p86
      %p88 = scmp.ne.s32.totalorder %s74, %s75
      %p89 = scmp.eq.s32.totalorder %s27, 1
      %p90 = por %p88, %p89
      %p92 = scmp.ne.s32.totalorder %s75, %s91
      %p93 = scmp.eq.s32.totalorder %s27, 0
      %p94 = por %p92, %p93
      %s96 = sadd.s32 %s95, 1
      %p99 = scmp.eq.s32.totalorder %s21, 1
      %p100 = scmp.ne.s32.totalorder %s95, %s97
      %p101 = scmp.eq.s32.totalorder %s21, 0
      %p102 = por %p100, %p101
      %p103 = scmp.ne.s32.totalorder %s95, %s97
      %p104 = scmp.eq.s32.totalorder %s26, 1
      %p105 = por %p103, %p104
      %p106 = scmp.ne.s32.totalorder %s97, %s98
      %p107 = scmp.eq.s32.totalorder %s26, 0
      %p108 = por %p106, %p107
      %p109 = scmp.ne.s32.totalorder %s97, %s98
      %p110 = scmp.eq.s32.totalorder %s27, 1
      %p111 = por %p109, %p110
      %p113 = scmp.ne.s32.totalorder %s98, %s112
      %p114 = scmp.eq.s32.totalorder %s27, 0
      %p115 = por %p113, %p114
      %s117 = sadd.s32 %s116, 1
      %p120 = scmp.eq.s32.totalorder %s21, 1
      %p121 = scmp.ne.s32.totalorder %s116, %s118
      %p122 = scmp.eq.s32.totalorder %s21, 0
      %p123 = por %p121, %p122
      %p124 = scmp.ne.s32.totalorder %s116, %s118
      %p125 = scmp.eq.s32.totalorder %s26, 1
      %p126 = por %p124, %p125
      %p127 = scmp.ne.s32.totalorder %s118, %s119
      %p128 = scmp.eq.s32.totalorder %s26, 0
      %p129 = por %p127, %p128
      %p130 = scmp.ne.s32.totalorder %s118, %s119
      %p131 = scmp.eq.s32.totalorder %s27, 1
      %p132 = por %p130, %p131
      %p134 = scmp.ne.s32.totalorder %s119, %s133
      %p135 = scmp.eq.s32.totalorder %s27, 0
      %p136 = por %p134, %p135
      %s138 = sadd.s32 %s137, 1
      %p141 = scmp.eq.s32.totalorder %s21, 1
      %p142 = scmp.ne.s32.totalorder %s137, %s139
      %p143 = scmp.eq.s32.totalorder %s21, 0
      %p144 = por %p142, %p143
      %p145 = scmp.ne.s32.totalorder %s137, %s139
      %p146 = scmp.eq.s32.totalorder %s26, 1
      %p147 = por %p145, %p146
      %p148 = scmp.ne.s32.totalorder %s139, %s140
      %p149 = scmp.eq.s32.totalorder %s26, 0
      %p150 = por %p148, %p149
      %p151 = scmp.ne.s32.totalorder %s139, %s140
      %p152 = scmp.eq.s32.totalorder %s27, 1
      %p153 = por %p151, %p152
      %p155 = scmp.ne.s32.totalorder %s140, %s154
      %p156 = scmp.eq.s32.totalorder %s27, 0
      %p157 = por %p155, %p156
      %s159 = sadd.s32 %s158, 1
      %p162 = scmp.eq.s32.totalorder %s21, 1
      %p163 = scmp.ne.s32.totalorder %s158, %s160
      %p164 = scmp.eq.s32.totalorder %s21, 0
      %p165 = por %p163, %p164
      %p166 = scmp.ne.s32.totalorder %s158, %s160
      %p167 = scmp.eq.s32.totalorder %s26, 1
      %p168 = por %p166, %p167
      %p169 = scmp.ne.s32.totalorder %s160, %s161
      %p170 = scmp.eq.s32.totalorder %s26, 0
      %p171 = por %p169, %p170
      %p172 = scmp.ne.s32.totalorder %s160, %s161
      %p173 = scmp.eq.s32.totalorder %s27, 1
      %p174 = por %p172, %p173
      %p176 = scmp.ne.s32.totalorder %s161, %s175
      %p177 = scmp.eq.s32.totalorder %s27, 0
      %p178 = por %p176, %p177
      %s180 = sadd.s32 %s179, 1
      %p183 = scmp.eq.s32.totalorder %s21, 1
      %p184 = scmp.ne.s32.totalorder %s179, %s181
      %p185 = scmp.eq.s32.totalorder %s21, 0
      %p186 = por %p184, %p185
      %p187 = scmp.ne.s32.totalorder %s179, %s181
      %p188 = scmp.eq.s32.totalorder %s26, 1
      %p189 = por %p187, %p188
      %p190 = scmp.ne.s32.totalorder %s181, %s182
      %p191 = scmp.eq.s32.totalorder %s26, 0
      %p192 = por %p190, %p191
      %p193 = scmp.ne.s32.totalorder %s181, %s182
      %p194 = scmp.eq.s32.totalorder %s27, 1
      %p195 = por %p193, %p194
      %p197 = scmp.ne.s32.totalorder %s182, %s196
      %p198 = scmp.eq.s32.totalorder %s27, 0
      %p199 = por %p197, %p198
      %s201 = sadd.s32 %s200, 1
      %p204 = scmp.eq.s32.totalorder %s21, 1
      %p205 = scmp.ne.s32.totalorder %s200, %s202
      %p206 = scmp.eq.s32.totalorder %s21, 0
      %p207 = por %p205, %p206
      %p208 = scmp.ne.s32.totalorder %s200, %s202
      %p209 = scmp.eq.s32.totalorder %s26, 1
      %p210 = por %p208, %p209
      %p211 = scmp.ne.s32.totalorder %s202, %s203
      %p212 = scmp.eq.s32.totalorder %s26, 0
      %p213 = por %p211, %p212
      %p214 = scmp.ne.s32.totalorder %s202, %s203
      %p215 = scmp.eq.s32.totalorder %s27, 1
      %p216 = por %p214, %p215
      %p218 = scmp.ne.s32.totalorder %s203, %s217
      %p219 = scmp.eq.s32.totalorder %s27, 0
      %p220 = por %p218, %p219
      %s222 = sadd.s32 %s221, 1
      %p225 = scmp.eq.s32.totalorder %s21, 1
      %p226 = scmp.ne.s32.totalorder %s221, %s223
      %p227 = scmp.eq.s32.totalorder %s21, 0
      %p228 = por %p226, %p227
      %p229 = scmp.ne.s32.totalorder %s221, %s223
      %p230 = scmp.eq.s32.totalorder %s26, 1
      %p231 = por %p229, %p230
      %p232 = scmp.ne.s32.totalorder %s223, %s224
      %p233 = scmp.eq.s32.totalorder %s26, 0
      %p234 = por %p232, %p233
      %p235 = scmp.ne.s32.totalorder %s223, %s224
      %p236 = scmp.eq.s32.totalorder %s27, 1
      %p237 = por %p235, %p236
      %p239 = scmp.ne.s32.totalorder %s224, %s238
      %p240 = scmp.eq.s32.totalorder %s27, 0
      %p241 = por %p239, %p240
      %s243 = sadd.s32 %s242, 1
      %p246 = scmp.eq.s32.totalorder %s21, 1
      %p247 = scmp.ne.s32.totalorder %s242, %s244
      %p248 = scmp.eq.s32.totalorder %s21, 0
      %p249 = por %p247, %p248
      %p250 = scmp.ne.s32.totalorder %s242, %s244
      %p251 = scmp.eq.s32.totalorder %s26, 1
      %p252 = por %p250, %p251
      %p253 = scmp.ne.s32.totalorder %s244, %s245
      %p254 = scmp.eq.s32.totalorder %s26, 0
      %p255 = por %p253, %p254
      %p256 = scmp.ne.s32.totalorder %s244, %s245
      %p257 = scmp.eq.s32.totalorder %s27, 1
      %p258 = por %p256, %p257
      %p260 = scmp.ne.s32.totalorder %s245, %s259
      %p261 = scmp.eq.s32.totalorder %s27, 0
      %p262 = por %p260, %p261
      %s264 = sadd.s32 %s263, 1
      %p267 = scmp.eq.s32.totalorder %s21, 1
      %p268 = scmp.ne.s32.totalorder %s263, %s265
      %p269 = scmp.eq.s32.totalorder %s21, 0
      %p270 = por %p268, %p269
      %p271 = scmp.ne.s32.totalorder %s263, %s265
      %p272 = scmp.eq.s32.totalorder %s26, 1
      %p273 = por %p271, %p272
      %p274 = scmp.ne.s32.totalorder %s265, %s266
      %p275 = scmp.eq.s32.totalorder %s26, 0
      %p276 = por %p274, %p275
      %p277 = scmp.ne.s32.totalorder %s265, %s266
      %p278 = scmp.eq.s32.totalorder %s27, 1
      %p279 = por %p277, %p278
      %p281 = scmp.ne.s32.totalorder %s266, %s280
      %p282 = scmp.eq.s32.totalorder %s27, 0
      %p283 = por %p281, %p282
      %s285 = sadd.s32 %s284, 1
      %p288 = scmp.eq.s32.totalorder %s21, 1
      %p289 = scmp.ne.s32.totalorder %s284, %s286
      %p290 = scmp.eq.s32.totalorder %s21, 0
      %p291 = por %p289, %p290
      %p292 = scmp.ne.s32.totalorder %s284, %s286
      %p293 = scmp.eq.s32.totalorder %s26, 1
      %p294 = por %p292, %p293
      %p295 = scmp.ne.s32.totalorder %s286, %s287
      %p296 = scmp.eq.s32.totalorder %s26, 0
      %p297 = por %p295, %p296
      %p298 = scmp.ne.s32.totalorder %s286, %s287
      %p299 = scmp.eq.s32.totalorder %s27, 1
      %p300 = por %p298, %p299
      %p302 = scmp.ne.s32.totalorder %s287, %s301
      %p303 = scmp.eq.s32.totalorder %s27, 0
      %p304 = por %p302, %p303
      %s306 = sadd.s32 %s305, 1
      %p309 = scmp.eq.s32.totalorder %s21, 1
      %p310 = scmp.ne.s32.totalorder %s305, %s307
      %p311 = scmp.eq.s32.totalorder %s21, 0
      %p312 = por %p310, %p311
      %p313 = scmp.ne.s32.totalorder %s305, %s307
      %p314 = scmp.eq.s32.totalorder %s26, 1
      %p315 = por %p313, %p314
      %p316 = scmp.ne.s32.totalorder %s307, %s308
      %p317 = scmp.eq.s32.totalorder %s26, 0
      %p318 = por %p316, %p317
      %p319 = scmp.ne.s32.totalorder %s307, %s308
      %p320 = scmp.eq.s32.totalorder %s27, 1
      %p321 = por %p319, %p320
      %p323 = scmp.ne.s32.totalorder %s308, %s322
      %p324 = scmp.eq.s32.totalorder %s27, 0
      %p325 = por %p323, %p324
      %s327 = sadd.s32 %s326, 1
      %p330 = scmp.eq.s32.totalorder %s21, 1
      %p331 = scmp.ne.s32.totalorder %s326, %s328
      %p332 = scmp.eq.s32.totalorder %s21, 0
      %p333 = por %p331, %p332
      %p334 = scmp.ne.s32.totalorder %s326, %s328
      %p335 = scmp.eq.s32.totalorder %s26, 1
      %p336 = por %p334, %p335
      %p337 = scmp.ne.s32.totalorder %s328, %s329
      %p338 = scmp.eq.s32.totalorder %s26, 0
      %p339 = por %p337, %p338
      %p340 = scmp.ne.s32.totalorder %s328, %s329
      %p341 = scmp.eq.s32.totalorder %s27, 1
      %p342 = por %p340, %p341
      %p344 = scmp.ne.s32.totalorder %s329, %s343
      %p345 = scmp.eq.s32.totalorder %s27, 0
      %p346 = por %p344, %p345
      %s347 = ssub.s32 %s28, %s40
      %s348 = ssub.s32 %s29, %s36
      %s349 = sor.u32 %s347, %s348
      %p350 = scmp.eq.s32.totalorder %s349, 0
      %s352 = sadd.s32 %s351, 1
      %s353 = scalar_select %p350, %s351, %s352
      %p356 = pneg %p350
      %p357 = scmp.eq.s32.totalorder %s21, 1
      %p358 = por %p356, %p357
      %p359 = scmp.ne.s32.totalorder %s351, %s354
      %p360 = scmp.eq.s32.totalorder %s21, 0
      %p361 = por %p359, %p360
      %p362 = scmp.ne.s32.totalorder %s351, %s354
      %p363 = scmp.eq.s32.totalorder %s26, 1
      %p364 = por %p362, %p363
      %p365 = scmp.ne.s32.totalorder %s354, %s355
      %p366 = scmp.eq.s32.totalorder %s26, 0
      %p367 = por %p365, %p366
      %p368 = scmp.ne.s32.totalorder %s354, %s355
      %p369 = scmp.eq.s32.totalorder %s27, 1
      %p370 = por %p368, %p369
      %p372 = scmp.ne.s32.totalorder %s355, %s371
      %p373 = scmp.eq.s32.totalorder %s27, 0
      %p374 = por %p372, %p373
      %p375 = scmp.le.s32.totalorder 1, %s21
      %p376 = scmp.lt.s32.totalorder %s21, 3
      %p377 = pnand %p375, %p376
      %p378 = pneg %p377
      // Predicated region
      $region9: #{bert_forward.2} parent=5 // pred_check
        _
      $region10: #{bert_forward.2} parent=5 // pred_check_branch
        %380 = sbr.rel (%p377) target = $region12
      $region11: #{bert_forward.2} parent=5 // pred_region
        %s381 = ssub.s32 %s21, 1
        // Predicated region
        $region13: #{bert_forward.2} parent=11 // pred_check
          %p382 = pneg %p108
        $region14: #{bert_forward.2} parent=11 // pred_check_branch
          %384 = sbr.rel (%p382) target = $region16
        $region15: #{bert_forward.2} parent=11 // pred_region
          _
        $region16: #{bert_forward.2} parent=11 // pred_fallthru
          _
        // Predicated region
        $region17: #{bert_forward.2} parent=11 // pred_check
          %p385 = pneg %p129
        $region18: #{bert_forward.2} parent=11 // pred_check_branch
          %387 = sbr.rel (%p385) target = $region20
        $region19: #{bert_forward.2} parent=11 // pred_region
          _
        $region20: #{bert_forward.2} parent=11 // pred_fallthru
          _
        // Predicated region
        $region21: #{bert_forward.2} parent=11 // pred_check
          %p388 = pneg %p150
        $region22: #{bert_forward.2} parent=11 // pred_check_branch
          %390 = sbr.rel (%p388) target = $region24
        $region23: #{bert_forward.2} parent=11 // pred_region
          _
        $region24: #{bert_forward.2} parent=11 // pred_fallthru
          _
        // Predicated region
        $region25: #{bert_forward.2} parent=11 // pred_check
          %p391 = pneg %p171
        $region26: #{bert_forward.2} parent=11 // pred_check_branch
          %393 = sbr.rel (%p391) target = $region28
        $region27: #{bert_forward.2} parent=11 // pred_region
          _
        $region28: #{bert_forward.2} parent=11 // pred_fallthru
          _
        // Predicated region
        $region29: #{bert_forward.2} parent=11 // pred_check
          %p394 = pneg %p192
        $region30: #{bert_forward.2} parent=11 // pred_check_branch
          %396 = sbr.rel (%p394) target = $region32
        $region31: #{bert_forward.2} parent=11 // pred_region
          _
        $region32: #{bert_forward.2} parent=11 // pred_fallthru
          _
        // Predicated region
        $region33: #{bert_forward.2} parent=11 // pred_check
          %p397 = pneg %p213
        $region34: #{bert_forward.2} parent=11 // pred_check_branch
          %399 = sbr.rel (%p397) target = $region36
        $region35: #{bert_forward.2} parent=11 // pred_region
          _
        $region36: #{bert_forward.2} parent=11 // pred_fallthru
          _
        // Predicated region
        $region37: #{bert_forward.2} parent=11 // pred_check
          %p400 = pneg %p234
        $region38: #{bert_forward.2} parent=11 // pred_check_branch
          %402 = sbr.rel (%p400) target = $region40
        $region39: #{bert_forward.2} parent=11 // pred_region
          _
        $region40: #{bert_forward.2} parent=11 // pred_fallthru
          _
        // Predicated region
        $region41: #{bert_forward.2} parent=11 // pred_check
          %p403 = pneg %p255
        $region42: #{bert_forward.2} parent=11 // pred_check_branch
          %405 = sbr.rel (%p403) target = $region44
        $region43: #{bert_forward.2} parent=11 // pred_region
          _
        $region44: #{bert_forward.2} parent=11 // pred_fallthru
          _
        // Predicated region
        $region45: #{bert_forward.2} parent=11 // pred_check
          %p406 = pneg %p276
        $region46: #{bert_forward.2} parent=11 // pred_check_branch
          %408 = sbr.rel (%p406) target = $region48
        $region47: #{bert_forward.2} parent=11 // pred_region
          _
        $region48: #{bert_forward.2} parent=11 // pred_fallthru
          _
        // Predicated region
        $region49: #{bert_forward.2} parent=11 // pred_check
          %p409 = pneg %p297
        $region50: #{bert_forward.2} parent=11 // pred_check_branch
          %411 = sbr.rel (%p409) target = $region52
        $region51: #{bert_forward.2} parent=11 // pred_region
          %s413 = ssub.s32 16, 16
          %414 = vsyncadd [#allocation4], %s413
          %s416 = sshll.u32 [#allocation3], 4
          %s417 = int_to_ptr.vmem [resolvable:$true] %s416
          %419 = dma.hbm_to_vmem [thread:$0]  %s11, 16, %s417, [#allocation4]
        $region52: #{bert_forward.2} parent=11 // pred_fallthru
          _
        // Predicated region
        $region53: #{bert_forward.2} parent=11 // pred_check
          %p420 = pneg %p318
        $region54: #{bert_forward.2} parent=11 // pred_check_branch
          %422 = sbr.rel (%p420) target = $region56
        $region55: #{bert_forward.2} parent=11 // pred_region
          _
        $region56: #{bert_forward.2} parent=11 // pred_fallthru
          _
        // Predicated region
        $region57: #{bert_forward.2} parent=11 // pred_check
          %p423 = pneg %p339
        $region58: #{bert_forward.2} parent=11 // pred_check_branch
          %425 = sbr.rel (%p423) target = $region60
        $region59: #{bert_forward.2} parent=11 // pred_region
          _
        $region60: #{bert_forward.2} parent=11 // pred_fallthru
          _
      $region12: #{bert_forward.2} parent=5 // pred_fallthru
        _
      %p426 = scmp.lt.s32.totalorder %s21, 2
      // Predicated region
      $region61: #{bert_forward.2} parent=5 // pred_check
        %p427 = pneg %p426
      $region62: #{bert_forward.2} parent=5 // pred_check_branch
        %429 = sbr.rel (%p427) target = $region64
      $region63: #{bert_forward.2} parent=5 // pred_region
        // Predicated region
        $region65: #{bert_forward.2} parent=63 // pred_check
          %p430 = pneg %p53
        $region66: #{bert_forward.2} parent=63 // pred_check_branch
          %432 = sbr.rel (%p430) target = $region68
        $region67: #{bert_forward.2} parent=63 // pred_region
          %p433 = scmp.lt.s32.totalorder %s28, 1
          %s434 = scalar_select %p433, %s28, 1
          %s435 = smul.addr %s434, 8
          %s436 = scalar_lea.vmem %s0, %s435
        $region68: #{bert_forward.2} parent=63 // pred_fallthru
          _
        // Predicated region
        $region69: #{bert_forward.2} parent=63 // pred_check
          %p437 = pneg %p81
        $region70: #{bert_forward.2} parent=63 // pred_check_branch
          %439 = sbr.rel (%p437) target = $region72
        $region71: #{bert_forward.2} parent=63 // pred_region
          %p440 = scmp.lt.s32.totalorder %s28, 1
          %s441 = scalar_select %p440, %s28, 1
          %p442 = scmp.lt.s32.totalorder %s29, 0
          %s443 = scalar_select %p442, %s29, 0
          %s444 = sadd.s32 %s443, %s441
          %s445 = smul.addr %s444, 8
          %s446 = scalar_lea.vmem %s1, %s445
        $region72: #{bert_forward.2} parent=63 // pred_fallthru
          _
      $region64: #{bert_forward.2} parent=5 // pred_fallthru
        _
      %p447 = scmp.le.s32.totalorder 1, %s21
      %p448 = scmp.lt.s32.totalorder %s21, 3
      %p449 = pnand %p447, %p448
      %p450 = pneg %p449
      // Predicated region
      $region73: #{bert_forward.2} parent=5 // pred_check
        _
      $region74: #{bert_forward.2} parent=5 // pred_check_branch
        %452 = sbr.rel (%p449) target = $region76
      $region75: #{bert_forward.2} parent=5 // pred_region
        %s453 = ssub.s32 %s21, 1
        // Predicated region
        $region77: #{bert_forward.2} parent=75 // pred_check
          %p454 = pneg %p297
        $region78: #{bert_forward.2} parent=75 // pred_check_branch
          %456 = sbr.rel (%p454) target = $region80
        $region79: #{bert_forward.2} parent=75 // pred_region
          %457 = dma.done [#allocation4], 16
        $region80: #{bert_forward.2} parent=75 // pred_fallthru
          _
        %p458 = scmp.lt.s32.totalorder %s30, 1
        %s459 = scalar_select %p458, %s30, 1
        %s460 = smul.addr %s459, 8
        %s461 = scalar_lea.vmem %s0, %s460
        %p462 = pneg %p59
        %p463 = pneg %p56
        %p464 = scmp.lt.s32.totalorder %s30, 1
        %s465 = scalar_select %p464, %s30, 1
        %p466 = scmp.lt.s32.totalorder %s31, 0
        %s467 = scalar_select %p466, %s31, 0
        %s468 = sadd.s32 %s467, %s465
        %s469 = smul.addr %s468, 8
        %s470 = scalar_lea.vmem %s1, %s469
        %p471 = pneg %p87
        %p472 = pneg %p84
        %p473 = pneg %p108
        %p474 = pneg %p105
        %p475 = pneg %p129
        %p476 = pneg %p126
        %p477 = pneg %p150
        %p478 = pneg %p147
        %p479 = pneg %p171
        %p480 = pneg %p168
        %p481 = pneg %p192
        %p482 = pneg %p189
        %p483 = pneg %p213
        %p484 = pneg %p210
        %p485 = pneg %p234
        %p486 = pneg %p231
        %p487 = pneg %p255
        %p488 = pneg %p252
        %p489 = pneg %p276
        %p490 = pneg %p273
        %p491 = pneg %p297
        %p492 = pneg %p294
        %p493 = pneg %p318
        %p494 = pneg %p315
        %p495 = pneg %p339
        %p496 = pneg %p336
        %p497 = pneg %p367
        %p498 = pneg %p364
        %p499 = scmp.lt.s32.totalorder %s30, 1
        %s500 = scalar_select %p499, %s30, 1
        %p501 = scmp.lt.s32.totalorder %s31, 0
        %s502 = scalar_select %p501, %s31, 0
        %s503 = sadd.s32 %s502, %s500
        %s504 = smul.addr %s503, 8
        %s505 = scalar_lea.vmem %s14, %s504
        %p506 = scmp.lt.s32.totalorder %s30, 1
        %s507 = scalar_select %p506, %s30, 1
        %s508 = smul.addr %s507, 8
        %s509 = scalar_lea.vmem %s0, %s508
        %p510 = scmp.lt.s32.totalorder %s30, 1
        %s511 = scalar_select %p510, %s30, 1
        %p512 = scmp.lt.s32.totalorder %s31, 0
        %s513 = scalar_select %p512, %s31, 0
        %s514 = sadd.s32 %s513, %s511
        %s515 = smul.addr %s514, 8
        %s516 = scalar_lea.vmem %s1, %s515
        %p517 = scmp.lt.s32.totalorder %s30, 1
        %s518 = scalar_select %p517, %s30, 1
        %p519 = scmp.lt.s32.totalorder %s31, 0
        %s520 = scalar_select %p519, %s31, 0
        %s521 = sadd.s32 %s520, %s518
        %s522 = smul.addr %s521, 8
        %s523 = scalar_lea.vmem %s14, %s522
        %p525 = scmp.eq.s32.totalorder %s31, 0
        // Predicated region
        $region81: #{bert_forward.2} parent=75 // pred_check
          %p526 = pneg %p525
        $region82: #{bert_forward.2} parent=75 // pred_check_branch
          %528 = sbr.rel (%p526) target = $region84
        $region83: #{bert_forward.2} parent=75 // pred_region
          %v529 = vld [vmem:[%s509] sm:$0xff]
          %v530 = vld [vmem:[%s6] sm:$0x1]
          %v531 = vld [vmem:[%s7] sm:$0x1]
          %vm532 = vcmask 261120
          %v533 = vsel %vm532, %v529, 0.0
          %534 = vadd.xlane.f32.xlu0 %v533
          %v535 = vpop.xlane.xlu0 %534
          %v536 = vrcp.pop 32.0
          %v537 = vmul.f32 %v535, %v536
          %v538 = vsub.f32 %v529, %v537
          %v539 = vmul.f32 %v538, %v538
          %v540 = vsel %vm532, %v539, 0.0
          %541 = vadd.xlane.f32.xlu0 %v540
          %v542 = vpop.xlane.xlu0 %541
          %v543 = vrcp.pop 31.0
          %v544 = vmul.f32 %v542, %v543
          %v545 = vrsqrt.pop %v544
          %v546 = vmul.f32 %v544, %v545
          %vm547 = vcmp.eq.f32.partialorder %v544, inf
          %v548 = vsel %vm547, %v544, %v546
          %vm549 = vcmp.eq.f32.partialorder %v544, 0.0
          %v550 = vand.u32 %v544, 2147483648
          %v551 = vsel %vm549, %v550, %v548
          %v553 = vlaneseq
          %v554 = vshrl.u32 %v553, 7
          %v555 = vsub.s32 0, %v554
          %v556 = vrot.slane %v530, %v555
          %v558 = vmul.f32 %v556, %v538
          %v559 = vadd.f32 %v551, 1e-06
          %v560 = vrcp.pop %v559
          %v561 = vmul.f32 %v558, %v560
          %v563 = vlaneseq
          %v564 = vshrl.u32 %v563, 7
          %v565 = vsub.s32 0, %v564
          %v566 = vrot.slane %v531, %v565
          %v568 = vadd.f32 %v561, %v566
          %v569 = vpack.c.bf16 %v568, %v568
          %v570 = vld [vmem:[%s2] sm:$0xf]
          %v571 = vld [vmem:[%s2 + $0x4] sm:$0xf]
          %v572 = vld [vmem:[%s2 + $0x8] sm:$0xf]
          %v573 = vld [vmem:[%s2 + $0xc] sm:$0xf]
          %v574 = vld [vmem:[%s3] sm:$0x1]
          %v576 = vlaneseq
          %v577 = vshrl.u32 %v576, 7
          %v578 = vsub.s32 0, %v577
          %v579 = vrot.slane %v574, %v578
          %v585 = vunpack.c.l.b16 %v570
          %v586 = vunpack.c.l.b16 %v571
          %v587 = vunpack.c.l.b16 %v572
          %v588 = vunpack.c.l.b16 %v573
          %v589 = vpack.c.b16 %v586, %v585
          %v590 = vpack.c.b16 %v588, %v587
          %v594 = vsel %vm532, %v569, 0
          %596 = vmatprep.subr.bf16.mxu0 0
          %597 = vmatpush1.bf16.msra.mxu0 %v589
          %598 = vmatprep.subr.bf16.mxu0 0
          %599 = vmatpush1.bf16.msra.mxu0 %v590
          %600 = vmatprep.subr.bf16.mxu0 0
          %601 = vmatpush1.bf16.msra.mxu0 0
          %602 = vmatprep.subr.bf16.mxu0 0
          %603 = vmatpush1.bf16.msra.mxu0 0
          %604 = vmatprep.subr.bf16.mxu0 0
          %605 = vmatpush1.bf16.msra.mxu0 0
          %606 = vmatprep.subr.bf16.mxu0 0
          %607 = vmatpush1.bf16.msra.mxu0 0
          %608 = vmatprep.subr.bf16.mxu0 0
          %609 = vmatpush1.bf16.msra.mxu0 0
          %610 = vmatprep.subr.bf16.mxu0 0
          %611 = vmatpush1.bf16.msra.mxu0 0
          %612 = vmatprep.subr.bf16.mxu0 0
          %613 = vmatpush1.bf16.msra.mxu0 0
          %614 = vmatprep.subr.bf16.mxu0 0
          %615 = vmatpush1.bf16.msra.mxu0 0
          %616 = vmatprep.subr.bf16.mxu0 0
          %617 = vmatpush1.bf16.msra.mxu0 0
          %618 = vmatprep.subr.bf16.mxu0 0
          %619 = vmatpush1.bf16.msra.mxu0 0
          %620 = vmatprep.subr.bf16.mxu0 0
          %621 = vmatpush1.bf16.msra.mxu0 0
          %622 = vmatprep.subr.bf16.mxu0 0
          %623 = vmatpush1.bf16.msra.mxu0 0
          %624 = vmatprep.subr.bf16.mxu0 0
          %625 = vmatpush1.bf16.msra.mxu0 0
          %626 = vmatprep.subr.bf16.mxu0 0
          %627 = vmatpush1.bf16.msra.mxu0 0
          %628 = vmatprep.mubr.bf16.mxu0 0
          %629 = vmatmul.mubr.bf16.gmra.mrb[0].mxu0 %v594
          %v630 = vpop.f32.mrb[0].mxu0
          %v631 = vadd.f32 %v579, %v630
          %v632 = vpop.f32.mrb[0].mxu0
          %v633 = vpop.f32.mrb[0].mxu0
          %v634 = vpop.f32.mrb[0].mxu0
          %635 = vdwg.mxu0
          %v636 = vpack.c.bf16 %v631, %v631
          %638 = vrot.lane.b32.xlu0 %v636, 120
          %v639 = vpop.permute.xlu0 %638
          %640 = vrot.lane.b32.xlu0 %v636, 112
          %v641 = vpop.permute.xlu0 %640
          %642 = vrot.lane.b32.xlu0 %v636, 104
          %v643 = vpop.permute.xlu0 %642
          %v645 = vunpack.c.l.s4 1983009808
          %v646 = vunpack.c.0.s8 %v645
          %v647 = vlaneseq
          %v648 = vshrl.u32 %v647, 7
          %v649 = vsub.s32 %v646, %v648
          %v650 = vrot.slane %v636, %v649
          %v653 = vunpack.c.l.s4 1983009808
          %v654 = vunpack.c.0.s8 %v653
          %v655 = vlaneseq
          %v656 = vshrl.u32 %v655, 7
          %v657 = vsub.s32 %v654, %v656
          %v658 = vrot.slane %v641, %v657
          %v659 = vcombine.low %v650, %v658
          %v660 = vcombine.high %v650, %v658
          %v662 = vunpack.c.l.s4 1934713408
          %v663 = vunpack.c.0.s8 %v662
          %v664 = vlaneseq
          %v665 = vshrl.u32 %v664, 7
          %v666 = vsub.s32 %v663, %v665
          %v667 = vrot.slane %v659, %v666
          %v669 = vunpack.c.l.s4 1934713408
          %v670 = vunpack.c.0.s8 %v669
          %v671 = vlaneseq
          %v672 = vshrl.u32 %v671, 7
          %v673 = vsub.s32 %v670, %v672
          %v674 = vrot.slane %v660, %v673
          %v675 = vcombine.high %v667, 0
          %v676 = vcombine.high %v674, 0
          %v679 = vunpack.c.l.s4 1983009808
          %v680 = vunpack.c.0.s8 %v679
          %v681 = vlaneseq
          %v682 = vshrl.u32 %v681, 7
          %v683 = vsub.s32 %v680, %v682
          %v684 = vrot.slane %v639, %v683
          %v687 = vunpack.c.l.s4 1983009808
          %v688 = vunpack.c.0.s8 %v687
          %v689 = vlaneseq
          %v690 = vshrl.u32 %v689, 7
          %v691 = vsub.s32 %v688, %v690
          %v692 = vrot.slane %v643, %v691
          %v693 = vcombine.low %v684, %v692
          %v694 = vcombine.high %v684, %v692
          %v696 = vunpack.c.l.s4 1934713408
          %v697 = vunpack.c.0.s8 %v696
          %v698 = vlaneseq
          %v699 = vshrl.u32 %v698, 7
          %v700 = vsub.s32 %v697, %v699
          %v701 = vrot.slane %v693, %v700
          %v703 = vunpack.c.l.s4 1934713408
          %v704 = vunpack.c.0.s8 %v703
          %v705 = vlaneseq
          %v706 = vshrl.u32 %v705, 7
          %v707 = vsub.s32 %v704, %v706
          %v708 = vrot.slane %v694, %v707
          %v709 = vcombine.high %v701, 0
          %v710 = vcombine.high %v708, 0
          %v713 = vpack.i.b16 %v701, %v667
          %v715 = vshrl.u32 %v667, 16
          %v716 = vshrl.u32 %v701, 16
          %v717 = vpack.i.b16 %v716, %v715
          %v721 = vpack.i.b16 %v709, %v675
          %v723 = vshrl.u32 %v675, 16
          %v724 = vshrl.u32 %v709, 16
          %v725 = vpack.i.b16 %v724, %v723
          %v729 = vpack.i.b16 %v708, %v674
          %v731 = vshrl.u32 %v674, 16
          %v732 = vshrl.u32 %v708, 16
          %v733 = vpack.i.b16 %v732, %v731
          %v737 = vpack.i.b16 %v710, %v676
          %v739 = vshrl.u32 %v676, 16
          %v740 = vshrl.u32 %v710, 16
          %v741 = vpack.i.b16 %v740, %v739
          %v743 = vcombine.low %v713, %v729
          %v745 = vunpack.c.l.s4 1983009808
          %v746 = vunpack.c.0.s8 %v745
          %v747 = vlaneseq
          %v748 = vshrl.u32 %v747, 7
          %v749 = vsub.s32 %v746, %v748
          %v750 = vrot.slane %v743, %v749
          %v751 = vcombine.low %v721, %v737
          %v753 = vunpack.c.l.s4 1983009808
          %v754 = vunpack.c.0.s8 %v753
          %v755 = vlaneseq
          %v756 = vshrl.u32 %v755, 7
          %v757 = vsub.s32 %v754, %v756
          %v758 = vrot.slane %v751, %v757
          %v759 = vcombine.low %v750, %v758
          %v761 = vunpack.c.l.s4 1934713408
          %v762 = vunpack.c.0.s8 %v761
          %v763 = vlaneseq
          %v764 = vshrl.u32 %v763, 7
          %v765 = vsub.s32 %v762, %v764
          %v766 = vrot.slane %v759, %v765
          %v767 = vcombine.high %v766, 0
          %v768 = vcombine.low %v717, %v733
          %v770 = vunpack.c.l.s4 1983009808
          %v771 = vunpack.c.0.s8 %v770
          %v772 = vlaneseq
          %v773 = vshrl.u32 %v772, 7
          %v774 = vsub.s32 %v771, %v773
          %v775 = vrot.slane %v768, %v774
          %v776 = vcombine.low %v725, %v741
          %v778 = vunpack.c.l.s4 1983009808
          %v779 = vunpack.c.0.s8 %v778
          %v780 = vlaneseq
          %v781 = vshrl.u32 %v780, 7
          %v782 = vsub.s32 %v779, %v781
          %v783 = vrot.slane %v776, %v782
          %v784 = vcombine.low %v775, %v783
          %v786 = vunpack.c.l.s4 1934713408
          %v787 = vunpack.c.0.s8 %v786
          %v788 = vlaneseq
          %v789 = vshrl.u32 %v788, 7
          %v790 = vsub.s32 %v787, %v789
          %v791 = vrot.slane %v784, %v790
          %v792 = vcombine.high %v791, 0
          %v795 = vpack.i.b16 %v791, %v766
          %v797 = vshrl.u32 %v766, 16
          %v798 = vshrl.u32 %v791, 16
          %v799 = vpack.i.b16 %v798, %v797
          %v803 = vpack.i.b16 %v792, %v767
          %v805 = vshrl.u32 %v767, 16
          %v806 = vshrl.u32 %v792, 16
          %v807 = vpack.i.b16 %v806, %v805
          %vm809 = vcmask 60416
          %810 = vst.msk [vmem:[#allocation2] sm:$0xf] %vm809, %v795
          %811 = vst.msk [vmem:[#allocation2 + $0x4] sm:$0xf] %vm809, %v799
          %812 = vst.msk [vmem:[#allocation2 + $0x8] sm:$0xf] %vm809, %v803
          %813 = vst.msk [vmem:[#allocation2 + $0xc] sm:$0xf] %vm809, %v807
          %814 = vrot.lane.b32.xlu0 %v636, 96
          %v815 = vpop.permute.xlu0 %814
          %816 = vrot.lane.b32.xlu0 %v639, 96
          %v817 = vpop.permute.xlu0 %816
          %818 = vrot.lane.b32.xlu0 %v641, 96
          %v819 = vpop.permute.xlu0 %818
          %820 = vrot.lane.b32.xlu0 %v643, 96
          %v821 = vpop.permute.xlu0 %820
          %v824 = vunpack.c.l.s4 1983009808
          %v825 = vunpack.c.0.s8 %v824
          %v826 = vlaneseq
          %v827 = vshrl.u32 %v826, 7
          %v828 = vsub.s32 %v825, %v827
          %v829 = vrot.slane %v815, %v828
          %v832 = vunpack.c.l.s4 1983009808
          %v833 = vunpack.c.0.s8 %v832
          %v834 = vlaneseq
          %v835 = vshrl.u32 %v834, 7
          %v836 = vsub.s32 %v833, %v835
          %v837 = vrot.slane %v819, %v836
          %v838 = vcombine.low %v829, %v837
          %v839 = vcombine.high %v829, %v837
          %v841 = vunpack.c.l.s4 1934713408
          %v842 = vunpack.c.0.s8 %v841
          %v843 = vlaneseq
          %v844 = vshrl.u32 %v843, 7
          %v845 = vsub.s32 %v842, %v844
          %v846 = vrot.slane %v838, %v845
          %v848 = vunpack.c.l.s4 1934713408
          %v849 = vunpack.c.0.s8 %v848
          %v850 = vlaneseq
          %v851 = vshrl.u32 %v850, 7
          %v852 = vsub.s32 %v849, %v851
          %v853 = vrot.slane %v839, %v852
          %v854 = vcombine.high %v846, 0
          %v855 = vcombine.high %v853, 0
          %v858 = vunpack.c.l.s4 1983009808
          %v859 = vunpack.c.0.s8 %v858
          %v860 = vlaneseq
          %v861 = vshrl.u32 %v860, 7
          %v862 = vsub.s32 %v859, %v861
          %v863 = vrot.slane %v817, %v862
          %v866 = vunpack.c.l.s4 1983009808
          %v867 = vunpack.c.0.s8 %v866
          %v868 = vlaneseq
          %v869 = vshrl.u32 %v868, 7
          %v870 = vsub.s32 %v867, %v869
          %v871 = vrot.slane %v821, %v870
          %v872 = vcombine.low %v863, %v871
          %v873 = vcombine.high %v863, %v871
          %v875 = vunpack.c.l.s4 1934713408
          %v876 = vunpack.c.0.s8 %v875
          %v877 = vlaneseq
          %v878 = vshrl.u32 %v877, 7
          %v879 = vsub.s32 %v876, %v878
          %v880 = vrot.slane %v872, %v879
          %v882 = vunpack.c.l.s4 1934713408
          %v883 = vunpack.c.0.s8 %v882
          %v884 = vlaneseq
          %v885 = vshrl.u32 %v884, 7
          %v886 = vsub.s32 %v883, %v885
          %v887 = vrot.slane %v873, %v886
          %v888 = vcombine.high %v880, 0
          %v889 = vcombine.high %v887, 0
          %v892 = vpack.i.b16 %v880, %v846
          %v894 = vshrl.u32 %v846, 16
          %v895 = vshrl.u32 %v880, 16
          %v896 = vpack.i.b16 %v895, %v894
          %v900 = vpack.i.b16 %v888, %v854
          %v902 = vshrl.u32 %v854, 16
          %v903 = vshrl.u32 %v888, 16
          %v904 = vpack.i.b16 %v903, %v902
          %v908 = vpack.i.b16 %v887, %v853
          %v910 = vshrl.u32 %v853, 16
          %v911 = vshrl.u32 %v887, 16
          %v912 = vpack.i.b16 %v911, %v910
          %v916 = vpack.i.b16 %v889, %v855
          %v918 = vshrl.u32 %v855, 16
          %v919 = vshrl.u32 %v889, 16
          %v920 = vpack.i.b16 %v919, %v918
          %v922 = vcombine.low %v892, %v908
          %v924 = vunpack.c.l.s4 1983009808
          %v925 = vunpack.c.0.s8 %v924
          %v926 = vlaneseq
          %v927 = vshrl.u32 %v926, 7
          %v928 = vsub.s32 %v925, %v927
          %v929 = vrot.slane %v922, %v928
          %v930 = vcombine.low %v900, %v916
          %v932 = vunpack.c.l.s4 1983009808
          %v933 = vunpack.c.0.s8 %v932
          %v934 = vlaneseq
          %v935 = vshrl.u32 %v934, 7
          %v936 = vsub.s32 %v933, %v935
          %v937 = vrot.slane %v930, %v936
          %v938 = vcombine.low %v929, %v937
          %v940 = vunpack.c.l.s4 1934713408
          %v941 = vunpack.c.0.s8 %v940
          %v942 = vlaneseq
          %v943 = vshrl.u32 %v942, 7
          %v944 = vsub.s32 %v941, %v943
          %v945 = vrot.slane %v938, %v944
          %v946 = vcombine.high %v945, 0
          %v947 = vcombine.low %v896, %v912
          %v949 = vunpack.c.l.s4 1983009808
          %v950 = vunpack.c.0.s8 %v949
          %v951 = vlaneseq
          %v952 = vshrl.u32 %v951, 7
          %v953 = vsub.s32 %v950, %v952
          %v954 = vrot.slane %v947, %v953
          %v955 = vcombine.low %v904, %v920
          %v957 = vunpack.c.l.s4 1983009808
          %v958 = vunpack.c.0.s8 %v957
          %v959 = vlaneseq
          %v960 = vshrl.u32 %v959, 7
          %v961 = vsub.s32 %v958, %v960
          %v962 = vrot.slane %v955, %v961
          %v963 = vcombine.low %v954, %v962
          %v965 = vunpack.c.l.s4 1934713408
          %v966 = vunpack.c.0.s8 %v965
          %v967 = vlaneseq
          %v968 = vshrl.u32 %v967, 7
          %v969 = vsub.s32 %v966, %v968
          %v970 = vrot.slane %v963, %v969
          %v971 = vcombine.high %v970, 0
          %v974 = vpack.i.b16 %v970, %v945
          %v976 = vshrl.u32 %v945, 16
          %v977 = vshrl.u32 %v970, 16
          %v978 = vpack.i.b16 %v977, %v976
          %v982 = vpack.i.b16 %v971, %v946
          %v984 = vshrl.u32 %v946, 16
          %v985 = vshrl.u32 %v971, 16
          %v986 = vpack.i.b16 %v985, %v984
          %s988 = scalar_lea.vmem [#allocation2], 16
          %989 = vst.msk [vmem:[%s988] sm:$0xf] %vm809, %v974
          %990 = vst.msk [vmem:[%s988 + $0x4] sm:$0xf] %vm809, %v978
          %991 = vst.msk [vmem:[%s988 + $0x8] sm:$0xf] %vm809, %v982
          %992 = vst.msk [vmem:[%s988 + $0xc] sm:$0xf] %vm809, %v986
          %993 = vrot.lane.b32.xlu0 %v636, 64
          %v994 = vpop.permute.xlu0 %993
          %995 = vrot.lane.b32.xlu0 %v639, 64
          %v996 = vpop.permute.xlu0 %995
          %997 = vrot.lane.b32.xlu0 %v641, 64
          %v998 = vpop.permute.xlu0 %997
          %999 = vrot.lane.b32.xlu0 %v643, 64
          %v1000 = vpop.permute.xlu0 %999
          %v1003 = vunpack.c.l.s4 1983009808
          %v1004 = vunpack.c.0.s8 %v1003
          %v1005 = vlaneseq
          %v1006 = vshrl.u32 %v1005, 7
          %v1007 = vsub.s32 %v1004, %v1006
          %v1008 = vrot.slane %v994, %v1007
          %v1011 = vunpack.c.l.s4 1983009808
          %v1012 = vunpack.c.0.s8 %v1011
          %v1013 = vlaneseq
          %v1014 = vshrl.u32 %v1013, 7
          %v1015 = vsub.s32 %v1012, %v1014
          %v1016 = vrot.slane %v998, %v1015
          %v1017 = vcombine.low %v1008, %v1016
          %v1018 = vcombine.high %v1008, %v1016
          %v1020 = vunpack.c.l.s4 1934713408
          %v1021 = vunpack.c.0.s8 %v1020
          %v1022 = vlaneseq
          %v1023 = vshrl.u32 %v1022, 7
          %v1024 = vsub.s32 %v1021, %v1023
          %v1025 = vrot.slane %v1017, %v1024
          %v1027 = vunpack.c.l.s4 1934713408
          %v1028 = vunpack.c.0.s8 %v1027
          %v1029 = vlaneseq
          %v1030 = vshrl.u32 %v1029, 7
          %v1031 = vsub.s32 %v1028, %v1030
          %v1032 = vrot.slane %v1018, %v1031
          %v1033 = vcombine.high %v1025, 0
          %v1034 = vcombine.high %v1032, 0
          %v1037 = vunpack.c.l.s4 1983009808
          %v1038 = vunpack.c.0.s8 %v1037
          %v1039 = vlaneseq
          %v1040 = vshrl.u32 %v1039, 7
          %v1041 = vsub.s32 %v1038, %v1040
          %v1042 = vrot.slane %v996, %v1041
          %v1045 = vunpack.c.l.s4 1983009808
          %v1046 = vunpack.c.0.s8 %v1045
          %v1047 = vlaneseq
          %v1048 = vshrl.u32 %v1047, 7
          %v1049 = vsub.s32 %v1046, %v1048
          %v1050 = vrot.slane %v1000, %v1049
          %v1051 = vcombine.low %v1042, %v1050
          %v1052 = vcombine.high %v1042, %v1050
          %v1054 = vunpack.c.l.s4 1934713408
          %v1055 = vunpack.c.0.s8 %v1054
          %v1056 = vlaneseq
          %v1057 = vshrl.u32 %v1056, 7
          %v1058 = vsub.s32 %v1055, %v1057
          %v1059 = vrot.slane %v1051, %v1058
          %v1061 = vunpack.c.l.s4 1934713408
          %v1062 = vunpack.c.0.s8 %v1061
          %v1063 = vlaneseq
          %v1064 = vshrl.u32 %v1063, 7
          %v1065 = vsub.s32 %v1062, %v1064
          %v1066 = vrot.slane %v1052, %v1065
          %v1067 = vcombine.high %v1059, 0
          %v1068 = vcombine.high %v1066, 0
          %v1071 = vpack.i.b16 %v1059, %v1025
          %v1073 = vshrl.u32 %v1025, 16
          %v1074 = vshrl.u32 %v1059, 16
          %v1075 = vpack.i.b16 %v1074, %v1073
          %v1079 = vpack.i.b16 %v1067, %v1033
          %v1081 = vshrl.u32 %v1033, 16
          %v1082 = vshrl.u32 %v1067, 16
          %v1083 = vpack.i.b16 %v1082, %v1081
          %v1087 = vpack.i.b16 %v1066, %v1032
          %v1089 = vshrl.u32 %v1032, 16
          %v1090 = vshrl.u32 %v1066, 16
          %v1091 = vpack.i.b16 %v1090, %v1089
          %v1095 = vpack.i.b16 %v1068, %v1034
          %v1097 = vshrl.u32 %v1034, 16
          %v1098 = vshrl.u32 %v1068, 16
          %v1099 = vpack.i.b16 %v1098, %v1097
          %v1101 = vcombine.low %v1071, %v1087
          %v1103 = vunpack.c.l.s4 1983009808
          %v1104 = vunpack.c.0.s8 %v1103
          %v1105 = vlaneseq
          %v1106 = vshrl.u32 %v1105, 7
          %v1107 = vsub.s32 %v1104, %v1106
          %v1108 = vrot.slane %v1101, %v1107
          %v1109 = vcombine.low %v1079, %v1095
          %v1111 = vunpack.c.l.s4 1983009808
          %v1112 = vunpack.c.0.s8 %v1111
          %v1113 = vlaneseq
          %v1114 = vshrl.u32 %v1113, 7
          %v1115 = vsub.s32 %v1112, %v1114
          %v1116 = vrot.slane %v1109, %v1115
          %v1117 = vcombine.low %v1108, %v1116
          %v1119 = vunpack.c.l.s4 1934713408
          %v1120 = vunpack.c.0.s8 %v1119
          %v1121 = vlaneseq
          %v1122 = vshrl.u32 %v1121, 7
          %v1123 = vsub.s32 %v1120, %v1122
          %v1124 = vrot.slane %v1117, %v1123
          %v1125 = vcombine.high %v1124, 0
          %v1126 = vcombine.low %v1075, %v1091
          %v1128 = vunpack.c.l.s4 1983009808
          %v1129 = vunpack.c.0.s8 %v1128
          %v1130 = vlaneseq
          %v1131 = vshrl.u32 %v1130, 7
          %v1132 = vsub.s32 %v1129, %v1131
          %v1133 = vrot.slane %v1126, %v1132
          %v1134 = vcombine.low %v1083, %v1099
          %v1136 = vunpack.c.l.s4 1983009808
          %v1137 = vunpack.c.0.s8 %v1136
          %v1138 = vlaneseq
          %v1139 = vshrl.u32 %v1138, 7
          %v1140 = vsub.s32 %v1137, %v1139
          %v1141 = vrot.slane %v1134, %v1140
          %v1142 = vcombine.low %v1133, %v1141
          %v1144 = vunpack.c.l.s4 1934713408
          %v1145 = vunpack.c.0.s8 %v1144
          %v1146 = vlaneseq
          %v1147 = vshrl.u32 %v1146, 7
          %v1148 = vsub.s32 %v1145, %v1147
          %v1149 = vrot.slane %v1142, %v1148
          %v1150 = vcombine.high %v1149, 0
          %v1153 = vpack.i.b16 %v1149, %v1124
          %v1155 = vshrl.u32 %v1124, 16
          %v1156 = vshrl.u32 %v1149, 16
          %v1157 = vpack.i.b16 %v1156, %v1155
          %v1161 = vpack.i.b16 %v1150, %v1125
          %v1163 = vshrl.u32 %v1125, 16
          %v1164 = vshrl.u32 %v1150, 16
          %v1165 = vpack.i.b16 %v1164, %v1163
          %s1167 = scalar_lea.vmem [#allocation2], 32
          %1168 = vst.msk [vmem:[%s1167] sm:$0xf] %vm809, %v1153
          %1169 = vst.msk [vmem:[%s1167 + $0x4] sm:$0xf] %vm809, %v1157
          %1170 = vst.msk [vmem:[%s1167 + $0x8] sm:$0xf] %vm809, %v1161
          %1171 = vst.msk [vmem:[%s1167 + $0xc] sm:$0xf] %vm809, %v1165
        $region84: #{bert_forward.2} parent=75 // pred_fallthru
          _
        %s1172 = smul.u32 %s31, 8
        %s1173 = scalar_lea.vmem %s509, %s1172
        %v1174 = vld [vmem:[%s1173] sm:$0xff]
        %s1175 = sshra.s32 %s1172, 3
        %s1176 = sand.u32 %s1172, 7
        %s1177 = smul.addr %s1175, 4
        %s1178 = scalar_lea.vmem [#allocation2], %s1177
        %v1179 = vld [vmem:[%s1178] sm:$0xf]
        %v1180 = vld [vmem:[%s1178 + $0x4] sm:$0xf]
        %v1181 = vld [vmem:[%s1178 + $0x8] sm:$0xf]
        %v1182 = vld [vmem:[%s1178 + $0xc] sm:$0xf]
        %s1183 = scalar_lea.vmem [#allocation2], 16
        %v1184 = vld [vmem:[%s1183] sm:$0xf]
        %v1185 = vld [vmem:[%s1183 + $0x4] sm:$0xf]
        %v1186 = vld [vmem:[%s1183 + $0x8] sm:$0xf]
        %v1187 = vld [vmem:[%s1183 + $0xc] sm:$0xf]
        %s1188 = scalar_lea.vmem [#allocation2], 32
        %v1189 = vld [vmem:[%s1188] sm:$0xf]
        %v1190 = vld [vmem:[%s1188 + $0x4] sm:$0xf]
        %v1191 = vld [vmem:[%s1188 + $0x8] sm:$0xf]
        %v1192 = vld [vmem:[%s1188 + $0xc] sm:$0xf]
        %v1193 = vld [vmem:[%s516] sm:$0xff]
        %vm1194 = vcmask 64512
        %v1196 = vsel %vm1194, %v1179, 0
        %v1199 = vsel %vm1194, %v1184, 0
        %1201 = vmatprep.subr.bf16.mxu0 0
        %1202 = vmatpush1.bf16.xpose.msra.mxu0 %v1199
        %1203 = vmatprep.subr.bf16.mxu0 0
        %1204 = vmatpush1.bf16.xpose.msra.mxu0 0
        %1205 = vmatprep.subr.bf16.mxu0 0
        %1206 = vmatpush1.bf16.xpose.msra.mxu0 0
        %1207 = vmatprep.subr.bf16.mxu0 0
        %1208 = vmatpush1.bf16.xpose.msra.mxu0 0
        %1209 = vmatprep.subr.bf16.mxu0 0
        %1210 = vmatpush1.bf16.xpose.msra.mxu0 0
        %1211 = vmatprep.subr.bf16.mxu0 0
        %1212 = vmatpush1.bf16.xpose.msra.mxu0 0
        %1213 = vmatprep.subr.bf16.mxu0 0
        %1214 = vmatpush1.bf16.xpose.msra.mxu0 0
        %1215 = vmatprep.subr.bf16.mxu0 0
        %1216 = vmatpush1.bf16.xpose.msra.mxu0 0
        %1217 = vmatprep.subr.bf16.mxu0 0
        %1218 = vmatpush1.bf16.xpose.msra.mxu0 0
        %1219 = vmatprep.subr.bf16.mxu0 0
        %1220 = vmatpush1.bf16.xpose.msra.mxu0 0
        %1221 = vmatprep.subr.bf16.mxu0 0
        %1222 = vmatpush1.bf16.xpose.msra.mxu0 0
        %1223 = vmatprep.subr.bf16.mxu0 0
        %1224 = vmatpush1.bf16.xpose.msra.mxu0 0
        %1225 = vmatprep.subr.bf16.mxu0 0
        %1226 = vmatpush1.bf16.xpose.msra.mxu0 0
        %1227 = vmatprep.subr.bf16.mxu0 0
        %1228 = vmatpush1.bf16.xpose.msra.mxu0 0
        %1229 = vmatprep.subr.bf16.mxu0 0
        %1230 = vmatpush1.bf16.xpose.msra.mxu0 0
        %1231 = vmatprep.subr.bf16.mxu0 0
        %1232 = vmatpush1.bf16.xpose.msra.mxu0 0
        %1233 = vmatprep.mubr.bf16.mxu0 0
        %1234 = vmatmul.mubr.bf16.gmra.mrb[0].mxu0 %v1196
        %v1235 = vpop.f32.mrb[0].mxu0
        %v1236 = vadd.f32 %v1193, %v1235
        %v1237 = vpop.f32.mrb[0].mxu0
        %v1238 = vpop.f32.mrb[0].mxu0
        %v1239 = vpop.f32.mrb[0].mxu0
        %1240 = vdwg.mxu0
        %v1242 = vsel %vm1194, %v1180, 0
        %v1245 = vsel %vm1194, %v1185, 0
        %1247 = vmatprep.subr.bf16.mxu0 0
        %1248 = vmatpush1.bf16.xpose.msra.mxu0 %v1245
        %1249 = vmatprep.subr.bf16.mxu0 0
        %1250 = vmatpush1.bf16.xpose.msra.mxu0 0
        %1251 = vmatprep.subr.bf16.mxu0 0
        %1252 = vmatpush1.bf16.xpose.msra.mxu0 0
        %1253 = vmatprep.subr.bf16.mxu0 0
        %1254 = vmatpush1.bf16.xpose.msra.mxu0 0
        %1255 = vmatprep.subr.bf16.mxu0 0
        %1256 = vmatpush1.bf16.xpose.msra.mxu0 0
        %1257 = vmatprep.subr.bf16.mxu0 0
        %1258 = vmatpush1.bf16.xpose.msra.mxu0 0
        %1259 = vmatprep.subr.bf16.mxu0 0
        %1260 = vmatpush1.bf16.xpose.msra.mxu0 0
        %1261 = vmatprep.subr.bf16.mxu0 0
        %1262 = vmatpush1.bf16.xpose.msra.mxu0 0
        %1263 = vmatprep.subr.bf16.mxu0 0
        %1264 = vmatpush1.bf16.xpose.msra.mxu0 0
        %1265 = vmatprep.subr.bf16.mxu0 0
        %1266 = vmatpush1.bf16.xpose.msra.mxu0 0
        %1267 = vmatprep.subr.bf16.mxu0 0
        %1268 = vmatpush1.bf16.xpose.msra.mxu0 0
        %1269 = vmatprep.subr.bf16.mxu0 0
        %1270 = vmatpush1.bf16.xpose.msra.mxu0 0
        %1271 = vmatprep.subr.bf16.mxu0 0
        %1272 = vmatpush1.bf16.xpose.msra.mxu0 0
        %1273 = vmatprep.subr.bf16.mxu0 0
        %1274 = vmatpush1.bf16.xpose.msra.mxu0 0
        %1275 = vmatprep.subr.bf16.mxu0 0
        %1276 = vmatpush1.bf16.xpose.msra.mxu0 0
        %1277 = vmatprep.subr.bf16.mxu0 0
        %1278 = vmatpush1.bf16.xpose.msra.mxu0 0
        %1279 = vmatprep.mubr.bf16.mxu0 0
        %1280 = vmatmul.mubr.bf16.gmra.mrb[0].mxu0 %v1242
        %v1281 = vpop.f32.mrb[0].mxu0
        %v1282 = vadd.f32 %v1193, %v1281
        %v1283 = vpop.f32.mrb[0].mxu0
        %v1284 = vpop.f32.mrb[0].mxu0
        %v1285 = vpop.f32.mrb[0].mxu0
        %1286 = vdwg.mxu0
        %v1288 = vsel %vm1194, %v1181, 0
        %v1291 = vsel %vm1194, %v1186, 0
        %1293 = vmatprep.subr.bf16.mxu0 0
        %1294 = vmatpush1.bf16.xpose.msra.mxu0 %v1291
        %1295 = vmatprep.subr.bf16.mxu0 0
        %1296 = vmatpush1.bf16.xpose.msra.mxu0 0
        %1297 = vmatprep.subr.bf16.mxu0 0
        %1298 = vmatpush1.bf16.xpose.msra.mxu0 0
        %1299 = vmatprep.subr.bf16.mxu0 0
        %1300 = vmatpush1.bf16.xpose.msra.mxu0 0
        %1301 = vmatprep.subr.bf16.mxu0 0
        %1302 = vmatpush1.bf16.xpose.msra.mxu0 0
        %1303 = vmatprep.subr.bf16.mxu0 0
        %1304 = vmatpush1.bf16.xpose.msra.mxu0 0
        %1305 = vmatprep.subr.bf16.mxu0 0
        %1306 = vmatpush1.bf16.xpose.msra.mxu0 0
        %1307 = vmatprep.subr.bf16.mxu0 0
        %1308 = vmatpush1.bf16.xpose.msra.mxu0 0
        %1309 = vmatprep.subr.bf16.mxu0 0
        %1310 = vmatpush1.bf16.xpose.msra.mxu0 0
        %1311 = vmatprep.subr.bf16.mxu0 0
        %1312 = vmatpush1.bf16.xpose.msra.mxu0 0
        %1313 = vmatprep.subr.bf16.mxu0 0
        %1314 = vmatpush1.bf16.xpose.msra.mxu0 0
        %1315 = vmatprep.subr.bf16.mxu0 0
        %1316 = vmatpush1.bf16.xpose.msra.mxu0 0
        %1317 = vmatprep.subr.bf16.mxu0 0
        %1318 = vmatpush1.bf16.xpose.msra.mxu0 0
        %1319 = vmatprep.subr.bf16.mxu0 0
        %1320 = vmatpush1.bf16.xpose.msra.mxu0 0
        %1321 = vmatprep.subr.bf16.mxu0 0
        %1322 = vmatpush1.bf16.xpose.msra.mxu0 0
        %1323 = vmatprep.subr.bf16.mxu0 0
        %1324 = vmatpush1.bf16.xpose.msra.mxu0 0
        %1325 = vmatprep.mubr.bf16.mxu0 0
        %1326 = vmatmul.mubr.bf16.gmra.mrb[0].mxu0 %v1288
        %v1327 = vpop.f32.mrb[0].mxu0
        %v1328 = vadd.f32 %v1193, %v1327
        %v1329 = vpop.f32.mrb[0].mxu0
        %v1330 = vpop.f32.mrb[0].mxu0
        %v1331 = vpop.f32.mrb[0].mxu0
        %1332 = vdwg.mxu0
        %v1334 = vsel %vm1194, %v1182, 0
        %v1337 = vsel %vm1194, %v1187, 0
        %1339 = vmatprep.subr.bf16.mxu0 0
        %1340 = vmatpush1.bf16.xpose.msra.mxu0 %v1337
        %1341 = vmatprep.subr.bf16.mxu0 0
        %1342 = vmatpush1.bf16.xpose.msra.mxu0 0
        %1343 = vmatprep.subr.bf16.mxu0 0
        %1344 = vmatpush1.bf16.xpose.msra.mxu0 0
        %1345 = vmatprep.subr.bf16.mxu0 0
        %1346 = vmatpush1.bf16.xpose.msra.mxu0 0
        %1347 = vmatprep.subr.bf16.mxu0 0
        %1348 = vmatpush1.bf16.xpose.msra.mxu0 0
        %1349 = vmatprep.subr.bf16.mxu0 0
        %1350 = vmatpush1.bf16.xpose.msra.mxu0 0
        %1351 = vmatprep.subr.bf16.mxu0 0
        %1352 = vmatpush1.bf16.xpose.msra.mxu0 0
        %1353 = vmatprep.subr.bf16.mxu0 0
        %1354 = vmatpush1.bf16.xpose.msra.mxu0 0
        %1355 = vmatprep.subr.bf16.mxu0 0
        %1356 = vmatpush1.bf16.xpose.msra.mxu0 0
        %1357 = vmatprep.subr.bf16.mxu0 0
        %1358 = vmatpush1.bf16.xpose.msra.mxu0 0
        %1359 = vmatprep.subr.bf16.mxu0 0
        %1360 = vmatpush1.bf16.xpose.msra.mxu0 0
        %1361 = vmatprep.subr.bf16.mxu0 0
        %1362 = vmatpush1.bf16.xpose.msra.mxu0 0
        %1363 = vmatprep.subr.bf16.mxu0 0
        %1364 = vmatpush1.bf16.xpose.msra.mxu0 0
        %1365 = vmatprep.subr.bf16.mxu0 0
        %1366 = vmatpush1.bf16.xpose.msra.mxu0 0
        %1367 = vmatprep.subr.bf16.mxu0 0
        %1368 = vmatpush1.bf16.xpose.msra.mxu0 0
        %1369 = vmatprep.subr.bf16.mxu0 0
        %1370 = vmatpush1.bf16.xpose.msra.mxu0 0
        %1371 = vmatprep.mubr.bf16.mxu0 0
        %1372 = vmatmul.mubr.bf16.gmra.mrb[0].mxu0 %v1334
        %v1373 = vpop.f32.mrb[0].mxu0
        %v1374 = vadd.f32 %v1193, %v1373
        %v1375 = vpop.f32.mrb[0].mxu0
        %v1376 = vpop.f32.mrb[0].mxu0
        %v1377 = vpop.f32.mrb[0].mxu0
        %1378 = vdwg.mxu0
        %v1379 = vsel %vm1194, %v1236, -inf
        %1380 = vmax.xlane.f32.xlu0 %v1379
        %v1381 = vpop.xlane.xlu0 %1380
        %v1382 = vsel %vm1194, %v1282, -inf
        %1383 = vmax.xlane.f32.xlu0 %v1382
        %v1384 = vpop.xlane.xlu0 %1383
        %v1385 = vsel %vm1194, %v1328, -inf
        %1386 = vmax.xlane.f32.xlu0 %v1385
        %v1387 = vpop.xlane.xlu0 %1386
        %v1388 = vsel %vm1194, %v1374, -inf
        %1389 = vmax.xlane.f32.xlu0 %v1388
        %v1390 = vpop.xlane.xlu0 %1389
        %v1391 = vsub.f32 %v1236, %v1381
        %v1392 = vsub.f32 %v1282, %v1384
        %v1393 = vsub.f32 %v1328, %v1387
        %v1394 = vsub.f32 %v1374, %v1390
        %v1395 = vmul.f32 %v1391, 1.442695
        %v1396 = vpow.pop %v1395
        %v1397 = vmul.f32 %v1392, 1.442695
        %v1398 = vpow.pop %v1397
        %v1399 = vmul.f32 %v1393, 1.442695
        %v1400 = vpow.pop %v1399
        %v1401 = vmul.f32 %v1394, 1.442695
        %v1402 = vpow.pop %v1401
        %v1403 = vsel %vm1194, %v1396, 0.0
        %1404 = vadd.xlane.f32.xlu0 %v1403
        %v1405 = vpop.xlane.xlu0 %1404
        %v1406 = vsel %vm1194, %v1398, 0.0
        %1407 = vadd.xlane.f32.xlu0 %v1406
        %v1408 = vpop.xlane.xlu0 %1407
        %v1409 = vsel %vm1194, %v1400, 0.0
        %1410 = vadd.xlane.f32.xlu0 %v1409
        %v1411 = vpop.xlane.xlu0 %1410
        %v1412 = vsel %vm1194, %v1402, 0.0
        %1413 = vadd.xlane.f32.xlu0 %v1412
        %v1414 = vpop.xlane.xlu0 %1413
        %v1415 = vrcp.pop %v1405
        %v1416 = vrcp.pop %v1408
        %v1417 = vrcp.pop %v1411
        %v1418 = vrcp.pop %v1414
        %v1419 = vmul.f32 %v1396, %v1415
        %v1420 = vmul.f32 %v1398, %v1416
        %v1421 = vmul.f32 %v1400, %v1417
        %v1422 = vmul.f32 %v1402, %v1418
        %v1423 = vpack.c.bf16 %v1419, %v1419
        %v1424 = vpack.c.bf16 %v1420, %v1420
        %v1425 = vpack.c.bf16 %v1421, %v1421
        %v1426 = vpack.c.bf16 %v1422, %v1422
        %v1428 = vsel %vm1194, %v1423, 0
        %vm1430 = vcmask 1043456
        %v1432 = vsel %vm1430, %v1189, 0
        %1434 = vmatprep.subr.bf16.mxu0 0
        %1435 = vmatpush1.bf16.msra.mxu0 %v1432
        %1436 = vmatprep.subr.bf16.mxu0 0
        %1437 = vmatpush1.bf16.msra.mxu0 0
        %1438 = vmatprep.subr.bf16.mxu0 0
        %1439 = vmatpush1.bf16.msra.mxu0 0
        %1440 = vmatprep.subr.bf16.mxu0 0
        %1441 = vmatpush1.bf16.msra.mxu0 0
        %1442 = vmatprep.subr.bf16.mxu0 0
        %1443 = vmatpush1.bf16.msra.mxu0 0
        %1444 = vmatprep.subr.bf16.mxu0 0
        %1445 = vmatpush1.bf16.msra.mxu0 0
        %1446 = vmatprep.subr.bf16.mxu0 0
        %1447 = vmatpush1.bf16.msra.mxu0 0
        %1448 = vmatprep.subr.bf16.mxu0 0
        %1449 = vmatpush1.bf16.msra.mxu0 0
        %1450 = vmatprep.subr.bf16.mxu0 0
        %1451 = vmatpush1.bf16.msra.mxu0 0
        %1452 = vmatprep.subr.bf16.mxu0 0
        %1453 = vmatpush1.bf16.msra.mxu0 0
        %1454 = vmatprep.subr.bf16.mxu0 0
        %1455 = vmatpush1.bf16.msra.mxu0 0
        %1456 = vmatprep.subr.bf16.mxu0 0
        %1457 = vmatpush1.bf16.msra.mxu0 0
        %1458 = vmatprep.subr.bf16.mxu0 0
        %1459 = vmatpush1.bf16.msra.mxu0 0
        %1460 = vmatprep.subr.bf16.mxu0 0
        %1461 = vmatpush1.bf16.msra.mxu0 0
        %1462 = vmatprep.subr.bf16.mxu0 0
        %1463 = vmatpush1.bf16.msra.mxu0 0
        %1464 = vmatprep.subr.bf16.mxu0 0
        %1465 = vmatpush1.bf16.msra.mxu0 0
        %1466 = vmatprep.mubr.bf16.mxu0 0
        %1467 = vmatmul.mubr.bf16.gmra.mrb[0].mxu0 %v1428
        %v1468 = vpop.f32.mrb[0].mxu0
        %v1469 = vadd.f32 0.0, %v1468
        %v1470 = vpop.f32.mrb[0].mxu0
        %v1471 = vpop.f32.mrb[0].mxu0
        %v1472 = vpop.f32.mrb[0].mxu0
        %1473 = vdwg.mxu0
        %v1475 = vsel %vm1194, %v1424, 0
        %v1478 = vsel %vm1430, %v1190, 0
        %1480 = vmatprep.subr.bf16.mxu0 0
        %1481 = vmatpush1.bf16.msra.mxu0 %v1478
        %1482 = vmatprep.subr.bf16.mxu0 0
        %1483 = vmatpush1.bf16.msra.mxu0 0
        %1484 = vmatprep.subr.bf16.mxu0 0
        %1485 = vmatpush1.bf16.msra.mxu0 0
        %1486 = vmatprep.subr.bf16.mxu0 0
        %1487 = vmatpush1.bf16.msra.mxu0 0
        %1488 = vmatprep.subr.bf16.mxu0 0
        %1489 = vmatpush1.bf16.msra.mxu0 0
        %1490 = vmatprep.subr.bf16.mxu0 0
        %1491 = vmatpush1.bf16.msra.mxu0 0
        %1492 = vmatprep.subr.bf16.mxu0 0
        %1493 = vmatpush1.bf16.msra.mxu0 0
        %1494 = vmatprep.subr.bf16.mxu0 0
        %1495 = vmatpush1.bf16.msra.mxu0 0
        %1496 = vmatprep.subr.bf16.mxu0 0
        %1497 = vmatpush1.bf16.msra.mxu0 0
        %1498 = vmatprep.subr.bf16.mxu0 0
        %1499 = vmatpush1.bf16.msra.mxu0 0
        %1500 = vmatprep.subr.bf16.mxu0 0
        %1501 = vmatpush1.bf16.msra.mxu0 0
        %1502 = vmatprep.subr.bf16.mxu0 0
        %1503 = vmatpush1.bf16.msra.mxu0 0
        %1504 = vmatprep.subr.bf16.mxu0 0
        %1505 = vmatpush1.bf16.msra.mxu0 0
        %1506 = vmatprep.subr.bf16.mxu0 0
        %1507 = vmatpush1.bf16.msra.mxu0 0
        %1508 = vmatprep.subr.bf16.mxu0 0
        %1509 = vmatpush1.bf16.msra.mxu0 0
        %1510 = vmatprep.subr.bf16.mxu0 0
        %1511 = vmatpush1.bf16.msra.mxu0 0
        %1512 = vmatprep.mubr.bf16.mxu0 0
        %1513 = vmatmul.mubr.bf16.gmra.mrb[0].mxu0 %v1475
        %v1514 = vpop.f32.mrb[0].mxu0
        %v1515 = vadd.f32 0.0, %v1514
        %v1516 = vpop.f32.mrb[0].mxu0
        %v1517 = vpop.f32.mrb[0].mxu0
        %v1518 = vpop.f32.mrb[0].mxu0
        %1519 = vdwg.mxu0
        %v1521 = vsel %vm1194, %v1425, 0
        %v1524 = vsel %vm1430, %v1191, 0
        %1526 = vmatprep.subr.bf16.mxu0 0
        %1527 = vmatpush1.bf16.msra.mxu0 %v1524
        %1528 = vmatprep.subr.bf16.mxu0 0
        %1529 = vmatpush1.bf16.msra.mxu0 0
        %1530 = vmatprep.subr.bf16.mxu0 0
        %1531 = vmatpush1.bf16.msra.mxu0 0
        %1532 = vmatprep.subr.bf16.mxu0 0
        %1533 = vmatpush1.bf16.msra.mxu0 0
        %1534 = vmatprep.subr.bf16.mxu0 0
        %1535 = vmatpush1.bf16.msra.mxu0 0
        %1536 = vmatprep.subr.bf16.mxu0 0
        %1537 = vmatpush1.bf16.msra.mxu0 0
        %1538 = vmatprep.subr.bf16.mxu0 0
        %1539 = vmatpush1.bf16.msra.mxu0 0
        %1540 = vmatprep.subr.bf16.mxu0 0
        %1541 = vmatpush1.bf16.msra.mxu0 0
        %1542 = vmatprep.subr.bf16.mxu0 0
        %1543 = vmatpush1.bf16.msra.mxu0 0
        %1544 = vmatprep.subr.bf16.mxu0 0
        %1545 = vmatpush1.bf16.msra.mxu0 0
        %1546 = vmatprep.subr.bf16.mxu0 0
        %1547 = vmatpush1.bf16.msra.mxu0 0
        %1548 = vmatprep.subr.bf16.mxu0 0
        %1549 = vmatpush1.bf16.msra.mxu0 0
        %1550 = vmatprep.subr.bf16.mxu0 0
        %1551 = vmatpush1.bf16.msra.mxu0 0
        %1552 = vmatprep.subr.bf16.mxu0 0
        %1553 = vmatpush1.bf16.msra.mxu0 0
        %1554 = vmatprep.subr.bf16.mxu0 0
        %1555 = vmatpush1.bf16.msra.mxu0 0
        %1556 = vmatprep.subr.bf16.mxu0 0
        %1557 = vmatpush1.bf16.msra.mxu0 0
        %1558 = vmatprep.mubr.bf16.mxu0 0
        %1559 = vmatmul.mubr.bf16.gmra.mrb[0].mxu0 %v1521
        %v1560 = vpop.f32.mrb[0].mxu0
        %v1561 = vadd.f32 0.0, %v1560
        %v1562 = vpop.f32.mrb[0].mxu0
        %v1563 = vpop.f32.mrb[0].mxu0
        %v1564 = vpop.f32.mrb[0].mxu0
        %1565 = vdwg.mxu0
        %v1567 = vsel %vm1194, %v1426, 0
        %v1570 = vsel %vm1430, %v1192, 0
        %1572 = vmatprep.subr.bf16.mxu0 0
        %1573 = vmatpush1.bf16.msra.mxu0 %v1570
        %1574 = vmatprep.subr.bf16.mxu0 0
        %1575 = vmatpush1.bf16.msra.mxu0 0
        %1576 = vmatprep.subr.bf16.mxu0 0
        %1577 = vmatpush1.bf16.msra.mxu0 0
        %1578 = vmatprep.subr.bf16.mxu0 0
        %1579 = vmatpush1.bf16.msra.mxu0 0
        %1580 = vmatprep.subr.bf16.mxu0 0
        %1581 = vmatpush1.bf16.msra.mxu0 0
        %1582 = vmatprep.subr.bf16.mxu0 0
        %1583 = vmatpush1.bf16.msra.mxu0 0
        %1584 = vmatprep.subr.bf16.mxu0 0
        %1585 = vmatpush1.bf16.msra.mxu0 0
        %1586 = vmatprep.subr.bf16.mxu0 0
        %1587 = vmatpush1.bf16.msra.mxu0 0
        %1588 = vmatprep.subr.bf16.mxu0 0
        %1589 = vmatpush1.bf16.msra.mxu0 0
        %1590 = vmatprep.subr.bf16.mxu0 0
        %1591 = vmatpush1.bf16.msra.mxu0 0
        %1592 = vmatprep.subr.bf16.mxu0 0
        %1593 = vmatpush1.bf16.msra.mxu0 0
        %1594 = vmatprep.subr.bf16.mxu0 0
        %1595 = vmatpush1.bf16.msra.mxu0 0
        %1596 = vmatprep.subr.bf16.mxu0 0
        %1597 = vmatpush1.bf16.msra.mxu0 0
        %1598 = vmatprep.subr.bf16.mxu0 0
        %1599 = vmatpush1.bf16.msra.mxu0 0
        %1600 = vmatprep.subr.bf16.mxu0 0
        %1601 = vmatpush1.bf16.msra.mxu0 0
        %1602 = vmatprep.subr.bf16.mxu0 0
        %1603 = vmatpush1.bf16.msra.mxu0 0
        %1604 = vmatprep.mubr.bf16.mxu0 0
        %1605 = vmatmul.mubr.bf16.gmra.mrb[0].mxu0 %v1567
        %v1606 = vpop.f32.mrb[0].mxu0
        %v1607 = vadd.f32 0.0, %v1606
        %v1608 = vpop.f32.mrb[0].mxu0
        %v1609 = vpop.f32.mrb[0].mxu0
        %v1610 = vpop.f32.mrb[0].mxu0
        %1611 = vdwg.mxu0
        %v1612 = vcombine.low %v1469, %v1561
        %v1613 = vcombine.high %v1469, %v1561
        %v1615 = vunpack.c.l.s4 1983009808
        %v1616 = vunpack.c.0.s8 %v1615
        %v1617 = vlaneseq
        %v1618 = vshrl.u32 %v1617, 7
        %v1619 = vsub.s32 %v1616, %v1618
        %v1620 = vrot.slane %v1612, %v1619
        %v1622 = vunpack.c.l.s4 1983009808
        %v1623 = vunpack.c.0.s8 %v1622
        %v1624 = vlaneseq
        %v1625 = vshrl.u32 %v1624, 7
        %v1626 = vsub.s32 %v1623, %v1625
        %v1627 = vrot.slane %v1613, %v1626
        %v1628 = vcombine.low %v1515, %v1607
        %v1629 = vcombine.high %v1515, %v1607
        %v1631 = vunpack.c.l.s4 1983009808
        %v1632 = vunpack.c.0.s8 %v1631
        %v1633 = vlaneseq
        %v1634 = vshrl.u32 %v1633, 7
        %v1635 = vsub.s32 %v1632, %v1634
        %v1636 = vrot.slane %v1628, %v1635
        %v1638 = vunpack.c.l.s4 1983009808
        %v1639 = vunpack.c.0.s8 %v1638
        %v1640 = vlaneseq
        %v1641 = vshrl.u32 %v1640, 7
        %v1642 = vsub.s32 %v1639, %v1641
        %v1643 = vrot.slane %v1629, %v1642
        %v1644 = vcombine.low %v1620, %v1636
        %v1645 = vcombine.high %v1620, %v1636
        %v1647 = vunpack.c.l.s4 1934713408
        %v1648 = vunpack.c.0.s8 %v1647
        %v1649 = vlaneseq
        %v1650 = vshrl.u32 %v1649, 7
        %v1651 = vsub.s32 %v1648, %v1650
        %v1652 = vrot.slane %v1644, %v1651
        %v1654 = vunpack.c.l.s4 1934713408
        %v1655 = vunpack.c.0.s8 %v1654
        %v1656 = vlaneseq
        %v1657 = vshrl.u32 %v1656, 7
        %v1658 = vsub.s32 %v1655, %v1657
        %v1659 = vrot.slane %v1645, %v1658
        %v1660 = vcombine.low %v1627, %v1643
        %v1661 = vcombine.high %v1627, %v1643
        %v1663 = vunpack.c.l.s4 1934713408
        %v1664 = vunpack.c.0.s8 %v1663
        %v1665 = vlaneseq
        %v1666 = vshrl.u32 %v1665, 7
        %v1667 = vsub.s32 %v1664, %v1666
        %v1668 = vrot.slane %v1660, %v1667
        %v1670 = vunpack.c.l.s4 1934713408
        %v1671 = vunpack.c.0.s8 %v1670
        %v1672 = vlaneseq
        %v1673 = vshrl.u32 %v1672, 7
        %v1674 = vsub.s32 %v1671, %v1673
        %v1675 = vrot.slane %v1661, %v1674
        %v1676 = vcombine.high %v1652, 0.0
        %v1677 = vcombine.high %v1659, 0.0
        %v1678 = vcombine.high %v1668, 0.0
        %v1679 = vcombine.high %v1675, 0.0
        %v1680 = vcombine.low %v1652, %v1659
        %v1682 = vunpack.c.l.s4 1983009808
        %v1683 = vunpack.c.0.s8 %v1682
        %v1684 = vlaneseq
        %v1685 = vshrl.u32 %v1684, 7
        %v1686 = vsub.s32 %v1683, %v1685
        %v1687 = vrot.slane %v1680, %v1686
        %v1688 = vcombine.low %v1676, %v1677
        %v1690 = vunpack.c.l.s4 1983009808
        %v1691 = vunpack.c.0.s8 %v1690
        %v1692 = vlaneseq
        %v1693 = vshrl.u32 %v1692, 7
        %v1694 = vsub.s32 %v1691, %v1693
        %v1695 = vrot.slane %v1688, %v1694
        %v1696 = vcombine.low %v1668, %v1675
        %v1698 = vunpack.c.l.s4 1983009808
        %v1699 = vunpack.c.0.s8 %v1698
        %v1700 = vlaneseq
        %v1701 = vshrl.u32 %v1700, 7
        %v1702 = vsub.s32 %v1699, %v1701
        %v1703 = vrot.slane %v1696, %v1702
        %v1704 = vcombine.low %v1678, %v1679
        %v1706 = vunpack.c.l.s4 1983009808
        %v1707 = vunpack.c.0.s8 %v1706
        %v1708 = vlaneseq
        %v1709 = vshrl.u32 %v1708, 7
        %v1710 = vsub.s32 %v1707, %v1709
        %v1711 = vrot.slane %v1704, %v1710
        %v1712 = vcombine.low %v1687, %v1695
        %v1713 = vcombine.high %v1687, %v1695
        %v1715 = vunpack.c.l.s4 1934713408
        %v1716 = vunpack.c.0.s8 %v1715
        %v1717 = vlaneseq
        %v1718 = vshrl.u32 %v1717, 7
        %v1719 = vsub.s32 %v1716, %v1718
        %v1720 = vrot.slane %v1712, %v1719
        %v1722 = vunpack.c.l.s4 1934713408
        %v1723 = vunpack.c.0.s8 %v1722
        %v1724 = vlaneseq
        %v1725 = vshrl.u32 %v1724, 7
        %v1726 = vsub.s32 %v1723, %v1725
        %v1727 = vrot.slane %v1713, %v1726
        %v1728 = vcombine.low %v1703, %v1711
        %v1729 = vcombine.high %v1703, %v1711
        %v1731 = vunpack.c.l.s4 1934713408
        %v1732 = vunpack.c.0.s8 %v1731
        %v1733 = vlaneseq
        %v1734 = vshrl.u32 %v1733, 7
        %v1735 = vsub.s32 %v1732, %v1734
        %v1736 = vrot.slane %v1728, %v1735
        %v1738 = vunpack.c.l.s4 1934713408
        %v1739 = vunpack.c.0.s8 %v1738
        %v1740 = vlaneseq
        %v1741 = vshrl.u32 %v1740, 7
        %v1742 = vsub.s32 %v1739, %v1741
        %v1743 = vrot.slane %v1729, %v1742
        %v1744 = vcombine.low %v1720, %v1736
        %v1745 = vcombine.high %v1720, %v1736
        %v1746 = vcombine.low %v1727, %v1743
        %v1747 = vcombine.high %v1727, %v1743
        %1749 = vrot.lane.b32.xlu0 %v1745, 8
        %v1750 = vpop.permute.xlu0 %1749
        %1753 = vrot.lane.b32.xlu0 %v1746, 16
        %v1754 = vpop.permute.xlu0 %1753
        %1757 = vrot.lane.b32.xlu0 %v1747, 24
        %v1758 = vpop.permute.xlu0 %1757
        %v1760 = vsel %vm1194, %v1744, %v1750
        %vm1761 = vcmask 130048
        %v1762 = vsel %vm1761, %v1760, %v1754
        %vm1763 = vcmask 195584
        %v1764 = vsel %vm1763, %v1762, %v1758
        %v1765 = vpack.c.bf16 %v1764, %v1764
        %v1766 = vld [vmem:[%s4] sm:$0xf]
        %v1767 = vld [vmem:[%s4 + $0x4] sm:$0xf]
        %v1768 = vld [vmem:[%s4 + $0x8] sm:$0xf]
        %v1769 = vld [vmem:[%s4 + $0xc] sm:$0xf]
        %v1770 = vld [vmem:[%s5] sm:$0x1]
        %v1772 = vlaneseq
        %v1773 = vshrl.u32 %v1772, 7
        %v1774 = vsub.s32 0, %v1773
        %v1775 = vrot.slane %v1770, %v1774
        %v1781 = vunpack.c.l.b16 %v1766
        %v1782 = vunpack.c.l.b16 %v1767
        %v1783 = vunpack.c.l.b16 %v1768
        %v1784 = vunpack.c.l.b16 %v1769
        %v1785 = vpack.c.b16 %v1782, %v1781
        %v1786 = vpack.c.b16 %v1784, %v1783
        %vm1789 = vcmask 261120
        %v1791 = vsel %vm1789, %v1765, 0
        %1793 = vmatprep.subr.bf16.mxu0 0
        %1794 = vmatpush1.bf16.msra.mxu0 %v1785
        %1795 = vmatprep.subr.bf16.mxu0 0
        %1796 = vmatpush1.bf16.msra.mxu0 %v1786
        %1797 = vmatprep.subr.bf16.mxu0 0
        %1798 = vmatpush1.bf16.msra.mxu0 0
        %1799 = vmatprep.subr.bf16.mxu0 0
        %1800 = vmatpush1.bf16.msra.mxu0 0
        %1801 = vmatprep.subr.bf16.mxu0 0
        %1802 = vmatpush1.bf16.msra.mxu0 0
        %1803 = vmatprep.subr.bf16.mxu0 0
        %1804 = vmatpush1.bf16.msra.mxu0 0
        %1805 = vmatprep.subr.bf16.mxu0 0
        %1806 = vmatpush1.bf16.msra.mxu0 0
        %1807 = vmatprep.subr.bf16.mxu0 0
        %1808 = vmatpush1.bf16.msra.mxu0 0
        %1809 = vmatprep.subr.bf16.mxu0 0
        %1810 = vmatpush1.bf16.msra.mxu0 0
        %1811 = vmatprep.subr.bf16.mxu0 0
        %1812 = vmatpush1.bf16.msra.mxu0 0
        %1813 = vmatprep.subr.bf16.mxu0 0
        %1814 = vmatpush1.bf16.msra.mxu0 0
        %1815 = vmatprep.subr.bf16.mxu0 0
        %1816 = vmatpush1.bf16.msra.mxu0 0
        %1817 = vmatprep.subr.bf16.mxu0 0
        %1818 = vmatpush1.bf16.msra.mxu0 0
        %1819 = vmatprep.subr.bf16.mxu0 0
        %1820 = vmatpush1.bf16.msra.mxu0 0
        %1821 = vmatprep.subr.bf16.mxu0 0
        %1822 = vmatpush1.bf16.msra.mxu0 0
        %1823 = vmatprep.subr.bf16.mxu0 0
        %1824 = vmatpush1.bf16.msra.mxu0 0
        %1825 = vmatprep.mubr.bf16.mxu0 0
        %1826 = vmatmul.mubr.bf16.gmra.mrb[0].mxu0 %v1791
        %v1827 = vpop.f32.mrb[0].mxu0
        %v1828 = vadd.f32 %v1775, %v1827
        %v1829 = vpop.f32.mrb[0].mxu0
        %v1830 = vpop.f32.mrb[0].mxu0
        %v1831 = vpop.f32.mrb[0].mxu0
        %1832 = vdwg.mxu0
        %v1833 = vadd.f32 %v1174, %v1828
        %v1834 = vld [vmem:[%s8] sm:$0x1]
        %v1835 = vld [vmem:[%s9] sm:$0x1]
        %v1836 = vsel %vm1789, %v1833, 0.0
        %1837 = vadd.xlane.f32.xlu0 %v1836
        %v1838 = vpop.xlane.xlu0 %1837
        %v1839 = vrcp.pop 32.0
        %v1840 = vmul.f32 %v1838, %v1839
        %v1841 = vsub.f32 %v1833, %v1840
        %v1842 = vmul.f32 %v1841, %v1841
        %v1843 = vsel %vm1789, %v1842, 0.0
        %1844 = vadd.xlane.f32.xlu0 %v1843
        %v1845 = vpop.xlane.xlu0 %1844
        %v1846 = vrcp.pop 31.0
        %v1847 = vmul.f32 %v1845, %v1846
        %v1848 = vrsqrt.pop %v1847
        %v1849 = vmul.f32 %v1847, %v1848
        %vm1850 = vcmp.eq.f32.partialorder %v1847, inf
        %v1851 = vsel %vm1850, %v1847, %v1849
        %vm1852 = vcmp.eq.f32.partialorder %v1847, 0.0
        %v1853 = vand.u32 %v1847, 2147483648
        %v1854 = vsel %vm1852, %v1853, %v1851
        %v1856 = vlaneseq
        %v1857 = vshrl.u32 %v1856, 7
        %v1858 = vsub.s32 0, %v1857
        %v1859 = vrot.slane %v1834, %v1858
        %v1861 = vmul.f32 %v1859, %v1841
        %v1862 = vadd.f32 %v1854, 1e-06
        %v1863 = vrcp.pop %v1862
        %v1864 = vmul.f32 %v1861, %v1863
        %v1866 = vlaneseq
        %v1867 = vshrl.u32 %v1866, 7
        %v1868 = vsub.s32 0, %v1867
        %v1869 = vrot.slane %v1835, %v1868
        %v1871 = vadd.f32 %v1864, %v1869
        %v1872 = vpack.c.bf16 %v1871, %v1871
        %v1873 = vld [vmem:[%s10] sm:$0xf]
        %v1874 = vld [vmem:[%s10 + $0x4] sm:$0xf]
        %v1875 = vld [vmem:[%s10 + $0x8] sm:$0xf]
        %v1876 = vld [vmem:[%s10 + $0xc] sm:$0xf]
        %v1877 = vld [vmem:[#allocation3] sm:$0x1]
        %v1879 = vlaneseq
        %v1880 = vshrl.u32 %v1879, 7
        %v1881 = vsub.s32 0, %v1880
        %v1882 = vrot.slane %v1877, %v1881
        %v1888 = vunpack.c.l.b16 %v1873
        %v1889 = vunpack.c.l.b16 %v1874
        %v1890 = vunpack.c.l.b16 %v1875
        %v1891 = vunpack.c.l.b16 %v1876
        %v1892 = vpack.c.b16 %v1889, %v1888
        %v1893 = vpack.c.b16 %v1891, %v1890
        %v1897 = vsel %vm1789, %v1872, 0
        %1899 = vmatprep.subr.bf16.mxu0 0
        %1900 = vmatpush1.bf16.msra.mxu0 %v1892
        %1901 = vmatprep.subr.bf16.mxu0 0
        %1902 = vmatpush1.bf16.msra.mxu0 %v1893
        %1903 = vmatprep.subr.bf16.mxu0 0
        %1904 = vmatpush1.bf16.msra.mxu0 0
        %1905 = vmatprep.subr.bf16.mxu0 0
        %1906 = vmatpush1.bf16.msra.mxu0 0
        %1907 = vmatprep.subr.bf16.mxu0 0
        %1908 = vmatpush1.bf16.msra.mxu0 0
        %1909 = vmatprep.subr.bf16.mxu0 0
        %1910 = vmatpush1.bf16.msra.mxu0 0
        %1911 = vmatprep.subr.bf16.mxu0 0
        %1912 = vmatpush1.bf16.msra.mxu0 0
        %1913 = vmatprep.subr.bf16.mxu0 0
        %1914 = vmatpush1.bf16.msra.mxu0 0
        %1915 = vmatprep.subr.bf16.mxu0 0
        %1916 = vmatpush1.bf16.msra.mxu0 0
        %1917 = vmatprep.subr.bf16.mxu0 0
        %1918 = vmatpush1.bf16.msra.mxu0 0
        %1919 = vmatprep.subr.bf16.mxu0 0
        %1920 = vmatpush1.bf16.msra.mxu0 0
        %1921 = vmatprep.subr.bf16.mxu0 0
        %1922 = vmatpush1.bf16.msra.mxu0 0
        %1923 = vmatprep.subr.bf16.mxu0 0
        %1924 = vmatpush1.bf16.msra.mxu0 0
        %1925 = vmatprep.subr.bf16.mxu0 0
        %1926 = vmatpush1.bf16.msra.mxu0 0
        %1927 = vmatprep.subr.bf16.mxu0 0
        %1928 = vmatpush1.bf16.msra.mxu0 0
        %1929 = vmatprep.subr.bf16.mxu0 0
        %1930 = vmatpush1.bf16.msra.mxu0 0
        %1931 = vmatprep.mubr.bf16.mxu0 0
        %1932 = vmatmul.mubr.bf16.gmra.mrb[0].mxu0 %v1897
        %v1933 = vpop.f32.mrb[0].mxu0
        %v1934 = vadd.f32 %v1882, %v1933
        %v1935 = vpop.f32.mrb[0].mxu0
        %v1936 = vpop.f32.mrb[0].mxu0
        %v1937 = vpop.f32.mrb[0].mxu0
        %1938 = vdwg.mxu0
        %v1939 = vmul.f32 %v1934, 0.5
        %v1940 = vmul.f32 %v1934, 0.044715
        %v1941 = vmul.f32 %v1940, %v1934
        %v1942 = vmul.f32 %v1941, %v1934
        %v1943 = vadd.f32 %v1934, %v1942
        %v1944 = vmul.f32 %v1943, 0.7978846
        %v1945 = vtanh.pop %v1944
        %v1946 = vadd.f32 %v1945, 1.0
        %v1947 = vmul.f32 %v1939, %v1946
        %v1948 = vpack.c.bf16 %v1947, %v1947
        %v1949 = vld [vmem:[%s12] sm:$0xf]
        %v1950 = vld [vmem:[%s12 + $0x4] sm:$0xf]
        %v1951 = vld [vmem:[%s12 + $0x8] sm:$0xf]
        %v1952 = vld [vmem:[%s12 + $0xc] sm:$0xf]
        %v1953 = vld [vmem:[%s12 + $0x10] sm:$0xf]
        %v1954 = vld [vmem:[%s12 + $0x14] sm:$0xf]
        %v1955 = vld [vmem:[%s12 + $0x18] sm:$0xf]
        %v1956 = vld [vmem:[%s12 + $0x1c] sm:$0xf]
        %v1957 = vld [vmem:[%s12 + $0x20] sm:$0xf]
        %v1958 = vld [vmem:[%s12 + $0x24] sm:$0xf]
        %v1959 = vld [vmem:[%s12 + $0x28] sm:$0xf]
        %v1960 = vld [vmem:[%s12 + $0x2c] sm:$0xf]
        %v1961 = vld [vmem:[%s12 + $0x30] sm:$0xf]
        %v1962 = vld [vmem:[%s12 + $0x34] sm:$0xf]
        %v1963 = vld [vmem:[%s12 + $0x38] sm:$0xf]
        %v1964 = vld [vmem:[%s12 + $0x3c] sm:$0xf]
        %v1965 = vld [vmem:[%s13] sm:$0x1]
        %v1967 = vlaneseq
        %v1968 = vshrl.u32 %v1967, 7
        %v1969 = vsub.s32 0, %v1968
        %v1970 = vrot.slane %v1965, %v1969
        %v1988 = vunpack.c.l.b16 %v1949
        %v1989 = vunpack.c.l.b16 %v1950
        %v1990 = vunpack.c.l.b16 %v1951
        %v1991 = vunpack.c.l.b16 %v1952
        %v1992 = vunpack.c.l.b16 %v1953
        %v1993 = vunpack.c.l.b16 %v1954
        %v1994 = vunpack.c.l.b16 %v1955
        %v1995 = vunpack.c.l.b16 %v1956
        %v1996 = vunpack.c.l.b16 %v1957
        %v1997 = vunpack.c.l.b16 %v1958
        %v1998 = vunpack.c.l.b16 %v1959
        %v1999 = vunpack.c.l.b16 %v1960
        %v2000 = vunpack.c.l.b16 %v1961
        %v2001 = vunpack.c.l.b16 %v1962
        %v2002 = vunpack.c.l.b16 %v1963
        %v2003 = vunpack.c.l.b16 %v1964
        %v2004 = vpack.c.b16 %v1989, %v1988
        %v2005 = vpack.c.b16 %v1991, %v1990
        %v2006 = vpack.c.b16 %v1993, %v1992
        %v2007 = vpack.c.b16 %v1995, %v1994
        %v2008 = vpack.c.b16 %v1997, %v1996
        %v2009 = vpack.c.b16 %v1999, %v1998
        %v2010 = vpack.c.b16 %v2001, %v2000
        %v2011 = vpack.c.b16 %v2003, %v2002
        %2020 = vmatprep.subr.bf16.mxu0 0
        %2021 = vmatpush1.bf16.msra.mxu0 %v2004
        %2022 = vmatprep.subr.bf16.mxu0 0
        %2023 = vmatpush1.bf16.msra.mxu0 %v2005
        %2024 = vmatprep.subr.bf16.mxu0 0
        %2025 = vmatpush1.bf16.msra.mxu0 %v2006
        %2026 = vmatprep.subr.bf16.mxu0 0
        %2027 = vmatpush1.bf16.msra.mxu0 %v2007
        %2028 = vmatprep.subr.bf16.mxu0 0
        %2029 = vmatpush1.bf16.msra.mxu0 %v2008
        %2030 = vmatprep.subr.bf16.mxu0 0
        %2031 = vmatpush1.bf16.msra.mxu0 %v2009
        %2032 = vmatprep.subr.bf16.mxu0 0
        %2033 = vmatpush1.bf16.msra.mxu0 %v2010
        %2034 = vmatprep.subr.bf16.mxu0 0
        %2035 = vmatpush1.bf16.msra.mxu0 %v2011
        %2036 = vmatprep.subr.bf16.mxu0 0
        %2037 = vmatpush1.bf16.msra.mxu0 0
        %2038 = vmatprep.subr.bf16.mxu0 0
        %2039 = vmatpush1.bf16.msra.mxu0 0
        %2040 = vmatprep.subr.bf16.mxu0 0
        %2041 = vmatpush1.bf16.msra.mxu0 0
        %2042 = vmatprep.subr.bf16.mxu0 0
        %2043 = vmatpush1.bf16.msra.mxu0 0
        %2044 = vmatprep.subr.bf16.mxu0 0
        %2045 = vmatpush1.bf16.msra.mxu0 0
        %2046 = vmatprep.subr.bf16.mxu0 0
        %2047 = vmatpush1.bf16.msra.mxu0 0
        %2048 = vmatprep.subr.bf16.mxu0 0
        %2049 = vmatpush1.bf16.msra.mxu0 0
        %2050 = vmatprep.subr.bf16.mxu0 0
        %2051 = vmatpush1.bf16.msra.mxu0 0
        %2052 = vmatprep.mubr.bf16.mxu0 0
        %2053 = vmatmul.mubr.bf16.gmra.mrb[0].mxu0 %v1948
        %v2054 = vpop.f32.mrb[0].mxu0
        %v2055 = vadd.f32 %v1970, %v2054
        %v2056 = vpop.f32.mrb[0].mxu0
        %v2057 = vpop.f32.mrb[0].mxu0
        %v2058 = vpop.f32.mrb[0].mxu0
        %2059 = vdwg.mxu0
        %v2060 = vadd.f32 %v1833, %v2055
        %2061 = vst.msk [vmem:[%s523] sm:$0xff] %vm1789, %v2060
        %p2062 = scmp.lt.s32.totalorder %s30, 1
        %s2063 = scalar_select %p2062, %s30, 1
        %p2064 = scmp.lt.s32.totalorder %s31, 0
        %s2065 = scalar_select %p2064, %s31, 0
        %s2066 = sadd.s32 %s2065, %s2063
        %s2067 = smul.addr %s2066, 8
        %s2068 = scalar_lea.vmem %s14, %s2067
        // Predicated region
        $region85: #{bert_forward.2} parent=75 // pred_check
          %p2069 = pneg %p364
        $region86: #{bert_forward.2} parent=75 // pred_check_branch
          %2071 = sbr.rel (%p2069) target = $region88
        $region87: #{bert_forward.2} parent=75 // pred_region
          _
        $region88: #{bert_forward.2} parent=75 // pred_fallthru
          _
      $region76: #{bert_forward.2} parent=5 // pred_fallthru
        _
      %p2072 = scmp.le.s32.totalorder 2, %s21
      // Predicated region
      $region89: #{bert_forward.2} parent=5 // pred_check
        %p2073 = pneg %p2072
      $region90: #{bert_forward.2} parent=5 // pred_check_branch
        %2075 = sbr.rel (%p2073) target = $region92
      $region91: #{bert_forward.2} parent=5 // pred_region
        %s2076 = ssub.s32 %s21, 2
        // Predicated region
        $region93: #{bert_forward.2} parent=91 // pred_check
          %p2077 = pneg %p370
        $region94: #{bert_forward.2} parent=91 // pred_check_branch
          %2079 = sbr.rel (%p2077) target = $region96
        $region95: #{bert_forward.2} parent=91 // pred_region
          %p2080 = scmp.lt.s32.totalorder %s32, 1
          %s2081 = scalar_select %p2080, %s32, 1
          %p2082 = scmp.lt.s32.totalorder %s33, 0
          %s2083 = scalar_select %p2082, %s33, 0
          %s2084 = sadd.s32 %s2083, %s2081
          %s2085 = smul.addr %s2084, 8
          %s2086 = scalar_lea.vmem %s14, %s2085
        $region96: #{bert_forward.2} parent=91 // pred_fallthru
          _
      $region92: #{bert_forward.2} parent=5 // pred_fallthru
        _
    $region6: #{bert_forward.2} parent=1 // loop_footer
      %s25 = sadd.s32 1, %s21
    $region7: #{bert_forward.2} parent=1 // loop_footer_branch
      %20 = sbr.rel target = $region3
    $region8: #{bert_forward.2} parent=1 // loop_exit
      _
    %2087 = vsyncpa [#allocation4], 1
    %s2088 = scalar_lea.sflag [#allocation4], 1
    %2089 = vsyncpa %s2088, 1

</llo_original>
